<compile_context>
chip_gen: v7x
topology: tpu7x:2x2x1
jax: 0.10.0
libtpu: 0.0.40
codegen_flags: <defaults>
</compile_context>

<pallas_src>
import jax
import jax.numpy as jnp
from jax.experimental import pallas as pl
from jax.experimental.pallas import tpu as pltpu


def _gru_kernel(x_ref, h0_ref, wx_ref, bx_ref, whrz_ref, bhrz_ref,
                whh_ref, bhh_ref, wo_ref, bo_ref, out_ref):
    """Whole-sequence GRU in a single kernel invocation.

    x_ref   : (Bp, S, In)   inputs, native (batch, seq, feature) layout
    h0_ref  : (Bp, H)       initial hidden state
    wx_ref  : (In, 3H)      [w_xr | w_xz | w_xh]   bx_ref : (1, 3H)
    whrz_ref: (H, 2H)       [w_hr | w_hz]          bhrz_ref: (1, 2H)
    whh_ref : (H, H)        w_hh                   bhh_ref : (1, H)
    wo_ref  : (H, Out)      output projection      bo_ref  : (1, Out)
    out_ref : (Bp, S, Out)  full output block (one HBM writeback)
    """
    Bp, S, In = x_ref.shape
    H = whh_ref.shape[0]
    G3 = wx_ref.shape[1]
    Out = wo_ref.shape[1]

    def scoped(gx_ref, h_all_ref):
        # ---- (1) hoisted x-side projection: one big matmul -----------------
        # (Bp, S, In) -> (Bp*S, In) collapses leading dims only (S is a
        # multiple of 8, so this is layout-preserving).
        x_flat = x_ref[...].reshape(Bp * S, In)
        gx_flat = jnp.dot(x_flat, wx_ref[...],
                          preferred_element_type=jnp.float32) + bx_ref[...]
        gx_bm = gx_flat.reshape(Bp, S, G3)
        # Repack to a time-major VMEM scratch so the recurrence only does
        # dynamic indexing on the leading (time) axis.  Static unroll: S small.
        for t in range(S):
            gx_ref[t] = gx_bm[:, t, :]

        # ---- (2) sequential recurrence (only h-dependent matmuls inside) ---
        def step(t, h):
            gx = gx_ref[t]                                        # (Bp, 3H)
            gh = jnp.dot(h, whrz_ref[...],
                         preferred_element_type=jnp.float32) + bhrz_ref[...]
            r = jax.nn.sigmoid(gx[:, 0 * H:1 * H] + gh[:, 0 * H:1 * H])  # Rt
            z = jax.nn.sigmoid(gx[:, 1 * H:2 * H] + gh[:, 1 * H:2 * H])  # Zt
            ghh = jnp.dot(r * h, whh_ref[...],
                          preferred_element_type=jnp.float32) + bhh_ref[...]
            h_t = jnp.tanh(gx[:, 2 * H:3 * H] + ghh)                     # Ht_
            h_new = z * h + (1.0 - z) * h_t
            h_all_ref[t] = h_new
            return h_new

        jax.lax.fori_loop(0, S, step, h0_ref[...], unroll=True)

        # ---- (3) hoisted output projection: one big matmul ------------------
        h_flat = h_all_ref[...].reshape(S * Bp, H)
        o_flat = jnp.dot(h_flat, wo_ref[...],
                         preferred_element_type=jnp.float32) + bo_ref[...]
        o_tm = o_flat.reshape(S, Bp, Out)
        # Scatter into the (Bp, S, Out) output block (all stores hit VMEM;
        # Pallas does a single HBM writeback when the kernel finishes).
        for t in range(S):
            out_ref[:, t, :] = o_tm[t].astype(out_ref.dtype)

    pl.run_scoped(scoped,
                  pltpu.VMEM((S, Bp, G3), jnp.float32),   # time-major gx
                  pltpu.VMEM((S, Bp, H), jnp.float32))    # all hidden states


def my_gru_pallas(x, params, hidden_first=None):
    """x: (batch, seq, in_feature) float32 -> (batch, seq, out_feature)."""
    B, S, In = x.shape
    wx, bx, whrz, bhrz, whh, bhh, wo, bo = params
    H = whh.shape[0]
    Out = wo.shape[1]

    if hidden_first is None:
        hidden_first = jnp.zeros((B, H), jnp.float32)

    # Pad batch up to a multiple of the f32 sublane count (8); padded rows are
    # computed (on zero inputs) and then dropped.
    Bp = max(8, -(-B // 8) * 8)
    if Bp != B:
        x_in = jnp.pad(x, ((0, Bp - B), (0, 0), (0, 0)))
        h0_in = jnp.pad(hidden_first, ((0, Bp - B), (0, 0)))
    else:
        x_in, h0_in = x, hidden_first

    vmem = pl.BlockSpec(memory_space=pltpu.MemorySpace.VMEM)
    out_padded = pl.pallas_call(
        _gru_kernel,
        out_shape=jax.ShapeDtypeStruct((Bp, S, Out), jnp.float32),
        in_specs=[vmem] * 10,
        out_specs=vmem,
    )(x_in, h0_in, wx, bx, whrz, bhrz, whh, bhh, wo, bo)

    return out_padded[:B]  # (B, S, Out)


def _init_params(key, in_feature, hidden, out_feature):
    """Deterministic synthetic parameters (stored as (in, out) matrices)."""
    ks = jax.random.split(key, 14)
    scale = 0.1

    def mat(k, shape):
        return scale * jax.random.normal(k, shape, jnp.float32)

    w_xr, b_xr = mat(ks[0], (in_feature, hidden)), mat(ks[1], (1, hidden))
    w_xz, b_xz = mat(ks[2], (in_feature, hidden)), mat(ks[3], (1, hidden))
    w_xh, b_xh = mat(ks[4], (in_feature, hidden)), mat(ks[5], (1, hidden))
    w_hr, b_hr = mat(ks[6], (hidden, hidden)), mat(ks[7], (1, hidden))
    w_hz, b_hz = mat(ks[8], (hidden, hidden)), mat(ks[9], (1, hidden))
    w_hh, b_hh = mat(ks[10], (hidden, hidden)), mat(ks[11], (1, hidden))
    w_o, b_o = mat(ks[12], (hidden, out_feature)), mat(ks[13], (1, out_feature))

    wx = jnp.concatenate([w_xr, w_xz, w_xh], axis=1)      # (In, 3H)
    bx = jnp.concatenate([b_xr, b_xz, b_xh], axis=1)      # (1, 3H)
    whrz = jnp.concatenate([w_hr, w_hz], axis=1)          # (H, 2H)
    bhrz = jnp.concatenate([b_hr, b_hz], axis=1)          # (1, 2H)
    return (wx, bx, whrz, bhrz, w_hh, b_hh, w_o, b_o)


def _reference(x, params, hidden_first=None):
    """Plain-JAX re-implementation of my_GRU.forward for verification."""
    wx, bx, whrz, bhrz, whh, bhh, wo, bo = params
    B, S, _ = x.shape
    H = whh.shape[0]
    h = hidden_first if hidden_first is not None else jnp.zeros((B, H), jnp.float32)
    outs = []
    for i in range(S):
        xt = x[:, i, :]
        gx = xt @ wx + bx
        gh = h @ whrz + bhrz
        r = jax.nn.sigmoid(gx[:, :H] + gh[:, :H])
        z = jax.nn.sigmoid(gx[:, H:2 * H] + gh[:, H:])
        h_t = jnp.tanh(gx[:, 2 * H:] + (r * h) @ whh + bhh)
        h = z * h + (1 - z) * h_t
        outs.append(h @ wo + bo)
    return jnp.stack(outs, axis=1)  # (B, S, Out)


if __name__ == "__main__":
    batch, seq_len = 2, 8
    in_feature, hidden_size, out_feature = 16, 32, 10

    key = jax.random.PRNGKey(0)
    k_x, k_p = jax.random.split(key)
    x = jax.random.normal(k_x, (batch, seq_len, in_feature), jnp.float32)
    params = _init_params(k_p, in_feature, hidden_size, out_feature)

    out = my_gru_pallas(x, params)
    out = jax.block_until_ready(out)

    ref = _reference(x, params)
    assert out.shape == (batch, seq_len, out_feature)
    assert jnp.allclose(out, ref, rtol=1e-4, atol=1e-4), "mismatch vs reference"

    print("KERNEL_OK")
</pallas_src>

<mosaic_0001>
module attributes {stable_mosaic.version = 11 : i64} {
  func.func @_gru_kernel(%arg0: memref<8x8x16xf32, #tpu.memory_space<vmem>>, %arg1: memref<8x32xf32, #tpu.memory_space<vmem>>, %arg2: memref<16x96xf32, #tpu.memory_space<vmem>>, %arg3: memref<1x96xf32, #tpu.memory_space<vmem>>, %arg4: memref<32x64xf32, #tpu.memory_space<vmem>>, %arg5: memref<1x64xf32, #tpu.memory_space<vmem>>, %arg6: memref<32x32xf32, #tpu.memory_space<vmem>>, %arg7: memref<1x32xf32, #tpu.memory_space<vmem>>, %arg8: memref<32x10xf32, #tpu.memory_space<vmem>>, %arg9: memref<1x10xf32, #tpu.memory_space<vmem>>, %arg10: memref<8x8x10xf32, #tpu.memory_space<vmem>>) attributes {dimension_semantics = [], scalar_prefetch = 0 : i64, scratch_operands = 0 : i64, tpu.core_type = #tpu.core_type<tc>} {
    "tpu.region"() ({
      %alloca = memref.alloca() : memref<8x8x96xf32, #tpu.memory_space<vmem>>
      %alloca_0 = memref.alloca() : memref<8x8x32xf32, #tpu.memory_space<vmem>>
      %c0 = arith.constant 0 : index
      %c0_1 = arith.constant 0 : index
      %c0_2 = arith.constant 0 : index
      %0 = vector.load %arg0[%c0, %c0_1, %c0_2] : memref<8x8x16xf32, #tpu.memory_space<vmem>>, vector<8x8x16xf32>
      %1 = vector.shape_cast %0 : vector<8x8x16xf32> to vector<64x16xf32>
      %c0_3 = arith.constant 0 : index
      %c0_4 = arith.constant 0 : index
      %2 = vector.load %arg2[%c0_3, %c0_4] : memref<16x96xf32, #tpu.memory_space<vmem>>, vector<16x96xf32>
      %cst = arith.constant dense<0.000000e+00> : vector<64x96xf32>
      %3 = tpu.matmul %1, %2, %cst {dimension_numbers = #tpu.dot_dimension_numbers<[1], [0], [0], [1], [0, 0, 1, 1], [], []>} : vector<64x16xf32>, vector<16x96xf32>, vector<64x96xf32> -> vector<64x96xf32>
      %c0_5 = arith.constant 0 : index
      %c0_6 = arith.constant 0 : index
      %4 = vector.load %arg3[%c0_5, %c0_6] : memref<1x96xf32, #tpu.memory_space<vmem>>, vector<1x96xf32>
      %5 = vector.broadcast %4 : vector<1x96xf32> to vector<64x96xf32>
      %6 = arith.addf %3, %5 : vector<64x96xf32>
      %7 = vector.shape_cast %6 : vector<64x96xf32> to vector<8x8x96xf32>
      %8 = vector.extract_strided_slice %7 {offsets = [0, 0, 0], sizes = [8, 1, 96], strides = [1, 1, 1]} : vector<8x8x96xf32> to vector<8x1x96xf32>
      %9 = vector.shape_cast %8 : vector<8x1x96xf32> to vector<8x96xf32>
      %c0_7 = arith.constant 0 : index
      %c0_8 = arith.constant 0 : index
      %c0_9 = arith.constant 0 : index
      %10 = vector.load %alloca[%c0_7, %c0_8, %c0_9] : memref<8x8x96xf32, #tpu.memory_space<vmem>>, vector<1x8x96xf32>
      %11 = vector.shape_cast %10 : vector<1x8x96xf32> to vector<8x96xf32>
      %12 = vector.shape_cast %9 : vector<8x96xf32> to vector<1x8x96xf32>
      tpu.vector_store %alloca[%c0_7, %c0_8, %c0_9], %12 {strides = array<i32>} : memref<8x8x96xf32, #tpu.memory_space<vmem>>, vector<1x8x96xf32>,
      %13 = vector.extract_strided_slice %7 {offsets = [0, 1, 0], sizes = [8, 1, 96], strides = [1, 1, 1]} : vector<8x8x96xf32> to vector<8x1x96xf32>
      %14 = vector.shape_cast %13 : vector<8x1x96xf32> to vector<8x96xf32>
      %c1 = arith.constant 1 : index
      %c0_10 = arith.constant 0 : index
      %c0_11 = arith.constant 0 : index
      %15 = vector.load %alloca[%c1, %c0_10, %c0_11] : memref<8x8x96xf32, #tpu.memory_space<vmem>>, vector<1x8x96xf32>
      %16 = vector.shape_cast %15 : vector<1x8x96xf32> to vector<8x96xf32>
      %17 = vector.shape_cast %14 : vector<8x96xf32> to vector<1x8x96xf32>
      tpu.vector_store %alloca[%c1, %c0_10, %c0_11], %17 {strides = array<i32>} : memref<8x8x96xf32, #tpu.memory_space<vmem>>, vector<1x8x96xf32>,
      %18 = vector.extract_strided_slice %7 {offsets = [0, 2, 0], sizes = [8, 1, 96], strides = [1, 1, 1]} : vector<8x8x96xf32> to vector<8x1x96xf32>
      %19 = vector.shape_cast %18 : vector<8x1x96xf32> to vector<8x96xf32>
      %c2 = arith.constant 2 : index
      %c0_12 = arith.constant 0 : index
      %c0_13 = arith.constant 0 : index
      %20 = vector.load %alloca[%c2, %c0_12, %c0_13] : memref<8x8x96xf32, #tpu.memory_space<vmem>>, vector<1x8x96xf32>
      %21 = vector.shape_cast %20 : vector<1x8x96xf32> to vector<8x96xf32>
      %22 = vector.shape_cast %19 : vector<8x96xf32> to vector<1x8x96xf32>
      tpu.vector_store %alloca[%c2, %c0_12, %c0_13], %22 {strides = array<i32>} : memref<8x8x96xf32, #tpu.memory_space<vmem>>, vector<1x8x96xf32>,
      %23 = vector.extract_strided_slice %7 {offsets = [0, 3, 0], sizes = [8, 1, 96], strides = [1, 1, 1]} : vector<8x8x96xf32> to vector<8x1x96xf32>
      %24 = vector.shape_cast %23 : vector<8x1x96xf32> to vector<8x96xf32>
      %c3 = arith.constant 3 : index
      %c0_14 = arith.constant 0 : index
      %c0_15 = arith.constant 0 : index
      %25 = vector.load %alloca[%c3, %c0_14, %c0_15] : memref<8x8x96xf32, #tpu.memory_space<vmem>>, vector<1x8x96xf32>
      %26 = vector.shape_cast %25 : vector<1x8x96xf32> to vector<8x96xf32>
      %27 = vector.shape_cast %24 : vector<8x96xf32> to vector<1x8x96xf32>
      tpu.vector_store %alloca[%c3, %c0_14, %c0_15], %27 {strides = array<i32>} : memref<8x8x96xf32, #tpu.memory_space<vmem>>, vector<1x8x96xf32>,
      %28 = vector.extract_strided_slice %7 {offsets = [0, 4, 0], sizes = [8, 1, 96], strides = [1, 1, 1]} : vector<8x8x96xf32> to vector<8x1x96xf32>
      %29 = vector.shape_cast %28 : vector<8x1x96xf32> to vector<8x96xf32>
      %c4 = arith.constant 4 : index
      %c0_16 = arith.constant 0 : index
      %c0_17 = arith.constant 0 : index
      %30 = vector.load %alloca[%c4, %c0_16, %c0_17] : memref<8x8x96xf32, #tpu.memory_space<vmem>>, vector<1x8x96xf32>
      %31 = vector.shape_cast %30 : vector<1x8x96xf32> to vector<8x96xf32>
      %32 = vector.shape_cast %29 : vector<8x96xf32> to vector<1x8x96xf32>
      tpu.vector_store %alloca[%c4, %c0_16, %c0_17], %32 {strides = array<i32>} : memref<8x8x96xf32, #tpu.memory_space<vmem>>, vector<1x8x96xf32>,
      %33 = vector.extract_strided_slice %7 {offsets = [0, 5, 0], sizes = [8, 1, 96], strides = [1, 1, 1]} : vector<8x8x96xf32> to vector<8x1x96xf32>
      %34 = vector.shape_cast %33 : vector<8x1x96xf32> to vector<8x96xf32>
      %c5 = arith.constant 5 : index
      %c0_18 = arith.constant 0 : index
      %c0_19 = arith.constant 0 : index
      %35 = vector.load %alloca[%c5, %c0_18, %c0_19] : memref<8x8x96xf32, #tpu.memory_space<vmem>>, vector<1x8x96xf32>
      %36 = vector.shape_cast %35 : vector<1x8x96xf32> to vector<8x96xf32>
      %37 = vector.shape_cast %34 : vector<8x96xf32> to vector<1x8x96xf32>
      tpu.vector_store %alloca[%c5, %c0_18, %c0_19], %37 {strides = array<i32>} : memref<8x8x96xf32, #tpu.memory_space<vmem>>, vector<1x8x96xf32>,
      %38 = vector.extract_strided_slice %7 {offsets = [0, 6, 0], sizes = [8, 1, 96], strides = [1, 1, 1]} : vector<8x8x96xf32> to vector<8x1x96xf32>
      %39 = vector.shape_cast %38 : vector<8x1x96xf32> to vector<8x96xf32>
      %c6 = arith.constant 6 : index
      %c0_20 = arith.constant 0 : index
      %c0_21 = arith.constant 0 : index
      %40 = vector.load %alloca[%c6, %c0_20, %c0_21] : memref<8x8x96xf32, #tpu.memory_space<vmem>>, vector<1x8x96xf32>
      %41 = vector.shape_cast %40 : vector<1x8x96xf32> to vector<8x96xf32>
      %42 = vector.shape_cast %39 : vector<8x96xf32> to vector<1x8x96xf32>
      tpu.vector_store %alloca[%c6, %c0_20, %c0_21], %42 {strides = array<i32>} : memref<8x8x96xf32, #tpu.memory_space<vmem>>, vector<1x8x96xf32>,
      %43 = vector.extract_strided_slice %7 {offsets = [0, 7, 0], sizes = [8, 1, 96], strides = [1, 1, 1]} : vector<8x8x96xf32> to vector<8x1x96xf32>
      %44 = vector.shape_cast %43 : vector<8x1x96xf32> to vector<8x96xf32>
      %c7 = arith.constant 7 : index
      %c0_22 = arith.constant 0 : index
      %c0_23 = arith.constant 0 : index
      %45 = vector.load %alloca[%c7, %c0_22, %c0_23] : memref<8x8x96xf32, #tpu.memory_space<vmem>>, vector<1x8x96xf32>
      %46 = vector.shape_cast %45 : vector<1x8x96xf32> to vector<8x96xf32>
      %47 = vector.shape_cast %44 : vector<8x96xf32> to vector<1x8x96xf32>
      tpu.vector_store %alloca[%c7, %c0_22, %c0_23], %47 {strides = array<i32>} : memref<8x8x96xf32, #tpu.memory_space<vmem>>, vector<1x8x96xf32>,
      %c0_24 = arith.constant 0 : index
      %c0_25 = arith.constant 0 : index
      %48 = vector.load %arg1[%c0_24, %c0_25] : memref<8x32xf32, #tpu.memory_space<vmem>>, vector<8x32xf32>
      %c0_i32 = arith.constant 0 : i32
      %49 = arith.index_cast %c0_i32 : i32 to index
      %c0_26 = arith.constant 0 : index
      %c0_27 = arith.constant 0 : index
      %50 = vector.load %alloca[%49, %c0_26, %c0_27] : memref<8x8x96xf32, #tpu.memory_space<vmem>>, vector<1x8x96xf32>
      %51 = vector.shape_cast %50 : vector<1x8x96xf32> to vector<8x96xf32>
      %c0_28 = arith.constant 0 : index
      %c0_29 = arith.constant 0 : index
      %52 = vector.load %arg4[%c0_28, %c0_29] : memref<32x64xf32, #tpu.memory_space<vmem>>, vector<32x64xf32>
      %cst_30 = arith.constant dense<0.000000e+00> : vector<8x64xf32>
      %53 = tpu.matmul %48, %52, %cst_30 {dimension_numbers = #tpu.dot_dimension_numbers<[1], [0], [0], [1], [0, 0, 1, 1], [], []>} : vector<8x32xf32>, vector<32x64xf32>, vector<8x64xf32> -> vector<8x64xf32>
      %c0_31 = arith.constant 0 : index
      %c0_32 = arith.constant 0 : index
      %54 = vector.load %arg5[%c0_31, %c0_32] : memref<1x64xf32, #tpu.memory_space<vmem>>, vector<1x64xf32>
      %55 = vector.broadcast %54 : vector<1x64xf32> to vector<8x64xf32>
      %56 = arith.addf %53, %55 : vector<8x64xf32>
      %57 = vector.extract_strided_slice %51 {offsets = [0, 0], sizes = [8, 32], strides = [1, 1]} : vector<8x96xf32> to vector<8x32xf32>
      %58 = vector.extract_strided_slice %56 {offsets = [0, 0], sizes = [8, 32], strides = [1, 1]} : vector<8x64xf32> to vector<8x32xf32>
      %59 = arith.addf %57, %58 : vector<8x32xf32>
      %60 = arith.negf %59 : vector<8x32xf32>
      %61 = math.exp %60 : vector<8x32xf32>
      %cst_33 = arith.constant 1.000000e+00 : f32
      %62 = vector.broadcast %cst_33 : f32 to vector<8x32xf32>
      %63 = arith.addf %62, %61 : vector<8x32xf32>
      %64 = arith.divf %62, %63 : vector<8x32xf32>
      %65 = vector.extract_strided_slice %51 {offsets = [0, 32], sizes = [8, 32], strides = [1, 1]} : vector<8x96xf32> to vector<8x32xf32>
      %66 = vector.extract_strided_slice %56 {offsets = [0, 32], sizes = [8, 32], strides = [1, 1]} : vector<8x64xf32> to vector<8x32xf32>
      %67 = arith.addf %65, %66 : vector<8x32xf32>
      %68 = arith.negf %67 : vector<8x32xf32>
      %69 = math.exp %68 : vector<8x32xf32>
      %cst_34 = arith.constant 1.000000e+00 : f32
      %70 = vector.broadcast %cst_34 : f32 to vector<8x32xf32>
      %71 = arith.addf %70, %69 : vector<8x32xf32>
      %72 = arith.divf %70, %71 : vector<8x32xf32>
      %73 = arith.mulf %64, %48 : vector<8x32xf32>
      %c0_35 = arith.constant 0 : index
      %c0_36 = arith.constant 0 : index
      %74 = vector.load %arg6[%c0_35, %c0_36] : memref<32x32xf32, #tpu.memory_space<vmem>>, vector<32x32xf32>
      %cst_37 = arith.constant dense<0.000000e+00> : vector<8x32xf32>
      %75 = tpu.matmul %73, %74, %cst_37 {dimension_numbers = #tpu.dot_dimension_numbers<[1], [0], [0], [1], [0, 0, 1, 1], [], []>} : vector<8x32xf32>, vector<32x32xf32>, vector<8x32xf32> -> vector<8x32xf32>
      %c0_38 = arith.constant 0 : index
      %c0_39 = arith.constant 0 : index
      %76 = vector.load %arg7[%c0_38, %c0_39] : memref<1x32xf32, #tpu.memory_space<vmem>>, vector<1x32xf32>
      %77 = vector.broadcast %76 : vector<1x32xf32> to vector<8x32xf32>
      %78 = arith.addf %75, %77 : vector<8x32xf32>
      %79 = vector.extract_strided_slice %51 {offsets = [0, 64], sizes = [8, 32], strides = [1, 1]} : vector<8x96xf32> to vector<8x32xf32>
      %80 = arith.addf %79, %78 : vector<8x32xf32>
      %81 = math.tanh %80 : vector<8x32xf32>
      %82 = arith.mulf %72, %48 : vector<8x32xf32>
      %cst_40 = arith.constant 1.000000e+00 : f32
      %83 = vector.broadcast %cst_40 : f32 to vector<8x32xf32>
      %84 = arith.subf %83, %72 : vector<8x32xf32>
      %85 = arith.mulf %84, %81 : vector<8x32xf32>
      %86 = arith.addf %82, %85 : vector<8x32xf32>
      %87 = arith.index_cast %c0_i32 : i32 to index
      %c0_41 = arith.constant 0 : index
      %c0_42 = arith.constant 0 : index
      %88 = vector.load %alloca_0[%87, %c0_41, %c0_42] : memref<8x8x32xf32, #tpu.memory_space<vmem>>, vector<1x8x32xf32>
      %89 = vector.shape_cast %88 : vector<1x8x32xf32> to vector<8x32xf32>
      %90 = vector.shape_cast %86 : vector<8x32xf32> to vector<1x8x32xf32>
      tpu.vector_store %alloca_0[%87, %c0_41, %c0_42], %90 {strides = array<i32>} : memref<8x8x32xf32, #tpu.memory_space<vmem>>, vector<1x8x32xf32>,
      %c1_i32 = arith.constant 1 : i32
      %91 = arith.index_cast %c1_i32 : i32 to index
      %c0_43 = arith.constant 0 : index
      %c0_44 = arith.constant 0 : index
      %92 = vector.load %alloca[%91, %c0_43, %c0_44] : memref<8x8x96xf32, #tpu.memory_space<vmem>>, vector<1x8x96xf32>
      %93 = vector.shape_cast %92 : vector<1x8x96xf32> to vector<8x96xf32>
      %c0_45 = arith.constant 0 : index
      %c0_46 = arith.constant 0 : index
      %94 = vector.load %arg4[%c0_45, %c0_46] : memref<32x64xf32, #tpu.memory_space<vmem>>, vector<32x64xf32>
      %cst_47 = arith.constant dense<0.000000e+00> : vector<8x64xf32>
      %95 = tpu.matmul %86, %94, %cst_47 {dimension_numbers = #tpu.dot_dimension_numbers<[1], [0], [0], [1], [0, 0, 1, 1], [], []>} : vector<8x32xf32>, vector<32x64xf32>, vector<8x64xf32> -> vector<8x64xf32>
      %c0_48 = arith.constant 0 : index
      %c0_49 = arith.constant 0 : index
      %96 = vector.load %arg5[%c0_48, %c0_49] : memref<1x64xf32, #tpu.memory_space<vmem>>, vector<1x64xf32>
      %97 = vector.broadcast %96 : vector<1x64xf32> to vector<8x64xf32>
      %98 = arith.addf %95, %97 : vector<8x64xf32>
      %99 = vector.extract_strided_slice %93 {offsets = [0, 0], sizes = [8, 32], strides = [1, 1]} : vector<8x96xf32> to vector<8x32xf32>
      %100 = vector.extract_strided_slice %98 {offsets = [0, 0], sizes = [8, 32], strides = [1, 1]} : vector<8x64xf32> to vector<8x32xf32>
      %101 = arith.addf %99, %100 : vector<8x32xf32>
      %102 = arith.negf %101 : vector<8x32xf32>
      %103 = math.exp %102 : vector<8x32xf32>
      %cst_50 = arith.constant 1.000000e+00 : f32
      %104 = vector.broadcast %cst_50 : f32 to vector<8x32xf32>
      %105 = arith.addf %104, %103 : vector<8x32xf32>
      %106 = arith.divf %104, %105 : vector<8x32xf32>
      %107 = vector.extract_strided_slice %93 {offsets = [0, 32], sizes = [8, 32], strides = [1, 1]} : vector<8x96xf32> to vector<8x32xf32>
      %108 = vector.extract_strided_slice %98 {offsets = [0, 32], sizes = [8, 32], strides = [1, 1]} : vector<8x64xf32> to vector<8x32xf32>
      %109 = arith.addf %107, %108 : vector<8x32xf32>
      %110 = arith.negf %109 : vector<8x32xf32>
      %111 = math.exp %110 : vector<8x32xf32>
      %cst_51 = arith.constant 1.000000e+00 : f32
      %112 = vector.broadcast %cst_51 : f32 to vector<8x32xf32>
      %113 = arith.addf %112, %111 : vector<8x32xf32>
      %114 = arith.divf %112, %113 : vector<8x32xf32>
      %115 = arith.mulf %106, %86 : vector<8x32xf32>
      %c0_52 = arith.constant 0 : index
      %c0_53 = arith.constant 0 : index
      %116 = vector.load %arg6[%c0_52, %c0_53] : memref<32x32xf32, #tpu.memory_space<vmem>>, vector<32x32xf32>
      %cst_54 = arith.constant dense<0.000000e+00> : vector<8x32xf32>
      %117 = tpu.matmul %115, %116, %cst_54 {dimension_numbers = #tpu.dot_dimension_numbers<[1], [0], [0], [1], [0, 0, 1, 1], [], []>} : vector<8x32xf32>, vector<32x32xf32>, vector<8x32xf32> -> vector<8x32xf32>
      %c0_55 = arith.constant 0 : index
      %c0_56 = arith.constant 0 : index
      %118 = vector.load %arg7[%c0_55, %c0_56] : memref<1x32xf32, #tpu.memory_space<vmem>>, vector<1x32xf32>
      %119 = vector.broadcast %118 : vector<1x32xf32> to vector<8x32xf32>
      %120 = arith.addf %117, %119 : vector<8x32xf32>
      %121 = vector.extract_strided_slice %93 {offsets = [0, 64], sizes = [8, 32], strides = [1, 1]} : vector<8x96xf32> to vector<8x32xf32>
      %122 = arith.addf %121, %120 : vector<8x32xf32>
      %123 = math.tanh %122 : vector<8x32xf32>
      %124 = arith.mulf %114, %86 : vector<8x32xf32>
      %cst_57 = arith.constant 1.000000e+00 : f32
      %125 = vector.broadcast %cst_57 : f32 to vector<8x32xf32>
      %126 = arith.subf %125, %114 : vector<8x32xf32>
      %127 = arith.mulf %126, %123 : vector<8x32xf32>
      %128 = arith.addf %124, %127 : vector<8x32xf32>
      %129 = arith.index_cast %c1_i32 : i32 to index
      %c0_58 = arith.constant 0 : index
      %c0_59 = arith.constant 0 : index
      %130 = vector.load %alloca_0[%129, %c0_58, %c0_59] : memref<8x8x32xf32, #tpu.memory_space<vmem>>, vector<1x8x32xf32>
      %131 = vector.shape_cast %130 : vector<1x8x32xf32> to vector<8x32xf32>
      %132 = vector.shape_cast %128 : vector<8x32xf32> to vector<1x8x32xf32>
      tpu.vector_store %alloca_0[%129, %c0_58, %c0_59], %132 {strides = array<i32>} : memref<8x8x32xf32, #tpu.memory_space<vmem>>, vector<1x8x32xf32>,
      %c2_i32 = arith.constant 2 : i32
      %133 = arith.index_cast %c2_i32 : i32 to index
      %c0_60 = arith.constant 0 : index
      %c0_61 = arith.constant 0 : index
      %134 = vector.load %alloca[%133, %c0_60, %c0_61] : memref<8x8x96xf32, #tpu.memory_space<vmem>>, vector<1x8x96xf32>
      %135 = vector.shape_cast %134 : vector<1x8x96xf32> to vector<8x96xf32>
      %c0_62 = arith.constant 0 : index
      %c0_63 = arith.constant 0 : index
      %136 = vector.load %arg4[%c0_62, %c0_63] : memref<32x64xf32, #tpu.memory_space<vmem>>, vector<32x64xf32>
      %cst_64 = arith.constant dense<0.000000e+00> : vector<8x64xf32>
      %137 = tpu.matmul %128, %136, %cst_64 {dimension_numbers = #tpu.dot_dimension_numbers<[1], [0], [0], [1], [0, 0, 1, 1], [], []>} : vector<8x32xf32>, vector<32x64xf32>, vector<8x64xf32> -> vector<8x64xf32>
      %c0_65 = arith.constant 0 : index
      %c0_66 = arith.constant 0 : index
      %138 = vector.load %arg5[%c0_65, %c0_66] : memref<1x64xf32, #tpu.memory_space<vmem>>, vector<1x64xf32>
      %139 = vector.broadcast %138 : vector<1x64xf32> to vector<8x64xf32>
      %140 = arith.addf %137, %139 : vector<8x64xf32>
      %141 = vector.extract_strided_slice %135 {offsets = [0, 0], sizes = [8, 32], strides = [1, 1]} : vector<8x96xf32> to vector<8x32xf32>
      %142 = vector.extract_strided_slice %140 {offsets = [0, 0], sizes = [8, 32], strides = [1, 1]} : vector<8x64xf32> to vector<8x32xf32>
      %143 = arith.addf %141, %142 : vector<8x32xf32>
      %144 = arith.negf %143 : vector<8x32xf32>
      %145 = math.exp %144 : vector<8x32xf32>
      %cst_67 = arith.constant 1.000000e+00 : f32
      %146 = vector.broadcast %cst_67 : f32 to vector<8x32xf32>
      %147 = arith.addf %146, %145 : vector<8x32xf32>
      %148 = arith.divf %146, %147 : vector<8x32xf32>
      %149 = vector.extract_strided_slice %135 {offsets = [0, 32], sizes = [8, 32], strides = [1, 1]} : vector<8x96xf32> to vector<8x32xf32>
      %150 = vector.extract_strided_slice %140 {offsets = [0, 32], sizes = [8, 32], strides = [1, 1]} : vector<8x64xf32> to vector<8x32xf32>
      %151 = arith.addf %149, %150 : vector<8x32xf32>
      %152 = arith.negf %151 : vector<8x32xf32>
      %153 = math.exp %152 : vector<8x32xf32>
      %cst_68 = arith.constant 1.000000e+00 : f32
      %154 = vector.broadcast %cst_68 : f32 to vector<8x32xf32>
      %155 = arith.addf %154, %153 : vector<8x32xf32>
      %156 = arith.divf %154, %155 : vector<8x32xf32>
      %157 = arith.mulf %148, %128 : vector<8x32xf32>
      %c0_69 = arith.constant 0 : index
      %c0_70 = arith.constant 0 : index
      %158 = vector.load %arg6[%c0_69, %c0_70] : memref<32x32xf32, #tpu.memory_space<vmem>>, vector<32x32xf32>
      %cst_71 = arith.constant dense<0.000000e+00> : vector<8x32xf32>
      %159 = tpu.matmul %157, %158, %cst_71 {dimension_numbers = #tpu.dot_dimension_numbers<[1], [0], [0], [1], [0, 0, 1, 1], [], []>} : vector<8x32xf32>, vector<32x32xf32>, vector<8x32xf32> -> vector<8x32xf32>
      %c0_72 = arith.constant 0 : index
      %c0_73 = arith.constant 0 : index
      %160 = vector.load %arg7[%c0_72, %c0_73] : memref<1x32xf32, #tpu.memory_space<vmem>>, vector<1x32xf32>
      %161 = vector.broadcast %160 : vector<1x32xf32> to vector<8x32xf32>
      %162 = arith.addf %159, %161 : vector<8x32xf32>
      %163 = vector.extract_strided_slice %135 {offsets = [0, 64], sizes = [8, 32], strides = [1, 1]} : vector<8x96xf32> to vector<8x32xf32>
      %164 = arith.addf %163, %162 : vector<8x32xf32>
      %165 = math.tanh %164 : vector<8x32xf32>
      %166 = arith.mulf %156, %128 : vector<8x32xf32>
      %cst_74 = arith.constant 1.000000e+00 : f32
      %167 = vector.broadcast %cst_74 : f32 to vector<8x32xf32>
      %168 = arith.subf %167, %156 : vector<8x32xf32>
      %169 = arith.mulf %168, %165 : vector<8x32xf32>
      %170 = arith.addf %166, %169 : vector<8x32xf32>
      %171 = arith.index_cast %c2_i32 : i32 to index
      %c0_75 = arith.constant 0 : index
      %c0_76 = arith.constant 0 : index
      %172 = vector.load %alloca_0[%171, %c0_75, %c0_76] : memref<8x8x32xf32, #tpu.memory_space<vmem>>, vector<1x8x32xf32>
      %173 = vector.shape_cast %172 : vector<1x8x32xf32> to vector<8x32xf32>
      %174 = vector.shape_cast %170 : vector<8x32xf32> to vector<1x8x32xf32>
      tpu.vector_store %alloca_0[%171, %c0_75, %c0_76], %174 {strides = array<i32>} : memref<8x8x32xf32, #tpu.memory_space<vmem>>, vector<1x8x32xf32>,
      %c3_i32 = arith.constant 3 : i32
      %175 = arith.index_cast %c3_i32 : i32 to index
      %c0_77 = arith.constant 0 : index
      %c0_78 = arith.constant 0 : index
      %176 = vector.load %alloca[%175, %c0_77, %c0_78] : memref<8x8x96xf32, #tpu.memory_space<vmem>>, vector<1x8x96xf32>
      %177 = vector.shape_cast %176 : vector<1x8x96xf32> to vector<8x96xf32>
      %c0_79 = arith.constant 0 : index
      %c0_80 = arith.constant 0 : index
      %178 = vector.load %arg4[%c0_79, %c0_80] : memref<32x64xf32, #tpu.memory_space<vmem>>, vector<32x64xf32>
      %cst_81 = arith.constant dense<0.000000e+00> : vector<8x64xf32>
      %179 = tpu.matmul %170, %178, %cst_81 {dimension_numbers = #tpu.dot_dimension_numbers<[1], [0], [0], [1], [0, 0, 1, 1], [], []>} : vector<8x32xf32>, vector<32x64xf32>, vector<8x64xf32> -> vector<8x64xf32>
      %c0_82 = arith.constant 0 : index
      %c0_83 = arith.constant 0 : index
      %180 = vector.load %arg5[%c0_82, %c0_83] : memref<1x64xf32, #tpu.memory_space<vmem>>, vector<1x64xf32>
      %181 = vector.broadcast %180 : vector<1x64xf32> to vector<8x64xf32>
      %182 = arith.addf %179, %181 : vector<8x64xf32>
      %183 = vector.extract_strided_slice %177 {offsets = [0, 0], sizes = [8, 32], strides = [1, 1]} : vector<8x96xf32> to vector<8x32xf32>
      %184 = vector.extract_strided_slice %182 {offsets = [0, 0], sizes = [8, 32], strides = [1, 1]} : vector<8x64xf32> to vector<8x32xf32>
      %185 = arith.addf %183, %184 : vector<8x32xf32>
      %186 = arith.negf %185 : vector<8x32xf32>
      %187 = math.exp %186 : vector<8x32xf32>
      %cst_84 = arith.constant 1.000000e+00 : f32
      %188 = vector.broadcast %cst_84 : f32 to vector<8x32xf32>
      %189 = arith.addf %188, %187 : vector<8x32xf32>
      %190 = arith.divf %188, %189 : vector<8x32xf32>
      %191 = vector.extract_strided_slice %177 {offsets = [0, 32], sizes = [8, 32], strides = [1, 1]} : vector<8x96xf32> to vector<8x32xf32>
      %192 = vector.extract_strided_slice %182 {offsets = [0, 32], sizes = [8, 32], strides = [1, 1]} : vector<8x64xf32> to vector<8x32xf32>
      %193 = arith.addf %191, %192 : vector<8x32xf32>
      %194 = arith.negf %193 : vector<8x32xf32>
      %195 = math.exp %194 : vector<8x32xf32>
      %cst_85 = arith.constant 1.000000e+00 : f32
      %196 = vector.broadcast %cst_85 : f32 to vector<8x32xf32>
      %197 = arith.addf %196, %195 : vector<8x32xf32>
      %198 = arith.divf %196, %197 : vector<8x32xf32>
      %199 = arith.mulf %190, %170 : vector<8x32xf32>
      %c0_86 = arith.constant 0 : index
      %c0_87 = arith.constant 0 : index
      %200 = vector.load %arg6[%c0_86, %c0_87] : memref<32x32xf32, #tpu.memory_space<vmem>>, vector<32x32xf32>
      %cst_88 = arith.constant dense<0.000000e+00> : vector<8x32xf32>
      %201 = tpu.matmul %199, %200, %cst_88 {dimension_numbers = #tpu.dot_dimension_numbers<[1], [0], [0], [1], [0, 0, 1, 1], [], []>} : vector<8x32xf32>, vector<32x32xf32>, vector<8x32xf32> -> vector<8x32xf32>
      %c0_89 = arith.constant 0 : index
      %c0_90 = arith.constant 0 : index
      %202 = vector.load %arg7[%c0_89, %c0_90] : memref<1x32xf32, #tpu.memory_space<vmem>>, vector<1x32xf32>
      %203 = vector.broadcast %202 : vector<1x32xf32> to vector<8x32xf32>
      %204 = arith.addf %201, %203 : vector<8x32xf32>
      %205 = vector.extract_strided_slice %177 {offsets = [0, 64], sizes = [8, 32], strides = [1, 1]} : vector<8x96xf32> to vector<8x32xf32>
      %206 = arith.addf %205, %204 : vector<8x32xf32>
      %207 = math.tanh %206 : vector<8x32xf32>
      %208 = arith.mulf %198, %170 : vector<8x32xf32>
      %cst_91 = arith.constant 1.000000e+00 : f32
      %209 = vector.broadcast %cst_91 : f32 to vector<8x32xf32>
      %210 = arith.subf %209, %198 : vector<8x32xf32>
      %211 = arith.mulf %210, %207 : vector<8x32xf32>
      %212 = arith.addf %208, %211 : vector<8x32xf32>
      %213 = arith.index_cast %c3_i32 : i32 to index
      %c0_92 = arith.constant 0 : index
      %c0_93 = arith.constant 0 : index
      %214 = vector.load %alloca_0[%213, %c0_92, %c0_93] : memref<8x8x32xf32, #tpu.memory_space<vmem>>, vector<1x8x32xf32>
      %215 = vector.shape_cast %214 : vector<1x8x32xf32> to vector<8x32xf32>
      %216 = vector.shape_cast %212 : vector<8x32xf32> to vector<1x8x32xf32>
      tpu.vector_store %alloca_0[%213, %c0_92, %c0_93], %216 {strides = array<i32>} : memref<8x8x32xf32, #tpu.memory_space<vmem>>, vector<1x8x32xf32>,
      %c4_i32 = arith.constant 4 : i32
      %217 = arith.index_cast %c4_i32 : i32 to index
      %c0_94 = arith.constant 0 : index
      %c0_95 = arith.constant 0 : index
      %218 = vector.load %alloca[%217, %c0_94, %c0_95] : memref<8x8x96xf32, #tpu.memory_space<vmem>>, vector<1x8x96xf32>
      %219 = vector.shape_cast %218 : vector<1x8x96xf32> to vector<8x96xf32>
      %c0_96 = arith.constant 0 : index
      %c0_97 = arith.constant 0 : index
      %220 = vector.load %arg4[%c0_96, %c0_97] : memref<32x64xf32, #tpu.memory_space<vmem>>, vector<32x64xf32>
      %cst_98 = arith.constant dense<0.000000e+00> : vector<8x64xf32>
      %221 = tpu.matmul %212, %220, %cst_98 {dimension_numbers = #tpu.dot_dimension_numbers<[1], [0], [0], [1], [0, 0, 1, 1], [], []>} : vector<8x32xf32>, vector<32x64xf32>, vector<8x64xf32> -> vector<8x64xf32>
      %c0_99 = arith.constant 0 : index
      %c0_100 = arith.constant 0 : index
      %222 = vector.load %arg5[%c0_99, %c0_100] : memref<1x64xf32, #tpu.memory_space<vmem>>, vector<1x64xf32>
      %223 = vector.broadcast %222 : vector<1x64xf32> to vector<8x64xf32>
      %224 = arith.addf %221, %223 : vector<8x64xf32>
      %225 = vector.extract_strided_slice %219 {offsets = [0, 0], sizes = [8, 32], strides = [1, 1]} : vector<8x96xf32> to vector<8x32xf32>
      %226 = vector.extract_strided_slice %224 {offsets = [0, 0], sizes = [8, 32], strides = [1, 1]} : vector<8x64xf32> to vector<8x32xf32>
      %227 = arith.addf %225, %226 : vector<8x32xf32>
      %228 = arith.negf %227 : vector<8x32xf32>
      %229 = math.exp %228 : vector<8x32xf32>
      %cst_101 = arith.constant 1.000000e+00 : f32
      %230 = vector.broadcast %cst_101 : f32 to vector<8x32xf32>
      %231 = arith.addf %230, %229 : vector<8x32xf32>
      %232 = arith.divf %230, %231 : vector<8x32xf32>
      %233 = vector.extract_strided_slice %219 {offsets = [0, 32], sizes = [8, 32], strides = [1, 1]} : vector<8x96xf32> to vector<8x32xf32>
      %234 = vector.extract_strided_slice %224 {offsets = [0, 32], sizes = [8, 32], strides = [1, 1]} : vector<8x64xf32> to vector<8x32xf32>
      %235 = arith.addf %233, %234 : vector<8x32xf32>
      %236 = arith.negf %235 : vector<8x32xf32>
      %237 = math.exp %236 : vector<8x32xf32>
      %cst_102 = arith.constant 1.000000e+00 : f32
      %238 = vector.broadcast %cst_102 : f32 to vector<8x32xf32>
      %239 = arith.addf %238, %237 : vector<8x32xf32>
      %240 = arith.divf %238, %239 : vector<8x32xf32>
      %241 = arith.mulf %232, %212 : vector<8x32xf32>
      %c0_103 = arith.constant 0 : index
      %c0_104 = arith.constant 0 : index
      %242 = vector.load %arg6[%c0_103, %c0_104] : memref<32x32xf32, #tpu.memory_space<vmem>>, vector<32x32xf32>
      %cst_105 = arith.constant dense<0.000000e+00> : vector<8x32xf32>
      %243 = tpu.matmul %241, %242, %cst_105 {dimension_numbers = #tpu.dot_dimension_numbers<[1], [0], [0], [1], [0, 0, 1, 1], [], []>} : vector<8x32xf32>, vector<32x32xf32>, vector<8x32xf32> -> vector<8x32xf32>
      %c0_106 = arith.constant 0 : index
      %c0_107 = arith.constant 0 : index
      %244 = vector.load %arg7[%c0_106, %c0_107] : memref<1x32xf32, #tpu.memory_space<vmem>>, vector<1x32xf32>
      %245 = vector.broadcast %244 : vector<1x32xf32> to vector<8x32xf32>
      %246 = arith.addf %243, %245 : vector<8x32xf32>
      %247 = vector.extract_strided_slice %219 {offsets = [0, 64], sizes = [8, 32], strides = [1, 1]} : vector<8x96xf32> to vector<8x32xf32>
      %248 = arith.addf %247, %246 : vector<8x32xf32>
      %249 = math.tanh %248 : vector<8x32xf32>
      %250 = arith.mulf %240, %212 : vector<8x32xf32>
      %cst_108 = arith.constant 1.000000e+00 : f32
      %251 = vector.broadcast %cst_108 : f32 to vector<8x32xf32>
      %252 = arith.subf %251, %240 : vector<8x32xf32>
      %253 = arith.mulf %252, %249 : vector<8x32xf32>
      %254 = arith.addf %250, %253 : vector<8x32xf32>
      %255 = arith.index_cast %c4_i32 : i32 to index
      %c0_109 = arith.constant 0 : index
      %c0_110 = arith.constant 0 : index
      %256 = vector.load %alloca_0[%255, %c0_109, %c0_110] : memref<8x8x32xf32, #tpu.memory_space<vmem>>, vector<1x8x32xf32>
      %257 = vector.shape_cast %256 : vector<1x8x32xf32> to vector<8x32xf32>
      %258 = vector.shape_cast %254 : vector<8x32xf32> to vector<1x8x32xf32>
      tpu.vector_store %alloca_0[%255, %c0_109, %c0_110], %258 {strides = array<i32>} : memref<8x8x32xf32, #tpu.memory_space<vmem>>, vector<1x8x32xf32>,
      %c5_i32 = arith.constant 5 : i32
      %259 = arith.index_cast %c5_i32 : i32 to index
      %c0_111 = arith.constant 0 : index
      %c0_112 = arith.constant 0 : index
      %260 = vector.load %alloca[%259, %c0_111, %c0_112] : memref<8x8x96xf32, #tpu.memory_space<vmem>>, vector<1x8x96xf32>
      %261 = vector.shape_cast %260 : vector<1x8x96xf32> to vector<8x96xf32>
      %c0_113 = arith.constant 0 : index
      %c0_114 = arith.constant 0 : index
      %262 = vector.load %arg4[%c0_113, %c0_114] : memref<32x64xf32, #tpu.memory_space<vmem>>, vector<32x64xf32>
      %cst_115 = arith.constant dense<0.000000e+00> : vector<8x64xf32>
      %263 = tpu.matmul %254, %262, %cst_115 {dimension_numbers = #tpu.dot_dimension_numbers<[1], [0], [0], [1], [0, 0, 1, 1], [], []>} : vector<8x32xf32>, vector<32x64xf32>, vector<8x64xf32> -> vector<8x64xf32>
      %c0_116 = arith.constant 0 : index
      %c0_117 = arith.constant 0 : index
      %264 = vector.load %arg5[%c0_116, %c0_117] : memref<1x64xf32, #tpu.memory_space<vmem>>, vector<1x64xf32>
      %265 = vector.broadcast %264 : vector<1x64xf32> to vector<8x64xf32>
      %266 = arith.addf %263, %265 : vector<8x64xf32>
      %267 = vector.extract_strided_slice %261 {offsets = [0, 0], sizes = [8, 32], strides = [1, 1]} : vector<8x96xf32> to vector<8x32xf32>
      %268 = vector.extract_strided_slice %266 {offsets = [0, 0], sizes = [8, 32], strides = [1, 1]} : vector<8x64xf32> to vector<8x32xf32>
      %269 = arith.addf %267, %268 : vector<8x32xf32>
      %270 = arith.negf %269 : vector<8x32xf32>
      %271 = math.exp %270 : vector<8x32xf32>
      %cst_118 = arith.constant 1.000000e+00 : f32
      %272 = vector.broadcast %cst_118 : f32 to vector<8x32xf32>
      %273 = arith.addf %272, %271 : vector<8x32xf32>
      %274 = arith.divf %272, %273 : vector<8x32xf32>
      %275 = vector.extract_strided_slice %261 {offsets = [0, 32], sizes = [8, 32], strides = [1, 1]} : vector<8x96xf32> to vector<8x32xf32>
      %276 = vector.extract_strided_slice %266 {offsets = [0, 32], sizes = [8, 32], strides = [1, 1]} : vector<8x64xf32> to vector<8x32xf32>
      %277 = arith.addf %275, %276 : vector<8x32xf32>
      %278 = arith.negf %277 : vector<8x32xf32>
      %279 = math.exp %278 : vector<8x32xf32>
      %cst_119 = arith.constant 1.000000e+00 : f32
      %280 = vector.broadcast %cst_119 : f32 to vector<8x32xf32>
      %281 = arith.addf %280, %279 : vector<8x32xf32>
      %282 = arith.divf %280, %281 : vector<8x32xf32>
      %283 = arith.mulf %274, %254 : vector<8x32xf32>
      %c0_120 = arith.constant 0 : index
      %c0_121 = arith.constant 0 : index
      %284 = vector.load %arg6[%c0_120, %c0_121] : memref<32x32xf32, #tpu.memory_space<vmem>>, vector<32x32xf32>
      %cst_122 = arith.constant dense<0.000000e+00> : vector<8x32xf32>
      %285 = tpu.matmul %283, %284, %cst_122 {dimension_numbers = #tpu.dot_dimension_numbers<[1], [0], [0], [1], [0, 0, 1, 1], [], []>} : vector<8x32xf32>, vector<32x32xf32>, vector<8x32xf32> -> vector<8x32xf32>
      %c0_123 = arith.constant 0 : index
      %c0_124 = arith.constant 0 : index
      %286 = vector.load %arg7[%c0_123, %c0_124] : memref<1x32xf32, #tpu.memory_space<vmem>>, vector<1x32xf32>
      %287 = vector.broadcast %286 : vector<1x32xf32> to vector<8x32xf32>
      %288 = arith.addf %285, %287 : vector<8x32xf32>
      %289 = vector.extract_strided_slice %261 {offsets = [0, 64], sizes = [8, 32], strides = [1, 1]} : vector<8x96xf32> to vector<8x32xf32>
      %290 = arith.addf %289, %288 : vector<8x32xf32>
      %291 = math.tanh %290 : vector<8x32xf32>
      %292 = arith.mulf %282, %254 : vector<8x32xf32>
      %cst_125 = arith.constant 1.000000e+00 : f32
      %293 = vector.broadcast %cst_125 : f32 to vector<8x32xf32>
      %294 = arith.subf %293, %282 : vector<8x32xf32>
      %295 = arith.mulf %294, %291 : vector<8x32xf32>
      %296 = arith.addf %292, %295 : vector<8x32xf32>
      %297 = arith.index_cast %c5_i32 : i32 to index
      %c0_126 = arith.constant 0 : index
      %c0_127 = arith.constant 0 : index
      %298 = vector.load %alloca_0[%297, %c0_126, %c0_127] : memref<8x8x32xf32, #tpu.memory_space<vmem>>, vector<1x8x32xf32>
      %299 = vector.shape_cast %298 : vector<1x8x32xf32> to vector<8x32xf32>
      %300 = vector.shape_cast %296 : vector<8x32xf32> to vector<1x8x32xf32>
      tpu.vector_store %alloca_0[%297, %c0_126, %c0_127], %300 {strides = array<i32>} : memref<8x8x32xf32, #tpu.memory_space<vmem>>, vector<1x8x32xf32>,
      %c6_i32 = arith.constant 6 : i32
      %301 = arith.index_cast %c6_i32 : i32 to index
      %c0_128 = arith.constant 0 : index
      %c0_129 = arith.constant 0 : index
      %302 = vector.load %alloca[%301, %c0_128, %c0_129] : memref<8x8x96xf32, #tpu.memory_space<vmem>>, vector<1x8x96xf32>
      %303 = vector.shape_cast %302 : vector<1x8x96xf32> to vector<8x96xf32>
      %c0_130 = arith.constant 0 : index
      %c0_131 = arith.constant 0 : index
      %304 = vector.load %arg4[%c0_130, %c0_131] : memref<32x64xf32, #tpu.memory_space<vmem>>, vector<32x64xf32>
      %cst_132 = arith.constant dense<0.000000e+00> : vector<8x64xf32>
      %305 = tpu.matmul %296, %304, %cst_132 {dimension_numbers = #tpu.dot_dimension_numbers<[1], [0], [0], [1], [0, 0, 1, 1], [], []>} : vector<8x32xf32>, vector<32x64xf32>, vector<8x64xf32> -> vector<8x64xf32>
      %c0_133 = arith.constant 0 : index
      %c0_134 = arith.constant 0 : index
      %306 = vector.load %arg5[%c0_133, %c0_134] : memref<1x64xf32, #tpu.memory_space<vmem>>, vector<1x64xf32>
      %307 = vector.broadcast %306 : vector<1x64xf32> to vector<8x64xf32>
      %308 = arith.addf %305, %307 : vector<8x64xf32>
      %309 = vector.extract_strided_slice %303 {offsets = [0, 0], sizes = [8, 32], strides = [1, 1]} : vector<8x96xf32> to vector<8x32xf32>
      %310 = vector.extract_strided_slice %308 {offsets = [0, 0], sizes = [8, 32], strides = [1, 1]} : vector<8x64xf32> to vector<8x32xf32>
      %311 = arith.addf %309, %310 : vector<8x32xf32>
      %312 = arith.negf %311 : vector<8x32xf32>
      %313 = math.exp %312 : vector<8x32xf32>
      %cst_135 = arith.constant 1.000000e+00 : f32
      %314 = vector.broadcast %cst_135 : f32 to vector<8x32xf32>
      %315 = arith.addf %314, %313 : vector<8x32xf32>
      %316 = arith.divf %314, %315 : vector<8x32xf32>
      %317 = vector.extract_strided_slice %303 {offsets = [0, 32], sizes = [8, 32], strides = [1, 1]} : vector<8x96xf32> to vector<8x32xf32>
      %318 = vector.extract_strided_slice %308 {offsets = [0, 32], sizes = [8, 32], strides = [1, 1]} : vector<8x64xf32> to vector<8x32xf32>
      %319 = arith.addf %317, %318 : vector<8x32xf32>
      %320 = arith.negf %319 : vector<8x32xf32>
      %321 = math.exp %320 : vector<8x32xf32>
      %cst_136 = arith.constant 1.000000e+00 : f32
      %322 = vector.broadcast %cst_136 : f32 to vector<8x32xf32>
      %323 = arith.addf %322, %321 : vector<8x32xf32>
      %324 = arith.divf %322, %323 : vector<8x32xf32>
      %325 = arith.mulf %316, %296 : vector<8x32xf32>
      %c0_137 = arith.constant 0 : index
      %c0_138 = arith.constant 0 : index
      %326 = vector.load %arg6[%c0_137, %c0_138] : memref<32x32xf32, #tpu.memory_space<vmem>>, vector<32x32xf32>
      %cst_139 = arith.constant dense<0.000000e+00> : vector<8x32xf32>
      %327 = tpu.matmul %325, %326, %cst_139 {dimension_numbers = #tpu.dot_dimension_numbers<[1], [0], [0], [1], [0, 0, 1, 1], [], []>} : vector<8x32xf32>, vector<32x32xf32>, vector<8x32xf32> -> vector<8x32xf32>
      %c0_140 = arith.constant 0 : index
      %c0_141 = arith.constant 0 : index
      %328 = vector.load %arg7[%c0_140, %c0_141] : memref<1x32xf32, #tpu.memory_space<vmem>>, vector<1x32xf32>
      %329 = vector.broadcast %328 : vector<1x32xf32> to vector<8x32xf32>
      %330 = arith.addf %327, %329 : vector<8x32xf32>
      %331 = vector.extract_strided_slice %303 {offsets = [0, 64], sizes = [8, 32], strides = [1, 1]} : vector<8x96xf32> to vector<8x32xf32>
      %332 = arith.addf %331, %330 : vector<8x32xf32>
      %333 = math.tanh %332 : vector<8x32xf32>
      %334 = arith.mulf %324, %296 : vector<8x32xf32>
      %cst_142 = arith.constant 1.000000e+00 : f32
      %335 = vector.broadcast %cst_142 : f32 to vector<8x32xf32>
      %336 = arith.subf %335, %324 : vector<8x32xf32>
      %337 = arith.mulf %336, %333 : vector<8x32xf32>
      %338 = arith.addf %334, %337 : vector<8x32xf32>
      %339 = arith.index_cast %c6_i32 : i32 to index
      %c0_143 = arith.constant 0 : index
      %c0_144 = arith.constant 0 : index
      %340 = vector.load %alloca_0[%339, %c0_143, %c0_144] : memref<8x8x32xf32, #tpu.memory_space<vmem>>, vector<1x8x32xf32>
      %341 = vector.shape_cast %340 : vector<1x8x32xf32> to vector<8x32xf32>
      %342 = vector.shape_cast %338 : vector<8x32xf32> to vector<1x8x32xf32>
      tpu.vector_store %alloca_0[%339, %c0_143, %c0_144], %342 {strides = array<i32>} : memref<8x8x32xf32, #tpu.memory_space<vmem>>, vector<1x8x32xf32>,
      %c7_i32 = arith.constant 7 : i32
      %343 = arith.index_cast %c7_i32 : i32 to index
      %c0_145 = arith.constant 0 : index
      %c0_146 = arith.constant 0 : index
      %344 = vector.load %alloca[%343, %c0_145, %c0_146] : memref<8x8x96xf32, #tpu.memory_space<vmem>>, vector<1x8x96xf32>
      %345 = vector.shape_cast %344 : vector<1x8x96xf32> to vector<8x96xf32>
      %c0_147 = arith.constant 0 : index
      %c0_148 = arith.constant 0 : index
      %346 = vector.load %arg4[%c0_147, %c0_148] : memref<32x64xf32, #tpu.memory_space<vmem>>, vector<32x64xf32>
      %cst_149 = arith.constant dense<0.000000e+00> : vector<8x64xf32>
      %347 = tpu.matmul %338, %346, %cst_149 {dimension_numbers = #tpu.dot_dimension_numbers<[1], [0], [0], [1], [0, 0, 1, 1], [], []>} : vector<8x32xf32>, vector<32x64xf32>, vector<8x64xf32> -> vector<8x64xf32>
      %c0_150 = arith.constant 0 : index
      %c0_151 = arith.constant 0 : index
      %348 = vector.load %arg5[%c0_150, %c0_151] : memref<1x64xf32, #tpu.memory_space<vmem>>, vector<1x64xf32>
      %349 = vector.broadcast %348 : vector<1x64xf32> to vector<8x64xf32>
      %350 = arith.addf %347, %349 : vector<8x64xf32>
      %351 = vector.extract_strided_slice %345 {offsets = [0, 0], sizes = [8, 32], strides = [1, 1]} : vector<8x96xf32> to vector<8x32xf32>
      %352 = vector.extract_strided_slice %350 {offsets = [0, 0], sizes = [8, 32], strides = [1, 1]} : vector<8x64xf32> to vector<8x32xf32>
      %353 = arith.addf %351, %352 : vector<8x32xf32>
      %354 = arith.negf %353 : vector<8x32xf32>
      %355 = math.exp %354 : vector<8x32xf32>
      %cst_152 = arith.constant 1.000000e+00 : f32
      %356 = vector.broadcast %cst_152 : f32 to vector<8x32xf32>
      %357 = arith.addf %356, %355 : vector<8x32xf32>
      %358 = arith.divf %356, %357 : vector<8x32xf32>
      %359 = vector.extract_strided_slice %345 {offsets = [0, 32], sizes = [8, 32], strides = [1, 1]} : vector<8x96xf32> to vector<8x32xf32>
      %360 = vector.extract_strided_slice %350 {offsets = [0, 32], sizes = [8, 32], strides = [1, 1]} : vector<8x64xf32> to vector<8x32xf32>
      %361 = arith.addf %359, %360 : vector<8x32xf32>
      %362 = arith.negf %361 : vector<8x32xf32>
      %363 = math.exp %362 : vector<8x32xf32>
      %cst_153 = arith.constant 1.000000e+00 : f32
      %364 = vector.broadcast %cst_153 : f32 to vector<8x32xf32>
      %365 = arith.addf %364, %363 : vector<8x32xf32>
      %366 = arith.divf %364, %365 : vector<8x32xf32>
      %367 = arith.mulf %358, %338 : vector<8x32xf32>
      %c0_154 = arith.constant 0 : index
      %c0_155 = arith.constant 0 : index
      %368 = vector.load %arg6[%c0_154, %c0_155] : memref<32x32xf32, #tpu.memory_space<vmem>>, vector<32x32xf32>
      %cst_156 = arith.constant dense<0.000000e+00> : vector<8x32xf32>
      %369 = tpu.matmul %367, %368, %cst_156 {dimension_numbers = #tpu.dot_dimension_numbers<[1], [0], [0], [1], [0, 0, 1, 1], [], []>} : vector<8x32xf32>, vector<32x32xf32>, vector<8x32xf32> -> vector<8x32xf32>
      %c0_157 = arith.constant 0 : index
      %c0_158 = arith.constant 0 : index
      %370 = vector.load %arg7[%c0_157, %c0_158] : memref<1x32xf32, #tpu.memory_space<vmem>>, vector<1x32xf32>
      %371 = vector.broadcast %370 : vector<1x32xf32> to vector<8x32xf32>
      %372 = arith.addf %369, %371 : vector<8x32xf32>
      %373 = vector.extract_strided_slice %345 {offsets = [0, 64], sizes = [8, 32], strides = [1, 1]} : vector<8x96xf32> to vector<8x32xf32>
      %374 = arith.addf %373, %372 : vector<8x32xf32>
      %375 = math.tanh %374 : vector<8x32xf32>
      %376 = arith.mulf %366, %338 : vector<8x32xf32>
      %cst_159 = arith.constant 1.000000e+00 : f32
      %377 = vector.broadcast %cst_159 : f32 to vector<8x32xf32>
      %378 = arith.subf %377, %366 : vector<8x32xf32>
      %379 = arith.mulf %378, %375 : vector<8x32xf32>
      %380 = arith.addf %376, %379 : vector<8x32xf32>
      %381 = arith.index_cast %c7_i32 : i32 to index
      %c0_160 = arith.constant 0 : index
      %c0_161 = arith.constant 0 : index
      %382 = vector.load %alloca_0[%381, %c0_160, %c0_161] : memref<8x8x32xf32, #tpu.memory_space<vmem>>, vector<1x8x32xf32>
      %383 = vector.shape_cast %382 : vector<1x8x32xf32> to vector<8x32xf32>
      %384 = vector.shape_cast %380 : vector<8x32xf32> to vector<1x8x32xf32>
      tpu.vector_store %alloca_0[%381, %c0_160, %c0_161], %384 {strides = array<i32>} : memref<8x8x32xf32, #tpu.memory_space<vmem>>, vector<1x8x32xf32>,
      %c8_i32 = arith.constant 8 : i32
      %c0_162 = arith.constant 0 : index
      %c0_163 = arith.constant 0 : index
      %c0_164 = arith.constant 0 : index
      %385 = vector.load %alloca_0[%c0_162, %c0_163, %c0_164] : memref<8x8x32xf32, #tpu.memory_space<vmem>>, vector<8x8x32xf32>
      %386 = vector.shape_cast %385 : vector<8x8x32xf32> to vector<64x32xf32>
      %c0_165 = arith.constant 0 : index
      %c0_166 = arith.constant 0 : index
      %387 = vector.load %arg8[%c0_165, %c0_166] : memref<32x10xf32, #tpu.memory_space<vmem>>, vector<32x10xf32>
      %cst_167 = arith.constant dense<0.000000e+00> : vector<64x10xf32>
      %388 = tpu.matmul %386, %387, %cst_167 {dimension_numbers = #tpu.dot_dimension_numbers<[1], [0], [0], [1], [0, 0, 1, 1], [], []>} : vector<64x32xf32>, vector<32x10xf32>, vector<64x10xf32> -> vector<64x10xf32>
      %c0_168 = arith.constant 0 : index
      %c0_169 = arith.constant 0 : index
      %389 = vector.load %arg9[%c0_168, %c0_169] : memref<1x10xf32, #tpu.memory_space<vmem>>, vector<1x10xf32>
      %390 = vector.broadcast %389 : vector<1x10xf32> to vector<64x10xf32>
      %391 = arith.addf %388, %390 : vector<64x10xf32>
      %392 = vector.shape_cast %391 : vector<64x10xf32> to vector<8x8x10xf32>
      %393 = vector.extract_strided_slice %392 {offsets = [0, 0, 0], sizes = [1, 8, 10], strides = [1, 1, 1]} : vector<8x8x10xf32> to vector<1x8x10xf32>
      %394 = vector.shape_cast %393 : vector<1x8x10xf32> to vector<8x10xf32>
      %c0_170 = arith.constant 0 : index
      %c0_171 = arith.constant 0 : index
      %c0_172 = arith.constant 0 : index
      %395 = vector.load %arg10[%c0_170, %c0_171, %c0_172] : memref<8x8x10xf32, #tpu.memory_space<vmem>>, vector<8x1x10xf32>
      %396 = vector.shape_cast %395 : vector<8x1x10xf32> to vector<8x10xf32>
      %397 = vector.shape_cast %394 : vector<8x10xf32> to vector<8x1x10xf32>
      tpu.vector_store %arg10[%c0_170, %c0_171, %c0_172], %397 {strides = array<i32>} : memref<8x8x10xf32, #tpu.memory_space<vmem>>, vector<8x1x10xf32>,
      %398 = vector.extract_strided_slice %392 {offsets = [1, 0, 0], sizes = [1, 8, 10], strides = [1, 1, 1]} : vector<8x8x10xf32> to vector<1x8x10xf32>
      %399 = vector.shape_cast %398 : vector<1x8x10xf32> to vector<8x10xf32>
      %c0_173 = arith.constant 0 : index
      %c1_174 = arith.constant 1 : index
      %c0_175 = arith.constant 0 : index
      %400 = vector.load %arg10[%c0_173, %c1_174, %c0_175] : memref<8x8x10xf32, #tpu.memory_space<vmem>>, vector<8x1x10xf32>
      %401 = vector.shape_cast %400 : vector<8x1x10xf32> to vector<8x10xf32>
      %402 = vector.shape_cast %399 : vector<8x10xf32> to vector<8x1x10xf32>
      tpu.vector_store %arg10[%c0_173, %c1_174, %c0_175], %402 {strides = array<i32>} : memref<8x8x10xf32, #tpu.memory_space<vmem>>, vector<8x1x10xf32>,
      %403 = vector.extract_strided_slice %392 {offsets = [2, 0, 0], sizes = [1, 8, 10], strides = [1, 1, 1]} : vector<8x8x10xf32> to vector<1x8x10xf32>
      %404 = vector.shape_cast %403 : vector<1x8x10xf32> to vector<8x10xf32>
      %c0_176 = arith.constant 0 : index
      %c2_177 = arith.constant 2 : index
      %c0_178 = arith.constant 0 : index
      %405 = vector.load %arg10[%c0_176, %c2_177, %c0_178] : memref<8x8x10xf32, #tpu.memory_space<vmem>>, vector<8x1x10xf32>
      %406 = vector.shape_cast %405 : vector<8x1x10xf32> to vector<8x10xf32>
      %407 = vector.shape_cast %404 : vector<8x10xf32> to vector<8x1x10xf32>
      tpu.vector_store %arg10[%c0_176, %c2_177, %c0_178], %407 {strides = array<i32>} : memref<8x8x10xf32, #tpu.memory_space<vmem>>, vector<8x1x10xf32>,
      %408 = vector.extract_strided_slice %392 {offsets = [3, 0, 0], sizes = [1, 8, 10], strides = [1, 1, 1]} : vector<8x8x10xf32> to vector<1x8x10xf32>
      %409 = vector.shape_cast %408 : vector<1x8x10xf32> to vector<8x10xf32>
      %c0_179 = arith.constant 0 : index
      %c3_180 = arith.constant 3 : index
      %c0_181 = arith.constant 0 : index
      %410 = vector.load %arg10[%c0_179, %c3_180, %c0_181] : memref<8x8x10xf32, #tpu.memory_space<vmem>>, vector<8x1x10xf32>
      %411 = vector.shape_cast %410 : vector<8x1x10xf32> to vector<8x10xf32>
      %412 = vector.shape_cast %409 : vector<8x10xf32> to vector<8x1x10xf32>
      tpu.vector_store %arg10[%c0_179, %c3_180, %c0_181], %412 {strides = array<i32>} : memref<8x8x10xf32, #tpu.memory_space<vmem>>, vector<8x1x10xf32>,
      %413 = vector.extract_strided_slice %392 {offsets = [4, 0, 0], sizes = [1, 8, 10], strides = [1, 1, 1]} : vector<8x8x10xf32> to vector<1x8x10xf32>
      %414 = vector.shape_cast %413 : vector<1x8x10xf32> to vector<8x10xf32>
      %c0_182 = arith.constant 0 : index
      %c4_183 = arith.constant 4 : index
      %c0_184 = arith.constant 0 : index
      %415 = vector.load %arg10[%c0_182, %c4_183, %c0_184] : memref<8x8x10xf32, #tpu.memory_space<vmem>>, vector<8x1x10xf32>
      %416 = vector.shape_cast %415 : vector<8x1x10xf32> to vector<8x10xf32>
      %417 = vector.shape_cast %414 : vector<8x10xf32> to vector<8x1x10xf32>
      tpu.vector_store %arg10[%c0_182, %c4_183, %c0_184], %417 {strides = array<i32>} : memref<8x8x10xf32, #tpu.memory_space<vmem>>, vector<8x1x10xf32>,
      %418 = vector.extract_strided_slice %392 {offsets = [5, 0, 0], sizes = [1, 8, 10], strides = [1, 1, 1]} : vector<8x8x10xf32> to vector<1x8x10xf32>
      %419 = vector.shape_cast %418 : vector<1x8x10xf32> to vector<8x10xf32>
      %c0_185 = arith.constant 0 : index
      %c5_186 = arith.constant 5 : index
      %c0_187 = arith.constant 0 : index
      %420 = vector.load %arg10[%c0_185, %c5_186, %c0_187] : memref<8x8x10xf32, #tpu.memory_space<vmem>>, vector<8x1x10xf32>
      %421 = vector.shape_cast %420 : vector<8x1x10xf32> to vector<8x10xf32>
      %422 = vector.shape_cast %419 : vector<8x10xf32> to vector<8x1x10xf32>
      tpu.vector_store %arg10[%c0_185, %c5_186, %c0_187], %422 {strides = array<i32>} : memref<8x8x10xf32, #tpu.memory_space<vmem>>, vector<8x1x10xf32>,
      %423 = vector.extract_strided_slice %392 {offsets = [6, 0, 0], sizes = [1, 8, 10], strides = [1, 1, 1]} : vector<8x8x10xf32> to vector<1x8x10xf32>
      %424 = vector.shape_cast %423 : vector<1x8x10xf32> to vector<8x10xf32>
      %c0_188 = arith.constant 0 : index
      %c6_189 = arith.constant 6 : index
      %c0_190 = arith.constant 0 : index
      %425 = vector.load %arg10[%c0_188, %c6_189, %c0_190] : memref<8x8x10xf32, #tpu.memory_space<vmem>>, vector<8x1x10xf32>
      %426 = vector.shape_cast %425 : vector<8x1x10xf32> to vector<8x10xf32>
      %427 = vector.shape_cast %424 : vector<8x10xf32> to vector<8x1x10xf32>
      tpu.vector_store %arg10[%c0_188, %c6_189, %c0_190], %427 {strides = array<i32>} : memref<8x8x10xf32, #tpu.memory_space<vmem>>, vector<8x1x10xf32>,
      %428 = vector.extract_strided_slice %392 {offsets = [7, 0, 0], sizes = [1, 8, 10], strides = [1, 1, 1]} : vector<8x8x10xf32> to vector<1x8x10xf32>
      %429 = vector.shape_cast %428 : vector<1x8x10xf32> to vector<8x10xf32>
      %c0_191 = arith.constant 0 : index
      %c7_192 = arith.constant 7 : index
      %c0_193 = arith.constant 0 : index
      %430 = vector.load %arg10[%c0_191, %c7_192, %c0_193] : memref<8x8x10xf32, #tpu.memory_space<vmem>>, vector<8x1x10xf32>
      %431 = vector.shape_cast %430 : vector<8x1x10xf32> to vector<8x10xf32>
      %432 = vector.shape_cast %429 : vector<8x10xf32> to vector<8x1x10xf32>
      tpu.vector_store %arg10[%c0_191, %c7_192, %c0_193], %432 {strides = array<i32>} : memref<8x8x10xf32, #tpu.memory_space<vmem>>, vector<8x1x10xf32>,
      tpu.yield
    }) : () -> ()
    return
  }
}

</mosaic_0001>

<llo_original>
// kernel: tpu_custom_call.1
$region0: #{tpu_custom_call.1}
  #allocation0 [shape = 'u32[]', space=smem, size = 0x4, offset = 0x4, fixed_abs, tag = 'smem constant byte address 0x4 - core index']
  #allocation1 [shape = 'u32[144,128]{1,0:T(1,128)}', space=vmem, size = 0x12000, scoped, tag = 'internal scratch']
  %s0 = inlined_call_operand.hbm [shape: f32[8,8,16], index: 0, kind: input, shape index: {}]
  %s1 = inlined_call_operand.hbm [shape: f32[8,32], index: 1, kind: input, shape index: {}]
  %s2 = inlined_call_operand.hbm [shape: f32[16,96], index: 2, kind: input, shape index: {}]
  %s3 = inlined_call_operand.vmem [shape: f32[1,96], index: 3, kind: input, shape index: {}]
  %s4 = inlined_call_operand.vmem [shape: f32[32,64], index: 4, kind: input, shape index: {}]
  %s5 = inlined_call_operand.vmem [shape: f32[1,64], index: 5, kind: input, shape index: {}]
  %s6 = inlined_call_operand.vmem [shape: f32[32,32], index: 6, kind: input, shape index: {}]
  %s7 = inlined_call_operand.vmem [shape: f32[1,32], index: 7, kind: input, shape index: {}]
  %s8 = inlined_call_operand.vmem [shape: f32[32,10], index: 8, kind: input, shape index: {}]
  %s9 = inlined_call_operand.vmem [shape: f32[1,10], index: 9, kind: input, shape index: {}]
  %s10 = inlined_call_operand.hbm [shape: f32[8,8,10], index: 10, kind: output, shape index: {}]
  %s11 = sld [smem:[#allocation0]]
  $region63: #{tpu_custom_call.1} parent=0
    _
  %s13 = ssub.s32 1, %s11
  %s14 = scalar_select 0, %s13, %s11
  $region1: #{tpu_custom_call.1} parent=0
    #allocation2 [shape = 'u8[32768]{0}', space=vmem, size = 0x8000, scoped, tag = 'input window, operand 0, single buffered']
    #allocation3 [shape = 's32[1]{0}', space=sflag, size = 0x4, scoped, tag = 'scoped memory for tpu_custom_call.1']
    #allocation4 [shape = 's32[1]{0}', space=sflag, size = 0x4, scoped, tag = 'scoped memory for tpu_custom_call.1']
    #allocation5 [shape = 'u8[4096]{0}', space=vmem, size = 0x1000, scoped, tag = 'input window, operand 1, single buffered']
    #allocation6 [shape = 's32[1]{0}', space=sflag, size = 0x4, scoped, tag = 'scoped memory for tpu_custom_call.1']
    #allocation7 [shape = 'u8[8192]{0}', space=vmem, size = 0x2000, scoped, tag = 'input window, operand 2, single buffered']
    #allocation8 [shape = 'u8[32768]{0}', space=vmem, size = 0x8000, scoped, tag = 'output window, operand 0, single buffered']
    %15 = vsyncpa [#allocation3], 0
    %16 = vsyncpa [#allocation6], 0
    %17 = vsyncpa [#allocation4], 0
    // Predicated region
    $region2: #{tpu_custom_call.1} parent=1 // pred_check
      _
    $region3: #{tpu_custom_call.1} parent=1 // pred_check_branch
      %19 = sbr.rel (0) target = $region5
    $region4: #{tpu_custom_call.1} parent=1 // pred_region
      %s21 = ssub.s32 1024, 1024
      %22 = vsyncadd [#allocation3], %s21
      %s23 = sshll.u32 [#allocation2], 4
      %s24 = int_to_ptr.vmem [resolvable:$true] %s23
      %29 = dma.hbm_to_vmem [thread:$0]  %s0, 1024, %s24, [#allocation3], 128, 128, 8
    $region5: #{tpu_custom_call.1} parent=1 // pred_fallthru
      _
    // Predicated region
    $region6: #{tpu_custom_call.1} parent=1 // pred_check
      _
    $region7: #{tpu_custom_call.1} parent=1 // pred_check_branch
      %31 = sbr.rel (0) target = $region9
    $region8: #{tpu_custom_call.1} parent=1 // pred_region
      %s33 = ssub.s32 128, 128
      %34 = vsyncadd [#allocation6], %s33
      %s36 = sshll.u32 [#allocation5], 4
      %s37 = int_to_ptr.vmem [resolvable:$true] %s36
      %39 = dma.hbm_to_vmem [thread:$0]  %s1, 128, %s37, [#allocation6]
    $region9: #{tpu_custom_call.1} parent=1 // pred_fallthru
      _
    // Predicated region
    $region10: #{tpu_custom_call.1} parent=1 // pred_check
      _
    $region11: #{tpu_custom_call.1} parent=1 // pred_check_branch
      %41 = sbr.rel (0) target = $region13
    $region12: #{tpu_custom_call.1} parent=1 // pred_region
      %s43 = ssub.s32 256, 256
      %44 = vsyncadd [#allocation6], %s43
      %s45 = sshll.u32 [#allocation7], 4
      %s46 = int_to_ptr.vmem [resolvable:$true] %s45
      %51 = dma.hbm_to_vmem [thread:$0]  %s2, 256, %s46, [#allocation6], 128, 128, 8
    $region13: #{tpu_custom_call.1} parent=1 // pred_fallthru
      _
    // Predicated region
    $region14: #{tpu_custom_call.1} parent=1 // pred_check
      _
    $region15: #{tpu_custom_call.1} parent=1 // pred_check_branch
      %53 = sbr.rel (0) target = $region17
    $region16: #{tpu_custom_call.1} parent=1 // pred_region
      _
    $region17: #{tpu_custom_call.1} parent=1 // pred_fallthru
      _
    // Predicated region
    $region18: #{tpu_custom_call.1} parent=1 // pred_check
      _
    $region19: #{tpu_custom_call.1} parent=1 // pred_check_branch
      %55 = sbr.rel (0) target = $region21
    $region20: #{tpu_custom_call.1} parent=1 // pred_region
      _
    $region21: #{tpu_custom_call.1} parent=1 // pred_fallthru
      _
    // Predicated region
    $region22: #{tpu_custom_call.1} parent=1 // pred_check
      _
    $region23: #{tpu_custom_call.1} parent=1 // pred_check_branch
      %57 = sbr.rel (0) target = $region25
    $region24: #{tpu_custom_call.1} parent=1 // pred_region
      _
    $region25: #{tpu_custom_call.1} parent=1 // pred_fallthru
      _
    // Predicated region
    $region26: #{tpu_custom_call.1} parent=1 // pred_check
      _
    $region27: #{tpu_custom_call.1} parent=1 // pred_check_branch
      %59 = sbr.rel (0) target = $region29
    $region28: #{tpu_custom_call.1} parent=1 // pred_region
      _
    $region29: #{tpu_custom_call.1} parent=1 // pred_fallthru
      _
    // Predicated region
    $region30: #{tpu_custom_call.1} parent=1 // pred_check
      _
    $region31: #{tpu_custom_call.1} parent=1 // pred_check_branch
      %61 = sbr.rel (0) target = $region33
    $region32: #{tpu_custom_call.1} parent=1 // pred_region
      _
    $region33: #{tpu_custom_call.1} parent=1 // pred_fallthru
      _
    // Predicated region
    $region34: #{tpu_custom_call.1} parent=1 // pred_check
      _
    $region35: #{tpu_custom_call.1} parent=1 // pred_check_branch
      %63 = sbr.rel (0) target = $region37
    $region36: #{tpu_custom_call.1} parent=1 // pred_region
      _
    $region37: #{tpu_custom_call.1} parent=1 // pred_fallthru
      _
    // Predicated region
    $region38: #{tpu_custom_call.1} parent=1 // pred_check
      _
    $region39: #{tpu_custom_call.1} parent=1 // pred_check_branch
      %65 = sbr.rel (0) target = $region41
    $region40: #{tpu_custom_call.1} parent=1 // pred_region
      _
    $region41: #{tpu_custom_call.1} parent=1 // pred_fallthru
      _
    // Predicated region
    $region42: #{tpu_custom_call.1} parent=1 // pred_check
      _
    $region43: #{tpu_custom_call.1} parent=1 // pred_check_branch
      %67 = sbr.rel (0) target = $region45
    $region44: #{tpu_custom_call.1} parent=1 // pred_region
      %68 = dma.done [#allocation3], 1024
    $region45: #{tpu_custom_call.1} parent=1 // pred_fallthru
      _
    // Predicated region
    $region46: #{tpu_custom_call.1} parent=1 // pred_check
      _
    $region47: #{tpu_custom_call.1} parent=1 // pred_check_branch
      %70 = sbr.rel (0) target = $region49
    $region48: #{tpu_custom_call.1} parent=1 // pred_region
      %71 = dma.done [#allocation6], 128
    $region49: #{tpu_custom_call.1} parent=1 // pred_fallthru
      _
    // Predicated region
    $region50: #{tpu_custom_call.1} parent=1 // pred_check
      _
    $region51: #{tpu_custom_call.1} parent=1 // pred_check_branch
      %73 = sbr.rel (0) target = $region53
    $region52: #{tpu_custom_call.1} parent=1 // pred_region
      %74 = dma.done [#allocation6], 256
    $region53: #{tpu_custom_call.1} parent=1 // pred_fallthru
      _
    $region54: #{tpu_custom_call.1} parent=1
      #allocation9 [shape = 'u8[32768]{0}', space=vmem, size = 0x8000, scoped, tag = 'scoped memory for tpu_custom_call.1']
      #allocation10 [shape = 'u8[32768]{0}', space=vmem, size = 0x8000, scoped, tag = 'scoped memory for tpu_custom_call.1']
      %v75 = vld [vmem:[#allocation2] sm:$0xff]
      %v76 = vld [vmem:[#allocation2 + $0x8] sm:$0xff]
      %v77 = vld [vmem:[#allocation2 + $0x10] sm:$0xff]
      %v78 = vld [vmem:[#allocation2 + $0x18] sm:$0xff]
      %v79 = vld [vmem:[#allocation2 + $0x20] sm:$0xff]
      %v80 = vld [vmem:[#allocation2 + $0x28] sm:$0xff]
      %v81 = vld [vmem:[#allocation2 + $0x30] sm:$0xff]
      %v82 = vld [vmem:[#allocation2 + $0x38] sm:$0xff]
      %v83 = vld [vmem:[#allocation7] sm:$0xff]
      %v84 = vld [vmem:[#allocation7 + $0x8] sm:$0xff]
      %v85 = vld [vmem:[%s3] sm:$0x1]
      %v87 = vlaneseq
      %v88 = vshrl.u32 %v87, 7
      %v89 = vsub.s32 0, %v88
      %v90 = vrot.slane %v85, %v89
      %vm92 = vcmask 130048
      %v94 = vsel %vm92, %v75, 0
      %v97 = vsel %vm92, %v76, 0
      %v100 = vsel %vm92, %v77, 0
      %v103 = vsel %vm92, %v78, 0
      %v106 = vsel %vm92, %v79, 0
      %v109 = vsel %vm92, %v80, 0
      %v112 = vsel %vm92, %v81, 0
      %v115 = vsel %vm92, %v82, 0
      %117 = vmatprep.subr.mxu0 0.0
      %118 = vmatpush1.msra.mxu0 %v83
      %119 = vmatprep.subr.mxu0 0.0
      %120 = vmatpush1.msra.mxu0 %v84
      %121 = vmatprep.subr.mxu0 0.0
      %122 = vmatpush1.msra.mxu0 0.0
      %123 = vmatprep.subr.mxu0 0.0
      %124 = vmatpush1.msra.mxu0 0.0
      %125 = vmatprep.subr.mxu0 0.0
      %126 = vmatpush1.msra.mxu0 0.0
      %127 = vmatprep.subr.mxu0 0.0
      %128 = vmatpush1.msra.mxu0 0.0
      %129 = vmatprep.subr.mxu0 0.0
      %130 = vmatpush1.msra.mxu0 0.0
      %131 = vmatprep.subr.mxu0 0.0
      %132 = vmatpush1.msra.mxu0 0.0
      %133 = vmatprep.subr.mxu0 0.0
      %134 = vmatpush1.msra.mxu0 0.0
      %135 = vmatprep.subr.mxu0 0.0
      %136 = vmatpush1.msra.mxu0 0.0
      %137 = vmatprep.subr.mxu0 0.0
      %138 = vmatpush1.msra.mxu0 0.0
      %139 = vmatprep.subr.mxu0 0.0
      %140 = vmatpush1.msra.mxu0 0.0
      %141 = vmatprep.subr.mxu0 0.0
      %142 = vmatpush1.msra.mxu0 0.0
      %143 = vmatprep.subr.mxu0 0.0
      %144 = vmatpush1.msra.mxu0 0.0
      %145 = vmatprep.subr.mxu0 0.0
      %146 = vmatpush1.msra.mxu0 0.0
      %147 = vmatprep.subr.mxu0 0.0
      %148 = vmatpush1.msra.mxu0 0.0
      %149 = vmatprep.subr.mxu0 0.0
      %150 = vmatpush1.msra.mxu0 0.0
      %151 = vmatprep.subr.mxu0 0.0
      %152 = vmatpush1.msra.mxu0 0.0
      %153 = vmatprep.subr.mxu0 0.0
      %154 = vmatpush1.msra.mxu0 0.0
      %155 = vmatprep.subr.mxu0 0.0
      %156 = vmatpush1.msra.mxu0 0.0
      %157 = vmatprep.subr.mxu0 0.0
      %158 = vmatpush1.msra.mxu0 0.0
      %159 = vmatprep.subr.mxu0 0.0
      %160 = vmatpush1.msra.mxu0 0.0
      %161 = vmatprep.subr.mxu0 0.0
      %162 = vmatpush1.msra.mxu0 0.0
      %163 = vmatprep.subr.mxu0 0.0
      %164 = vmatpush1.msra.mxu0 0.0
      %165 = vmatprep.subr.mxu0 0.0
      %166 = vmatpush1.msra.mxu0 0.0
      %167 = vmatprep.subr.mxu0 0.0
      %168 = vmatpush1.msra.mxu0 0.0
      %169 = vmatprep.subr.mxu0 0.0
      %170 = vmatpush1.msra.mxu0 0.0
      %171 = vmatprep.subr.mxu0 0.0
      %172 = vmatpush1.msra.mxu0 0.0
      %173 = vmatprep.subr.mxu0 0.0
      %174 = vmatpush1.msra.mxu0 0.0
      %175 = vmatprep.subr.mxu0 0.0
      %176 = vmatpush1.msra.mxu0 0.0
      %177 = vmatprep.subr.mxu0 0.0
      %178 = vmatpush1.msra.mxu0 0.0
      %179 = vmatprep.subr.mxu0 0.0
      %180 = vmatpush1.msra.mxu0 0.0
      %181 = vmatprep.mubr.f32.mxu0 0.0
      %182 = vmatmul.mubr.f32.gmra.mrb[0].mxu0 %v94
      %v183 = vpop.f32.mrb[0].mxu0
      %v184 = vadd.f32 %v90, %v183
      %v185 = vpop.f32.mrb[0].mxu0
      %186 = vmatprep.mubr.f32.mxu0 0.0
      %187 = vmatmul.mubr.f32.gmra.mrb[0].mxu0 %v97
      %v188 = vpop.f32.mrb[0].mxu0
      %v189 = vadd.f32 %v90, %v188
      %v190 = vpop.f32.mrb[0].mxu0
      %191 = vmatprep.mubr.f32.mxu0 0.0
      %192 = vmatmul.mubr.f32.gmra.mrb[0].mxu0 %v100
      %v193 = vpop.f32.mrb[0].mxu0
      %v194 = vadd.f32 %v90, %v193
      %v195 = vpop.f32.mrb[0].mxu0
      %196 = vmatprep.mubr.f32.mxu0 0.0
      %197 = vmatmul.mubr.f32.gmra.mrb[0].mxu0 %v103
      %v198 = vpop.f32.mrb[0].mxu0
      %v199 = vadd.f32 %v90, %v198
      %v200 = vpop.f32.mrb[0].mxu0
      %201 = vmatprep.mubr.f32.mxu0 0.0
      %202 = vmatmul.mubr.f32.gmra.mrb[0].mxu0 %v106
      %v203 = vpop.f32.mrb[0].mxu0
      %v204 = vadd.f32 %v90, %v203
      %v205 = vpop.f32.mrb[0].mxu0
      %206 = vmatprep.mubr.f32.mxu0 0.0
      %207 = vmatmul.mubr.f32.gmra.mrb[0].mxu0 %v109
      %v208 = vpop.f32.mrb[0].mxu0
      %v209 = vadd.f32 %v90, %v208
      %v210 = vpop.f32.mrb[0].mxu0
      %211 = vmatprep.mubr.f32.mxu0 0.0
      %212 = vmatmul.mubr.f32.gmra.mrb[0].mxu0 %v112
      %v213 = vpop.f32.mrb[0].mxu0
      %v214 = vadd.f32 %v90, %v213
      %v215 = vpop.f32.mrb[0].mxu0
      %216 = vmatprep.mubr.f32.mxu0 0.0
      %217 = vmatmul.mubr.f32.gmra.mrb[0].mxu0 %v115
      %v218 = vpop.f32.mrb[0].mxu0
      %v219 = vadd.f32 %v90, %v218
      %v220 = vpop.f32.mrb[0].mxu0
      %221 = vdwg.mxu0
      %v230 = vrot.slane %v189, 7
      %vm231 = vcmask 1041409
      %v232 = vsel %vm231, %v230, %v184
      %v233 = vrot.slane %v194, 6
      %vm234 = vcmask 1042434
      %v235 = vsel %vm234, %v233, %v232
      %v236 = vrot.slane %v199, 5
      %vm237 = vcmask 1043459
      %v238 = vsel %vm237, %v236, %v235
      %v239 = vrot.slane %v204, 4
      %vm240 = vcmask 1044484
      %v241 = vsel %vm240, %v239, %v238
      %v242 = vrot.slane %v209, 3
      %vm243 = vcmask 1045509
      %v244 = vsel %vm243, %v242, %v241
      %v245 = vrot.slane %v214, 2
      %vm246 = vcmask 1046534
      %v247 = vsel %vm246, %v245, %v244
      %v248 = vrot.slane %v219, 1
      %vm249 = vcmask 1047559
      %v250 = vsel %vm249, %v248, %v247
      %vm252 = vcmask 785408
      %253 = vst.msk [vmem:[#allocation9] sm:$0xff] %vm252, %v250
      %v254 = vsel %vm234, %v230, %v184
      %v255 = vsel %vm237, %v233, %v254
      %v256 = vsel %vm240, %v236, %v255
      %v257 = vsel %vm243, %v239, %v256
      %v258 = vsel %vm246, %v242, %v257
      %v259 = vsel %vm249, %v245, %v258
      %s262 = scalar_lea.vmem [#allocation9], 8
      %vm263 = vcmask 785409
      %264 = vst.msk [vmem:[%s262 - $0x1] sm:$0xfe] %vm263, %v259
      %vm265 = vcmask 778240
      %266 = vst.msk [vmem:[%s262 + $0x7] sm:$0x1] %vm265, %v248
      %v267 = vsel %vm237, %v230, %v184
      %v268 = vsel %vm240, %v233, %v267
      %v269 = vsel %vm243, %v236, %v268
      %v270 = vsel %vm246, %v239, %v269
      %v271 = vsel %vm249, %v242, %v270
      %v272 = vsel %vm231, %v248, %v245
      %s275 = scalar_lea.vmem [#allocation9], 16
      %vm276 = vcmask 785410
      %277 = vst.msk [vmem:[%s275 - $0x2] sm:$0xfc] %vm276, %v271
      %vm278 = vcmask 779264
      %279 = vst.msk [vmem:[%s275 + $0x6] sm:$0x3] %vm278, %v272
      %v280 = vsel %vm240, %v230, %v184
      %v281 = vsel %vm243, %v233, %v280
      %v282 = vsel %vm246, %v236, %v281
      %v283 = vsel %vm249, %v239, %v282
      %v284 = vsel %vm231, %v245, %v242
      %v285 = vsel %vm234, %v248, %v284
      %s288 = scalar_lea.vmem [#allocation9], 24
      %vm289 = vcmask 785411
      %290 = vst.msk [vmem:[%s288 - $0x3] sm:$0xf8] %vm289, %v283
      %vm291 = vcmask 780288
      %292 = vst.msk [vmem:[%s288 + $0x5] sm:$0x7] %vm291, %v285
      %v293 = vsel %vm243, %v230, %v184
      %v294 = vsel %vm246, %v233, %v293
      %v295 = vsel %vm249, %v236, %v294
      %v296 = vsel %vm231, %v242, %v239
      %v297 = vsel %vm234, %v245, %v296
      %v298 = vsel %vm237, %v248, %v297
      %s301 = scalar_lea.vmem [#allocation9], 32
      %vm302 = vcmask 785412
      %303 = vst.msk [vmem:[%s301 - $0x4] sm:$0xf0] %vm302, %v295
      %vm304 = vcmask 781312
      %305 = vst.msk [vmem:[%s301 + $0x4] sm:$0xf] %vm304, %v298
      %v306 = vsel %vm246, %v230, %v184
      %v307 = vsel %vm249, %v233, %v306
      %v308 = vsel %vm231, %v239, %v236
      %v309 = vsel %vm234, %v242, %v308
      %v310 = vsel %vm237, %v245, %v309
      %v311 = vsel %vm240, %v248, %v310
      %s314 = scalar_lea.vmem [#allocation9], 40
      %vm315 = vcmask 785413
      %316 = vst.msk [vmem:[%s314 - $0x5] sm:$0xe0] %vm315, %v307
      %vm317 = vcmask 782336
      %318 = vst.msk [vmem:[%s314 + $0x3] sm:$0x1f] %vm317, %v311
      %v319 = vsel %vm249, %v230, %v184
      %v320 = vsel %vm231, %v236, %v233
      %v321 = vsel %vm234, %v239, %v320
      %v322 = vsel %vm237, %v242, %v321
      %v323 = vsel %vm240, %v245, %v322
      %v324 = vsel %vm243, %v248, %v323
      %s327 = scalar_lea.vmem [#allocation9], 48
      %vm328 = vcmask 785414
      %329 = vst.msk [vmem:[%s327 - $0x6] sm:$0xc0] %vm328, %v319
      %vm330 = vcmask 783360
      %331 = vst.msk [vmem:[%s327 + $0x2] sm:$0x3f] %vm330, %v324
      %v332 = vsel %vm231, %v233, %v230
      %v333 = vsel %vm234, %v236, %v332
      %v334 = vsel %vm237, %v239, %v333
      %v335 = vsel %vm240, %v242, %v334
      %v336 = vsel %vm243, %v245, %v335
      %v337 = vsel %vm246, %v248, %v336
      %s340 = scalar_lea.vmem [#allocation9], 56
      %vm341 = vcmask 785415
      %342 = vst.msk [vmem:[%s340 - $0x7] sm:$0x80] %vm341, %v184
      %vm343 = vcmask 784384
      %344 = vst.msk [vmem:[%s340 + $0x1] sm:$0x7f] %vm343, %v337
      %v345 = vld [vmem:[#allocation5] sm:$0xff]
      %v346 = vld [vmem:[#allocation9] sm:$0xff]
      %v347 = vld [vmem:[%s4] sm:$0xff]
      %v348 = vld [vmem:[%s4 + $0x8] sm:$0xff]
      %v349 = vld [vmem:[%s4 + $0x10] sm:$0xff]
      %v350 = vld [vmem:[%s4 + $0x18] sm:$0xff]
      %v351 = vld [vmem:[%s5] sm:$0x1]
      %v353 = vlaneseq
      %v354 = vshrl.u32 %v353, 7
      %v355 = vsub.s32 0, %v354
      %v356 = vrot.slane %v351, %v355
      %vm358 = vcmask 261120
      %v360 = vsel %vm358, %v345, 0
      %362 = vmatprep.subr.mxu0 0.0
      %363 = vmatpush1.msra.mxu0 %v347
      %364 = vmatprep.subr.mxu0 0.0
      %365 = vmatpush1.msra.mxu0 %v348
      %366 = vmatprep.subr.mxu0 0.0
      %367 = vmatpush1.msra.mxu0 %v349
      %368 = vmatprep.subr.mxu0 0.0
      %369 = vmatpush1.msra.mxu0 %v350
      %370 = vmatprep.subr.mxu0 0.0
      %371 = vmatpush1.msra.mxu0 0.0
      %372 = vmatprep.subr.mxu0 0.0
      %373 = vmatpush1.msra.mxu0 0.0
      %374 = vmatprep.subr.mxu0 0.0
      %375 = vmatpush1.msra.mxu0 0.0
      %376 = vmatprep.subr.mxu0 0.0
      %377 = vmatpush1.msra.mxu0 0.0
      %378 = vmatprep.subr.mxu0 0.0
      %379 = vmatpush1.msra.mxu0 0.0
      %380 = vmatprep.subr.mxu0 0.0
      %381 = vmatpush1.msra.mxu0 0.0
      %382 = vmatprep.subr.mxu0 0.0
      %383 = vmatpush1.msra.mxu0 0.0
      %384 = vmatprep.subr.mxu0 0.0
      %385 = vmatpush1.msra.mxu0 0.0
      %386 = vmatprep.subr.mxu0 0.0
      %387 = vmatpush1.msra.mxu0 0.0
      %388 = vmatprep.subr.mxu0 0.0
      %389 = vmatpush1.msra.mxu0 0.0
      %390 = vmatprep.subr.mxu0 0.0
      %391 = vmatpush1.msra.mxu0 0.0
      %392 = vmatprep.subr.mxu0 0.0
      %393 = vmatpush1.msra.mxu0 0.0
      %394 = vmatprep.subr.mxu0 0.0
      %395 = vmatpush1.msra.mxu0 0.0
      %396 = vmatprep.subr.mxu0 0.0
      %397 = vmatpush1.msra.mxu0 0.0
      %398 = vmatprep.subr.mxu0 0.0
      %399 = vmatpush1.msra.mxu0 0.0
      %400 = vmatprep.subr.mxu0 0.0
      %401 = vmatpush1.msra.mxu0 0.0
      %402 = vmatprep.subr.mxu0 0.0
      %403 = vmatpush1.msra.mxu0 0.0
      %404 = vmatprep.subr.mxu0 0.0
      %405 = vmatpush1.msra.mxu0 0.0
      %406 = vmatprep.subr.mxu0 0.0
      %407 = vmatpush1.msra.mxu0 0.0
      %408 = vmatprep.subr.mxu0 0.0
      %409 = vmatpush1.msra.mxu0 0.0
      %410 = vmatprep.subr.mxu0 0.0
      %411 = vmatpush1.msra.mxu0 0.0
      %412 = vmatprep.subr.mxu0 0.0
      %413 = vmatpush1.msra.mxu0 0.0
      %414 = vmatprep.subr.mxu0 0.0
      %415 = vmatpush1.msra.mxu0 0.0
      %416 = vmatprep.subr.mxu0 0.0
      %417 = vmatpush1.msra.mxu0 0.0
      %418 = vmatprep.subr.mxu0 0.0
      %419 = vmatpush1.msra.mxu0 0.0
      %420 = vmatprep.subr.mxu0 0.0
      %421 = vmatpush1.msra.mxu0 0.0
      %422 = vmatprep.subr.mxu0 0.0
      %423 = vmatpush1.msra.mxu0 0.0
      %424 = vmatprep.subr.mxu0 0.0
      %425 = vmatpush1.msra.mxu0 0.0
      %426 = vmatprep.mubr.f32.mxu0 0.0
      %427 = vmatmul.mubr.f32.gmra.mrb[0].mxu0 %v360
      %v428 = vpop.f32.mrb[0].mxu0
      %v429 = vadd.f32 %v356, %v428
      %v430 = vpop.f32.mrb[0].mxu0
      %431 = vdwg.mxu0
      %v432 = vadd.f32 %v346, %v429
      %v433 = vxor.u32 %v432, 2147483648
      %v434 = vmul.f32 %v433, 1.442695
      %v435 = vpow.pop %v434
      %v436 = vadd.f32 %v435, 1.0
      %v437 = vrcp.pop %v436
      %v438 = vmul.f32 1.0, %v437
      %v439 = vmul.f32 %v438, %v345
      %v440 = vld [vmem:[%s6] sm:$0xff]
      %v441 = vld [vmem:[%s6 + $0x8] sm:$0xff]
      %v442 = vld [vmem:[%s6 + $0x10] sm:$0xff]
      %v443 = vld [vmem:[%s6 + $0x18] sm:$0xff]
      %v444 = vld [vmem:[%s7] sm:$0x1]
      %v446 = vlaneseq
      %v447 = vshrl.u32 %v446, 7
      %v448 = vsub.s32 0, %v447
      %v449 = vrot.slane %v444, %v448
      %v452 = vsel %vm358, %v439, 0
      %454 = vmatprep.subr.mxu0 0.0
      %455 = vmatpush1.msra.mxu0 %v440
      %456 = vmatprep.subr.mxu0 0.0
      %457 = vmatpush1.msra.mxu0 %v441
      %458 = vmatprep.subr.mxu0 0.0
      %459 = vmatpush1.msra.mxu0 %v442
      %460 = vmatprep.subr.mxu0 0.0
      %461 = vmatpush1.msra.mxu0 %v443
      %462 = vmatprep.subr.mxu0 0.0
      %463 = vmatpush1.msra.mxu0 0.0
      %464 = vmatprep.subr.mxu0 0.0
      %465 = vmatpush1.msra.mxu0 0.0
      %466 = vmatprep.subr.mxu0 0.0
      %467 = vmatpush1.msra.mxu0 0.0
      %468 = vmatprep.subr.mxu0 0.0
      %469 = vmatpush1.msra.mxu0 0.0
      %470 = vmatprep.subr.mxu0 0.0
      %471 = vmatpush1.msra.mxu0 0.0
      %472 = vmatprep.subr.mxu0 0.0
      %473 = vmatpush1.msra.mxu0 0.0
      %474 = vmatprep.subr.mxu0 0.0
      %475 = vmatpush1.msra.mxu0 0.0
      %476 = vmatprep.subr.mxu0 0.0
      %477 = vmatpush1.msra.mxu0 0.0
      %478 = vmatprep.subr.mxu0 0.0
      %479 = vmatpush1.msra.mxu0 0.0
      %480 = vmatprep.subr.mxu0 0.0
      %481 = vmatpush1.msra.mxu0 0.0
      %482 = vmatprep.subr.mxu0 0.0
      %483 = vmatpush1.msra.mxu0 0.0
      %484 = vmatprep.subr.mxu0 0.0
      %485 = vmatpush1.msra.mxu0 0.0
      %486 = vmatprep.subr.mxu0 0.0
      %487 = vmatpush1.msra.mxu0 0.0
      %488 = vmatprep.subr.mxu0 0.0
      %489 = vmatpush1.msra.mxu0 0.0
      %490 = vmatprep.subr.mxu0 0.0
      %491 = vmatpush1.msra.mxu0 0.0
      %492 = vmatprep.subr.mxu0 0.0
      %493 = vmatpush1.msra.mxu0 0.0
      %494 = vmatprep.subr.mxu0 0.0
      %495 = vmatpush1.msra.mxu0 0.0
      %496 = vmatprep.subr.mxu0 0.0
      %497 = vmatpush1.msra.mxu0 0.0
      %498 = vmatprep.subr.mxu0 0.0
      %499 = vmatpush1.msra.mxu0 0.0
      %500 = vmatprep.subr.mxu0 0.0
      %501 = vmatpush1.msra.mxu0 0.0
      %502 = vmatprep.subr.mxu0 0.0
      %503 = vmatpush1.msra.mxu0 0.0
      %504 = vmatprep.subr.mxu0 0.0
      %505 = vmatpush1.msra.mxu0 0.0
      %506 = vmatprep.subr.mxu0 0.0
      %507 = vmatpush1.msra.mxu0 0.0
      %508 = vmatprep.subr.mxu0 0.0
      %509 = vmatpush1.msra.mxu0 0.0
      %510 = vmatprep.subr.mxu0 0.0
      %511 = vmatpush1.msra.mxu0 0.0
      %512 = vmatprep.subr.mxu0 0.0
      %513 = vmatpush1.msra.mxu0 0.0
      %514 = vmatprep.subr.mxu0 0.0
      %515 = vmatpush1.msra.mxu0 0.0
      %516 = vmatprep.subr.mxu0 0.0
      %517 = vmatpush1.msra.mxu0 0.0
      %518 = vmatprep.mubr.f32.mxu0 0.0
      %519 = vmatmul.mubr.f32.gmra.mrb[0].mxu0 %v452
      %v520 = vpop.f32.mrb[0].mxu0
      %v521 = vadd.f32 %v449, %v520
      %v522 = vpop.f32.mrb[0].mxu0
      %523 = vdwg.mxu0
      %525 = vrot.lane.b32.xlu0 %v521, 64
      %v526 = vpop.permute.xlu0 %525
      %v528 = vadd.f32 %v346, %v526
      %v529 = vtanh.pop %v528
      %530 = vrot.lane.b32.xlu0 %v345, 32
      %v531 = vpop.permute.xlu0 %530
      %v533 = vmul.f32 %v438, %v531
      %v534 = vsub.f32 1.0, %v438
      %536 = vrot.lane.b32.xlu0 %v529, 96
      %v537 = vpop.permute.xlu0 %536
      %v539 = vmul.f32 %v534, %v537
      %v540 = vadd.f32 %v533, %v539
      %542 = vrot.lane.b32.xlu0 %v540, 96
      %v543 = vpop.permute.xlu0 %542
      %545 = vst.msk [vmem:[#allocation10] sm:$0xff] %vm358, %v543
      %v546 = vld [vmem:[%s262] sm:$0xff]
      %v547 = vld [vmem:[%s4] sm:$0xff]
      %v548 = vld [vmem:[%s4 + $0x8] sm:$0xff]
      %v549 = vld [vmem:[%s4 + $0x10] sm:$0xff]
      %v550 = vld [vmem:[%s4 + $0x18] sm:$0xff]
      %v551 = vld [vmem:[%s5] sm:$0x1]
      %v553 = vlaneseq
      %v554 = vshrl.u32 %v553, 7
      %v555 = vsub.s32 0, %v554
      %v556 = vrot.slane %v551, %v555
      %v558 = vsel %vm358, %v543, 0
      %560 = vmatprep.subr.mxu0 0.0
      %561 = vmatpush1.msra.mxu0 %v547
      %562 = vmatprep.subr.mxu0 0.0
      %563 = vmatpush1.msra.mxu0 %v548
      %564 = vmatprep.subr.mxu0 0.0
      %565 = vmatpush1.msra.mxu0 %v549
      %566 = vmatprep.subr.mxu0 0.0
      %567 = vmatpush1.msra.mxu0 %v550
      %568 = vmatprep.subr.mxu0 0.0
      %569 = vmatpush1.msra.mxu0 0.0
      %570 = vmatprep.subr.mxu0 0.0
      %571 = vmatpush1.msra.mxu0 0.0
      %572 = vmatprep.subr.mxu0 0.0
      %573 = vmatpush1.msra.mxu0 0.0
      %574 = vmatprep.subr.mxu0 0.0
      %575 = vmatpush1.msra.mxu0 0.0
      %576 = vmatprep.subr.mxu0 0.0
      %577 = vmatpush1.msra.mxu0 0.0
      %578 = vmatprep.subr.mxu0 0.0
      %579 = vmatpush1.msra.mxu0 0.0
      %580 = vmatprep.subr.mxu0 0.0
      %581 = vmatpush1.msra.mxu0 0.0
      %582 = vmatprep.subr.mxu0 0.0
      %583 = vmatpush1.msra.mxu0 0.0
      %584 = vmatprep.subr.mxu0 0.0
      %585 = vmatpush1.msra.mxu0 0.0
      %586 = vmatprep.subr.mxu0 0.0
      %587 = vmatpush1.msra.mxu0 0.0
      %588 = vmatprep.subr.mxu0 0.0
      %589 = vmatpush1.msra.mxu0 0.0
      %590 = vmatprep.subr.mxu0 0.0
      %591 = vmatpush1.msra.mxu0 0.0
      %592 = vmatprep.subr.mxu0 0.0
      %593 = vmatpush1.msra.mxu0 0.0
      %594 = vmatprep.subr.mxu0 0.0
      %595 = vmatpush1.msra.mxu0 0.0
      %596 = vmatprep.subr.mxu0 0.0
      %597 = vmatpush1.msra.mxu0 0.0
      %598 = vmatprep.subr.mxu0 0.0
      %599 = vmatpush1.msra.mxu0 0.0
      %600 = vmatprep.subr.mxu0 0.0
      %601 = vmatpush1.msra.mxu0 0.0
      %602 = vmatprep.subr.mxu0 0.0
      %603 = vmatpush1.msra.mxu0 0.0
      %604 = vmatprep.subr.mxu0 0.0
      %605 = vmatpush1.msra.mxu0 0.0
      %606 = vmatprep.subr.mxu0 0.0
      %607 = vmatpush1.msra.mxu0 0.0
      %608 = vmatprep.subr.mxu0 0.0
      %609 = vmatpush1.msra.mxu0 0.0
      %610 = vmatprep.subr.mxu0 0.0
      %611 = vmatpush1.msra.mxu0 0.0
      %612 = vmatprep.subr.mxu0 0.0
      %613 = vmatpush1.msra.mxu0 0.0
      %614 = vmatprep.subr.mxu0 0.0
      %615 = vmatpush1.msra.mxu0 0.0
      %616 = vmatprep.subr.mxu0 0.0
      %617 = vmatpush1.msra.mxu0 0.0
      %618 = vmatprep.subr.mxu0 0.0
      %619 = vmatpush1.msra.mxu0 0.0
      %620 = vmatprep.subr.mxu0 0.0
      %621 = vmatpush1.msra.mxu0 0.0
      %622 = vmatprep.subr.mxu0 0.0
      %623 = vmatpush1.msra.mxu0 0.0
      %624 = vmatprep.mubr.f32.mxu0 0.0
      %625 = vmatmul.mubr.f32.gmra.mrb[0].mxu0 %v558
      %v626 = vpop.f32.mrb[0].mxu0
      %v627 = vadd.f32 %v556, %v626
      %v628 = vpop.f32.mrb[0].mxu0
      %629 = vdwg.mxu0
      %v630 = vadd.f32 %v546, %v627
      %v631 = vxor.u32 %v630, 2147483648
      %v632 = vmul.f32 %v631, 1.442695
      %v633 = vpow.pop %v632
      %v634 = vadd.f32 %v633, 1.0
      %v635 = vrcp.pop %v634
      %v636 = vmul.f32 1.0, %v635
      %v637 = vmul.f32 %v636, %v543
      %v638 = vld [vmem:[%s6] sm:$0xff]
      %v639 = vld [vmem:[%s6 + $0x8] sm:$0xff]
      %v640 = vld [vmem:[%s6 + $0x10] sm:$0xff]
      %v641 = vld [vmem:[%s6 + $0x18] sm:$0xff]
      %v642 = vld [vmem:[%s7] sm:$0x1]
      %v644 = vlaneseq
      %v645 = vshrl.u32 %v644, 7
      %v646 = vsub.s32 0, %v645
      %v647 = vrot.slane %v642, %v646
      %v650 = vsel %vm358, %v637, 0
      %652 = vmatprep.subr.mxu0 0.0
      %653 = vmatpush1.msra.mxu0 %v638
      %654 = vmatprep.subr.mxu0 0.0
      %655 = vmatpush1.msra.mxu0 %v639
      %656 = vmatprep.subr.mxu0 0.0
      %657 = vmatpush1.msra.mxu0 %v640
      %658 = vmatprep.subr.mxu0 0.0
      %659 = vmatpush1.msra.mxu0 %v641
      %660 = vmatprep.subr.mxu0 0.0
      %661 = vmatpush1.msra.mxu0 0.0
      %662 = vmatprep.subr.mxu0 0.0
      %663 = vmatpush1.msra.mxu0 0.0
      %664 = vmatprep.subr.mxu0 0.0
      %665 = vmatpush1.msra.mxu0 0.0
      %666 = vmatprep.subr.mxu0 0.0
      %667 = vmatpush1.msra.mxu0 0.0
      %668 = vmatprep.subr.mxu0 0.0
      %669 = vmatpush1.msra.mxu0 0.0
      %670 = vmatprep.subr.mxu0 0.0
      %671 = vmatpush1.msra.mxu0 0.0
      %672 = vmatprep.subr.mxu0 0.0
      %673 = vmatpush1.msra.mxu0 0.0
      %674 = vmatprep.subr.mxu0 0.0
      %675 = vmatpush1.msra.mxu0 0.0
      %676 = vmatprep.subr.mxu0 0.0
      %677 = vmatpush1.msra.mxu0 0.0
      %678 = vmatprep.subr.mxu0 0.0
      %679 = vmatpush1.msra.mxu0 0.0
      %680 = vmatprep.subr.mxu0 0.0
      %681 = vmatpush1.msra.mxu0 0.0
      %682 = vmatprep.subr.mxu0 0.0
      %683 = vmatpush1.msra.mxu0 0.0
      %684 = vmatprep.subr.mxu0 0.0
      %685 = vmatpush1.msra.mxu0 0.0
      %686 = vmatprep.subr.mxu0 0.0
      %687 = vmatpush1.msra.mxu0 0.0
      %688 = vmatprep.subr.mxu0 0.0
      %689 = vmatpush1.msra.mxu0 0.0
      %690 = vmatprep.subr.mxu0 0.0
      %691 = vmatpush1.msra.mxu0 0.0
      %692 = vmatprep.subr.mxu0 0.0
      %693 = vmatpush1.msra.mxu0 0.0
      %694 = vmatprep.subr.mxu0 0.0
      %695 = vmatpush1.msra.mxu0 0.0
      %696 = vmatprep.subr.mxu0 0.0
      %697 = vmatpush1.msra.mxu0 0.0
      %698 = vmatprep.subr.mxu0 0.0
      %699 = vmatpush1.msra.mxu0 0.0
      %700 = vmatprep.subr.mxu0 0.0
      %701 = vmatpush1.msra.mxu0 0.0
      %702 = vmatprep.subr.mxu0 0.0
      %703 = vmatpush1.msra.mxu0 0.0
      %704 = vmatprep.subr.mxu0 0.0
      %705 = vmatpush1.msra.mxu0 0.0
      %706 = vmatprep.subr.mxu0 0.0
      %707 = vmatpush1.msra.mxu0 0.0
      %708 = vmatprep.subr.mxu0 0.0
      %709 = vmatpush1.msra.mxu0 0.0
      %710 = vmatprep.subr.mxu0 0.0
      %711 = vmatpush1.msra.mxu0 0.0
      %712 = vmatprep.subr.mxu0 0.0
      %713 = vmatpush1.msra.mxu0 0.0
      %714 = vmatprep.subr.mxu0 0.0
      %715 = vmatpush1.msra.mxu0 0.0
      %716 = vmatprep.mubr.f32.mxu0 0.0
      %717 = vmatmul.mubr.f32.gmra.mrb[0].mxu0 %v650
      %v718 = vpop.f32.mrb[0].mxu0
      %v719 = vadd.f32 %v647, %v718
      %v720 = vpop.f32.mrb[0].mxu0
      %721 = vdwg.mxu0
      %723 = vrot.lane.b32.xlu0 %v719, 64
      %v724 = vpop.permute.xlu0 %723
      %v726 = vadd.f32 %v546, %v724
      %v727 = vtanh.pop %v726
      %v728 = vmul.f32 %v636, %v540
      %v729 = vsub.f32 1.0, %v636
      %731 = vrot.lane.b32.xlu0 %v727, 96
      %v732 = vpop.permute.xlu0 %731
      %v734 = vmul.f32 %v729, %v732
      %v735 = vadd.f32 %v728, %v734
      %737 = vrot.lane.b32.xlu0 %v735, 96
      %v738 = vpop.permute.xlu0 %737
      %s740 = scalar_lea.vmem [#allocation10], 8
      %741 = vst.msk [vmem:[%s740] sm:$0xff] %vm358, %v738
      %v742 = vld [vmem:[%s275] sm:$0xff]
      %v743 = vld [vmem:[%s4] sm:$0xff]
      %v744 = vld [vmem:[%s4 + $0x8] sm:$0xff]
      %v745 = vld [vmem:[%s4 + $0x10] sm:$0xff]
      %v746 = vld [vmem:[%s4 + $0x18] sm:$0xff]
      %v747 = vld [vmem:[%s5] sm:$0x1]
      %v749 = vlaneseq
      %v750 = vshrl.u32 %v749, 7
      %v751 = vsub.s32 0, %v750
      %v752 = vrot.slane %v747, %v751
      %v754 = vsel %vm358, %v738, 0
      %756 = vmatprep.subr.mxu0 0.0
      %757 = vmatpush1.msra.mxu0 %v743
      %758 = vmatprep.subr.mxu0 0.0
      %759 = vmatpush1.msra.mxu0 %v744
      %760 = vmatprep.subr.mxu0 0.0
      %761 = vmatpush1.msra.mxu0 %v745
      %762 = vmatprep.subr.mxu0 0.0
      %763 = vmatpush1.msra.mxu0 %v746
      %764 = vmatprep.subr.mxu0 0.0
      %765 = vmatpush1.msra.mxu0 0.0
      %766 = vmatprep.subr.mxu0 0.0
      %767 = vmatpush1.msra.mxu0 0.0
      %768 = vmatprep.subr.mxu0 0.0
      %769 = vmatpush1.msra.mxu0 0.0
      %770 = vmatprep.subr.mxu0 0.0
      %771 = vmatpush1.msra.mxu0 0.0
      %772 = vmatprep.subr.mxu0 0.0
      %773 = vmatpush1.msra.mxu0 0.0
      %774 = vmatprep.subr.mxu0 0.0
      %775 = vmatpush1.msra.mxu0 0.0
      %776 = vmatprep.subr.mxu0 0.0
      %777 = vmatpush1.msra.mxu0 0.0
      %778 = vmatprep.subr.mxu0 0.0
      %779 = vmatpush1.msra.mxu0 0.0
      %780 = vmatprep.subr.mxu0 0.0
      %781 = vmatpush1.msra.mxu0 0.0
      %782 = vmatprep.subr.mxu0 0.0
      %783 = vmatpush1.msra.mxu0 0.0
      %784 = vmatprep.subr.mxu0 0.0
      %785 = vmatpush1.msra.mxu0 0.0
      %786 = vmatprep.subr.mxu0 0.0
      %787 = vmatpush1.msra.mxu0 0.0
      %788 = vmatprep.subr.mxu0 0.0
      %789 = vmatpush1.msra.mxu0 0.0
      %790 = vmatprep.subr.mxu0 0.0
      %791 = vmatpush1.msra.mxu0 0.0
      %792 = vmatprep.subr.mxu0 0.0
      %793 = vmatpush1.msra.mxu0 0.0
      %794 = vmatprep.subr.mxu0 0.0
      %795 = vmatpush1.msra.mxu0 0.0
      %796 = vmatprep.subr.mxu0 0.0
      %797 = vmatpush1.msra.mxu0 0.0
      %798 = vmatprep.subr.mxu0 0.0
      %799 = vmatpush1.msra.mxu0 0.0
      %800 = vmatprep.subr.mxu0 0.0
      %801 = vmatpush1.msra.mxu0 0.0
      %802 = vmatprep.subr.mxu0 0.0
      %803 = vmatpush1.msra.mxu0 0.0
      %804 = vmatprep.subr.mxu0 0.0
      %805 = vmatpush1.msra.mxu0 0.0
      %806 = vmatprep.subr.mxu0 0.0
      %807 = vmatpush1.msra.mxu0 0.0
      %808 = vmatprep.subr.mxu0 0.0
      %809 = vmatpush1.msra.mxu0 0.0
      %810 = vmatprep.subr.mxu0 0.0
      %811 = vmatpush1.msra.mxu0 0.0
      %812 = vmatprep.subr.mxu0 0.0
      %813 = vmatpush1.msra.mxu0 0.0
      %814 = vmatprep.subr.mxu0 0.0
      %815 = vmatpush1.msra.mxu0 0.0
      %816 = vmatprep.subr.mxu0 0.0
      %817 = vmatpush1.msra.mxu0 0.0
      %818 = vmatprep.subr.mxu0 0.0
      %819 = vmatpush1.msra.mxu0 0.0
      %820 = vmatprep.mubr.f32.mxu0 0.0
      %821 = vmatmul.mubr.f32.gmra.mrb[0].mxu0 %v754
      %v822 = vpop.f32.mrb[0].mxu0
      %v823 = vadd.f32 %v752, %v822
      %v824 = vpop.f32.mrb[0].mxu0
      %825 = vdwg.mxu0
      %v826 = vadd.f32 %v742, %v823
      %v827 = vxor.u32 %v826, 2147483648
      %v828 = vmul.f32 %v827, 1.442695
      %v829 = vpow.pop %v828
      %v830 = vadd.f32 %v829, 1.0
      %v831 = vrcp.pop %v830
      %v832 = vmul.f32 1.0, %v831
      %v833 = vmul.f32 %v832, %v738
      %v834 = vld [vmem:[%s6] sm:$0xff]
      %v835 = vld [vmem:[%s6 + $0x8] sm:$0xff]
      %v836 = vld [vmem:[%s6 + $0x10] sm:$0xff]
      %v837 = vld [vmem:[%s6 + $0x18] sm:$0xff]
      %v838 = vld [vmem:[%s7] sm:$0x1]
      %v840 = vlaneseq
      %v841 = vshrl.u32 %v840, 7
      %v842 = vsub.s32 0, %v841
      %v843 = vrot.slane %v838, %v842
      %v846 = vsel %vm358, %v833, 0
      %848 = vmatprep.subr.mxu0 0.0
      %849 = vmatpush1.msra.mxu0 %v834
      %850 = vmatprep.subr.mxu0 0.0
      %851 = vmatpush1.msra.mxu0 %v835
      %852 = vmatprep.subr.mxu0 0.0
      %853 = vmatpush1.msra.mxu0 %v836
      %854 = vmatprep.subr.mxu0 0.0
      %855 = vmatpush1.msra.mxu0 %v837
      %856 = vmatprep.subr.mxu0 0.0
      %857 = vmatpush1.msra.mxu0 0.0
      %858 = vmatprep.subr.mxu0 0.0
      %859 = vmatpush1.msra.mxu0 0.0
      %860 = vmatprep.subr.mxu0 0.0
      %861 = vmatpush1.msra.mxu0 0.0
      %862 = vmatprep.subr.mxu0 0.0
      %863 = vmatpush1.msra.mxu0 0.0
      %864 = vmatprep.subr.mxu0 0.0
      %865 = vmatpush1.msra.mxu0 0.0
      %866 = vmatprep.subr.mxu0 0.0
      %867 = vmatpush1.msra.mxu0 0.0
      %868 = vmatprep.subr.mxu0 0.0
      %869 = vmatpush1.msra.mxu0 0.0
      %870 = vmatprep.subr.mxu0 0.0
      %871 = vmatpush1.msra.mxu0 0.0
      %872 = vmatprep.subr.mxu0 0.0
      %873 = vmatpush1.msra.mxu0 0.0
      %874 = vmatprep.subr.mxu0 0.0
      %875 = vmatpush1.msra.mxu0 0.0
      %876 = vmatprep.subr.mxu0 0.0
      %877 = vmatpush1.msra.mxu0 0.0
      %878 = vmatprep.subr.mxu0 0.0
      %879 = vmatpush1.msra.mxu0 0.0
      %880 = vmatprep.subr.mxu0 0.0
      %881 = vmatpush1.msra.mxu0 0.0
      %882 = vmatprep.subr.mxu0 0.0
      %883 = vmatpush1.msra.mxu0 0.0
      %884 = vmatprep.subr.mxu0 0.0
      %885 = vmatpush1.msra.mxu0 0.0
      %886 = vmatprep.subr.mxu0 0.0
      %887 = vmatpush1.msra.mxu0 0.0
      %888 = vmatprep.subr.mxu0 0.0
      %889 = vmatpush1.msra.mxu0 0.0
      %890 = vmatprep.subr.mxu0 0.0
      %891 = vmatpush1.msra.mxu0 0.0
      %892 = vmatprep.subr.mxu0 0.0
      %893 = vmatpush1.msra.mxu0 0.0
      %894 = vmatprep.subr.mxu0 0.0
      %895 = vmatpush1.msra.mxu0 0.0
      %896 = vmatprep.subr.mxu0 0.0
      %897 = vmatpush1.msra.mxu0 0.0
      %898 = vmatprep.subr.mxu0 0.0
      %899 = vmatpush1.msra.mxu0 0.0
      %900 = vmatprep.subr.mxu0 0.0
      %901 = vmatpush1.msra.mxu0 0.0
      %902 = vmatprep.subr.mxu0 0.0
      %903 = vmatpush1.msra.mxu0 0.0
      %904 = vmatprep.subr.mxu0 0.0
      %905 = vmatpush1.msra.mxu0 0.0
      %906 = vmatprep.subr.mxu0 0.0
      %907 = vmatpush1.msra.mxu0 0.0
      %908 = vmatprep.subr.mxu0 0.0
      %909 = vmatpush1.msra.mxu0 0.0
      %910 = vmatprep.subr.mxu0 0.0
      %911 = vmatpush1.msra.mxu0 0.0
      %912 = vmatprep.mubr.f32.mxu0 0.0
      %913 = vmatmul.mubr.f32.gmra.mrb[0].mxu0 %v846
      %v914 = vpop.f32.mrb[0].mxu0
      %v915 = vadd.f32 %v843, %v914
      %v916 = vpop.f32.mrb[0].mxu0
      %917 = vdwg.mxu0
      %919 = vrot.lane.b32.xlu0 %v915, 64
      %v920 = vpop.permute.xlu0 %919
      %v922 = vadd.f32 %v742, %v920
      %v923 = vtanh.pop %v922
      %v924 = vmul.f32 %v832, %v735
      %v925 = vsub.f32 1.0, %v832
      %927 = vrot.lane.b32.xlu0 %v923, 96
      %v928 = vpop.permute.xlu0 %927
      %v930 = vmul.f32 %v925, %v928
      %v931 = vadd.f32 %v924, %v930
      %933 = vrot.lane.b32.xlu0 %v931, 96
      %v934 = vpop.permute.xlu0 %933
      %s936 = scalar_lea.vmem [#allocation10], 16
      %937 = vst.msk [vmem:[%s936] sm:$0xff] %vm358, %v934
      %v938 = vld [vmem:[%s288] sm:$0xff]
      %v939 = vld [vmem:[%s4] sm:$0xff]
      %v940 = vld [vmem:[%s4 + $0x8] sm:$0xff]
      %v941 = vld [vmem:[%s4 + $0x10] sm:$0xff]
      %v942 = vld [vmem:[%s4 + $0x18] sm:$0xff]
      %v943 = vld [vmem:[%s5] sm:$0x1]
      %v945 = vlaneseq
      %v946 = vshrl.u32 %v945, 7
      %v947 = vsub.s32 0, %v946
      %v948 = vrot.slane %v943, %v947
      %v950 = vsel %vm358, %v934, 0
      %952 = vmatprep.subr.mxu0 0.0
      %953 = vmatpush1.msra.mxu0 %v939
      %954 = vmatprep.subr.mxu0 0.0
      %955 = vmatpush1.msra.mxu0 %v940
      %956 = vmatprep.subr.mxu0 0.0
      %957 = vmatpush1.msra.mxu0 %v941
      %958 = vmatprep.subr.mxu0 0.0
      %959 = vmatpush1.msra.mxu0 %v942
      %960 = vmatprep.subr.mxu0 0.0
      %961 = vmatpush1.msra.mxu0 0.0
      %962 = vmatprep.subr.mxu0 0.0
      %963 = vmatpush1.msra.mxu0 0.0
      %964 = vmatprep.subr.mxu0 0.0
      %965 = vmatpush1.msra.mxu0 0.0
      %966 = vmatprep.subr.mxu0 0.0
      %967 = vmatpush1.msra.mxu0 0.0
      %968 = vmatprep.subr.mxu0 0.0
      %969 = vmatpush1.msra.mxu0 0.0
      %970 = vmatprep.subr.mxu0 0.0
      %971 = vmatpush1.msra.mxu0 0.0
      %972 = vmatprep.subr.mxu0 0.0
      %973 = vmatpush1.msra.mxu0 0.0
      %974 = vmatprep.subr.mxu0 0.0
      %975 = vmatpush1.msra.mxu0 0.0
      %976 = vmatprep.subr.mxu0 0.0
      %977 = vmatpush1.msra.mxu0 0.0
      %978 = vmatprep.subr.mxu0 0.0
      %979 = vmatpush1.msra.mxu0 0.0
      %980 = vmatprep.subr.mxu0 0.0
      %981 = vmatpush1.msra.mxu0 0.0
      %982 = vmatprep.subr.mxu0 0.0
      %983 = vmatpush1.msra.mxu0 0.0
      %984 = vmatprep.subr.mxu0 0.0
      %985 = vmatpush1.msra.mxu0 0.0
      %986 = vmatprep.subr.mxu0 0.0
      %987 = vmatpush1.msra.mxu0 0.0
      %988 = vmatprep.subr.mxu0 0.0
      %989 = vmatpush1.msra.mxu0 0.0
      %990 = vmatprep.subr.mxu0 0.0
      %991 = vmatpush1.msra.mxu0 0.0
      %992 = vmatprep.subr.mxu0 0.0
      %993 = vmatpush1.msra.mxu0 0.0
      %994 = vmatprep.subr.mxu0 0.0
      %995 = vmatpush1.msra.mxu0 0.0
      %996 = vmatprep.subr.mxu0 0.0
      %997 = vmatpush1.msra.mxu0 0.0
      %998 = vmatprep.subr.mxu0 0.0
      %999 = vmatpush1.msra.mxu0 0.0
      %1000 = vmatprep.subr.mxu0 0.0
      %1001 = vmatpush1.msra.mxu0 0.0
      %1002 = vmatprep.subr.mxu0 0.0
      %1003 = vmatpush1.msra.mxu0 0.0
      %1004 = vmatprep.subr.mxu0 0.0
      %1005 = vmatpush1.msra.mxu0 0.0
      %1006 = vmatprep.subr.mxu0 0.0
      %1007 = vmatpush1.msra.mxu0 0.0
      %1008 = vmatprep.subr.mxu0 0.0
      %1009 = vmatpush1.msra.mxu0 0.0
      %1010 = vmatprep.subr.mxu0 0.0
      %1011 = vmatpush1.msra.mxu0 0.0
      %1012 = vmatprep.subr.mxu0 0.0
      %1013 = vmatpush1.msra.mxu0 0.0
      %1014 = vmatprep.subr.mxu0 0.0
      %1015 = vmatpush1.msra.mxu0 0.0
      %1016 = vmatprep.mubr.f32.mxu0 0.0
      %1017 = vmatmul.mubr.f32.gmra.mrb[0].mxu0 %v950
      %v1018 = vpop.f32.mrb[0].mxu0
      %v1019 = vadd.f32 %v948, %v1018
      %v1020 = vpop.f32.mrb[0].mxu0
      %1021 = vdwg.mxu0
      %v1022 = vadd.f32 %v938, %v1019
      %v1023 = vxor.u32 %v1022, 2147483648
      %v1024 = vmul.f32 %v1023, 1.442695
      %v1025 = vpow.pop %v1024
      %v1026 = vadd.f32 %v1025, 1.0
      %v1027 = vrcp.pop %v1026
      %v1028 = vmul.f32 1.0, %v1027
      %v1029 = vmul.f32 %v1028, %v934
      %v1030 = vld [vmem:[%s6] sm:$0xff]
      %v1031 = vld [vmem:[%s6 + $0x8] sm:$0xff]
      %v1032 = vld [vmem:[%s6 + $0x10] sm:$0xff]
      %v1033 = vld [vmem:[%s6 + $0x18] sm:$0xff]
      %v1034 = vld [vmem:[%s7] sm:$0x1]
      %v1036 = vlaneseq
      %v1037 = vshrl.u32 %v1036, 7
      %v1038 = vsub.s32 0, %v1037
      %v1039 = vrot.slane %v1034, %v1038
      %v1042 = vsel %vm358, %v1029, 0
      %1044 = vmatprep.subr.mxu0 0.0
      %1045 = vmatpush1.msra.mxu0 %v1030
      %1046 = vmatprep.subr.mxu0 0.0
      %1047 = vmatpush1.msra.mxu0 %v1031
      %1048 = vmatprep.subr.mxu0 0.0
      %1049 = vmatpush1.msra.mxu0 %v1032
      %1050 = vmatprep.subr.mxu0 0.0
      %1051 = vmatpush1.msra.mxu0 %v1033
      %1052 = vmatprep.subr.mxu0 0.0
      %1053 = vmatpush1.msra.mxu0 0.0
      %1054 = vmatprep.subr.mxu0 0.0
      %1055 = vmatpush1.msra.mxu0 0.0
      %1056 = vmatprep.subr.mxu0 0.0
      %1057 = vmatpush1.msra.mxu0 0.0
      %1058 = vmatprep.subr.mxu0 0.0
      %1059 = vmatpush1.msra.mxu0 0.0
      %1060 = vmatprep.subr.mxu0 0.0
      %1061 = vmatpush1.msra.mxu0 0.0
      %1062 = vmatprep.subr.mxu0 0.0
      %1063 = vmatpush1.msra.mxu0 0.0
      %1064 = vmatprep.subr.mxu0 0.0
      %1065 = vmatpush1.msra.mxu0 0.0
      %1066 = vmatprep.subr.mxu0 0.0
      %1067 = vmatpush1.msra.mxu0 0.0
      %1068 = vmatprep.subr.mxu0 0.0
      %1069 = vmatpush1.msra.mxu0 0.0
      %1070 = vmatprep.subr.mxu0 0.0
      %1071 = vmatpush1.msra.mxu0 0.0
      %1072 = vmatprep.subr.mxu0 0.0
      %1073 = vmatpush1.msra.mxu0 0.0
      %1074 = vmatprep.subr.mxu0 0.0
      %1075 = vmatpush1.msra.mxu0 0.0
      %1076 = vmatprep.subr.mxu0 0.0
      %1077 = vmatpush1.msra.mxu0 0.0
      %1078 = vmatprep.subr.mxu0 0.0
      %1079 = vmatpush1.msra.mxu0 0.0
      %1080 = vmatprep.subr.mxu0 0.0
      %1081 = vmatpush1.msra.mxu0 0.0
      %1082 = vmatprep.subr.mxu0 0.0
      %1083 = vmatpush1.msra.mxu0 0.0
      %1084 = vmatprep.subr.mxu0 0.0
      %1085 = vmatpush1.msra.mxu0 0.0
      %1086 = vmatprep.subr.mxu0 0.0
      %1087 = vmatpush1.msra.mxu0 0.0
      %1088 = vmatprep.subr.mxu0 0.0
      %1089 = vmatpush1.msra.mxu0 0.0
      %1090 = vmatprep.subr.mxu0 0.0
      %1091 = vmatpush1.msra.mxu0 0.0
      %1092 = vmatprep.subr.mxu0 0.0
      %1093 = vmatpush1.msra.mxu0 0.0
      %1094 = vmatprep.subr.mxu0 0.0
      %1095 = vmatpush1.msra.mxu0 0.0
      %1096 = vmatprep.subr.mxu0 0.0
      %1097 = vmatpush1.msra.mxu0 0.0
      %1098 = vmatprep.subr.mxu0 0.0
      %1099 = vmatpush1.msra.mxu0 0.0
      %1100 = vmatprep.subr.mxu0 0.0
      %1101 = vmatpush1.msra.mxu0 0.0
      %1102 = vmatprep.subr.mxu0 0.0
      %1103 = vmatpush1.msra.mxu0 0.0
      %1104 = vmatprep.subr.mxu0 0.0
      %1105 = vmatpush1.msra.mxu0 0.0
      %1106 = vmatprep.subr.mxu0 0.0
      %1107 = vmatpush1.msra.mxu0 0.0
      %1108 = vmatprep.mubr.f32.mxu0 0.0
      %1109 = vmatmul.mubr.f32.gmra.mrb[0].mxu0 %v1042
      %v1110 = vpop.f32.mrb[0].mxu0
      %v1111 = vadd.f32 %v1039, %v1110
      %v1112 = vpop.f32.mrb[0].mxu0
      %1113 = vdwg.mxu0
      %1115 = vrot.lane.b32.xlu0 %v1111, 64
      %v1116 = vpop.permute.xlu0 %1115
      %v1118 = vadd.f32 %v938, %v1116
      %v1119 = vtanh.pop %v1118
      %v1120 = vmul.f32 %v1028, %v931
      %v1121 = vsub.f32 1.0, %v1028
      %1123 = vrot.lane.b32.xlu0 %v1119, 96
      %v1124 = vpop.permute.xlu0 %1123
      %v1126 = vmul.f32 %v1121, %v1124
      %v1127 = vadd.f32 %v1120, %v1126
      %1129 = vrot.lane.b32.xlu0 %v1127, 96
      %v1130 = vpop.permute.xlu0 %1129
      %s1132 = scalar_lea.vmem [#allocation10], 24
      %1133 = vst.msk [vmem:[%s1132] sm:$0xff] %vm358, %v1130
      %v1134 = vld [vmem:[%s301] sm:$0xff]
      %v1135 = vld [vmem:[%s4] sm:$0xff]
      %v1136 = vld [vmem:[%s4 + $0x8] sm:$0xff]
      %v1137 = vld [vmem:[%s4 + $0x10] sm:$0xff]
      %v1138 = vld [vmem:[%s4 + $0x18] sm:$0xff]
      %v1139 = vld [vmem:[%s5] sm:$0x1]
      %v1141 = vlaneseq
      %v1142 = vshrl.u32 %v1141, 7
      %v1143 = vsub.s32 0, %v1142
      %v1144 = vrot.slane %v1139, %v1143
      %v1146 = vsel %vm358, %v1130, 0
      %1148 = vmatprep.subr.mxu0 0.0
      %1149 = vmatpush1.msra.mxu0 %v1135
      %1150 = vmatprep.subr.mxu0 0.0
      %1151 = vmatpush1.msra.mxu0 %v1136
      %1152 = vmatprep.subr.mxu0 0.0
      %1153 = vmatpush1.msra.mxu0 %v1137
      %1154 = vmatprep.subr.mxu0 0.0
      %1155 = vmatpush1.msra.mxu0 %v1138
      %1156 = vmatprep.subr.mxu0 0.0
      %1157 = vmatpush1.msra.mxu0 0.0
      %1158 = vmatprep.subr.mxu0 0.0
      %1159 = vmatpush1.msra.mxu0 0.0
      %1160 = vmatprep.subr.mxu0 0.0
      %1161 = vmatpush1.msra.mxu0 0.0
      %1162 = vmatprep.subr.mxu0 0.0
      %1163 = vmatpush1.msra.mxu0 0.0
      %1164 = vmatprep.subr.mxu0 0.0
      %1165 = vmatpush1.msra.mxu0 0.0
      %1166 = vmatprep.subr.mxu0 0.0
      %1167 = vmatpush1.msra.mxu0 0.0
      %1168 = vmatprep.subr.mxu0 0.0
      %1169 = vmatpush1.msra.mxu0 0.0
      %1170 = vmatprep.subr.mxu0 0.0
      %1171 = vmatpush1.msra.mxu0 0.0
      %1172 = vmatprep.subr.mxu0 0.0
      %1173 = vmatpush1.msra.mxu0 0.0
      %1174 = vmatprep.subr.mxu0 0.0
      %1175 = vmatpush1.msra.mxu0 0.0
      %1176 = vmatprep.subr.mxu0 0.0
      %1177 = vmatpush1.msra.mxu0 0.0
      %1178 = vmatprep.subr.mxu0 0.0
      %1179 = vmatpush1.msra.mxu0 0.0
      %1180 = vmatprep.subr.mxu0 0.0
      %1181 = vmatpush1.msra.mxu0 0.0
      %1182 = vmatprep.subr.mxu0 0.0
      %1183 = vmatpush1.msra.mxu0 0.0
      %1184 = vmatprep.subr.mxu0 0.0
      %1185 = vmatpush1.msra.mxu0 0.0
      %1186 = vmatprep.subr.mxu0 0.0
      %1187 = vmatpush1.msra.mxu0 0.0
      %1188 = vmatprep.subr.mxu0 0.0
      %1189 = vmatpush1.msra.mxu0 0.0
      %1190 = vmatprep.subr.mxu0 0.0
      %1191 = vmatpush1.msra.mxu0 0.0
      %1192 = vmatprep.subr.mxu0 0.0
      %1193 = vmatpush1.msra.mxu0 0.0
      %1194 = vmatprep.subr.mxu0 0.0
      %1195 = vmatpush1.msra.mxu0 0.0
      %1196 = vmatprep.subr.mxu0 0.0
      %1197 = vmatpush1.msra.mxu0 0.0
      %1198 = vmatprep.subr.mxu0 0.0
      %1199 = vmatpush1.msra.mxu0 0.0
      %1200 = vmatprep.subr.mxu0 0.0
      %1201 = vmatpush1.msra.mxu0 0.0
      %1202 = vmatprep.subr.mxu0 0.0
      %1203 = vmatpush1.msra.mxu0 0.0
      %1204 = vmatprep.subr.mxu0 0.0
      %1205 = vmatpush1.msra.mxu0 0.0
      %1206 = vmatprep.subr.mxu0 0.0
      %1207 = vmatpush1.msra.mxu0 0.0
      %1208 = vmatprep.subr.mxu0 0.0
      %1209 = vmatpush1.msra.mxu0 0.0
      %1210 = vmatprep.subr.mxu0 0.0
      %1211 = vmatpush1.msra.mxu0 0.0
      %1212 = vmatprep.mubr.f32.mxu0 0.0
      %1213 = vmatmul.mubr.f32.gmra.mrb[0].mxu0 %v1146
      %v1214 = vpop.f32.mrb[0].mxu0
      %v1215 = vadd.f32 %v1144, %v1214
      %v1216 = vpop.f32.mrb[0].mxu0
      %1217 = vdwg.mxu0
      %v1218 = vadd.f32 %v1134, %v1215
      %v1219 = vxor.u32 %v1218, 2147483648
      %v1220 = vmul.f32 %v1219, 1.442695
      %v1221 = vpow.pop %v1220
      %v1222 = vadd.f32 %v1221, 1.0
      %v1223 = vrcp.pop %v1222
      %v1224 = vmul.f32 1.0, %v1223
      %v1225 = vmul.f32 %v1224, %v1130
      %v1226 = vld [vmem:[%s6] sm:$0xff]
      %v1227 = vld [vmem:[%s6 + $0x8] sm:$0xff]
      %v1228 = vld [vmem:[%s6 + $0x10] sm:$0xff]
      %v1229 = vld [vmem:[%s6 + $0x18] sm:$0xff]
      %v1230 = vld [vmem:[%s7] sm:$0x1]
      %v1232 = vlaneseq
      %v1233 = vshrl.u32 %v1232, 7
      %v1234 = vsub.s32 0, %v1233
      %v1235 = vrot.slane %v1230, %v1234
      %v1238 = vsel %vm358, %v1225, 0
      %1240 = vmatprep.subr.mxu0 0.0
      %1241 = vmatpush1.msra.mxu0 %v1226
      %1242 = vmatprep.subr.mxu0 0.0
      %1243 = vmatpush1.msra.mxu0 %v1227
      %1244 = vmatprep.subr.mxu0 0.0
      %1245 = vmatpush1.msra.mxu0 %v1228
      %1246 = vmatprep.subr.mxu0 0.0
      %1247 = vmatpush1.msra.mxu0 %v1229
      %1248 = vmatprep.subr.mxu0 0.0
      %1249 = vmatpush1.msra.mxu0 0.0
      %1250 = vmatprep.subr.mxu0 0.0
      %1251 = vmatpush1.msra.mxu0 0.0
      %1252 = vmatprep.subr.mxu0 0.0
      %1253 = vmatpush1.msra.mxu0 0.0
      %1254 = vmatprep.subr.mxu0 0.0
      %1255 = vmatpush1.msra.mxu0 0.0
      %1256 = vmatprep.subr.mxu0 0.0
      %1257 = vmatpush1.msra.mxu0 0.0
      %1258 = vmatprep.subr.mxu0 0.0
      %1259 = vmatpush1.msra.mxu0 0.0
      %1260 = vmatprep.subr.mxu0 0.0
      %1261 = vmatpush1.msra.mxu0 0.0
      %1262 = vmatprep.subr.mxu0 0.0
      %1263 = vmatpush1.msra.mxu0 0.0
      %1264 = vmatprep.subr.mxu0 0.0
      %1265 = vmatpush1.msra.mxu0 0.0
      %1266 = vmatprep.subr.mxu0 0.0
      %1267 = vmatpush1.msra.mxu0 0.0
      %1268 = vmatprep.subr.mxu0 0.0
      %1269 = vmatpush1.msra.mxu0 0.0
      %1270 = vmatprep.subr.mxu0 0.0
      %1271 = vmatpush1.msra.mxu0 0.0
      %1272 = vmatprep.subr.mxu0 0.0
      %1273 = vmatpush1.msra.mxu0 0.0
      %1274 = vmatprep.subr.mxu0 0.0
      %1275 = vmatpush1.msra.mxu0 0.0
      %1276 = vmatprep.subr.mxu0 0.0
      %1277 = vmatpush1.msra.mxu0 0.0
      %1278 = vmatprep.subr.mxu0 0.0
      %1279 = vmatpush1.msra.mxu0 0.0
      %1280 = vmatprep.subr.mxu0 0.0
      %1281 = vmatpush1.msra.mxu0 0.0
      %1282 = vmatprep.subr.mxu0 0.0
      %1283 = vmatpush1.msra.mxu0 0.0
      %1284 = vmatprep.subr.mxu0 0.0
      %1285 = vmatpush1.msra.mxu0 0.0
      %1286 = vmatprep.subr.mxu0 0.0
      %1287 = vmatpush1.msra.mxu0 0.0
      %1288 = vmatprep.subr.mxu0 0.0
      %1289 = vmatpush1.msra.mxu0 0.0
      %1290 = vmatprep.subr.mxu0 0.0
      %1291 = vmatpush1.msra.mxu0 0.0
      %1292 = vmatprep.subr.mxu0 0.0
      %1293 = vmatpush1.msra.mxu0 0.0
      %1294 = vmatprep.subr.mxu0 0.0
      %1295 = vmatpush1.msra.mxu0 0.0
      %1296 = vmatprep.subr.mxu0 0.0
      %1297 = vmatpush1.msra.mxu0 0.0
      %1298 = vmatprep.subr.mxu0 0.0
      %1299 = vmatpush1.msra.mxu0 0.0
      %1300 = vmatprep.subr.mxu0 0.0
      %1301 = vmatpush1.msra.mxu0 0.0
      %1302 = vmatprep.subr.mxu0 0.0
      %1303 = vmatpush1.msra.mxu0 0.0
      %1304 = vmatprep.mubr.f32.mxu0 0.0
      %1305 = vmatmul.mubr.f32.gmra.mrb[0].mxu0 %v1238
      %v1306 = vpop.f32.mrb[0].mxu0
      %v1307 = vadd.f32 %v1235, %v1306
      %v1308 = vpop.f32.mrb[0].mxu0
      %1309 = vdwg.mxu0
      %1311 = vrot.lane.b32.xlu0 %v1307, 64
      %v1312 = vpop.permute.xlu0 %1311
      %v1314 = vadd.f32 %v1134, %v1312
      %v1315 = vtanh.pop %v1314
      %v1316 = vmul.f32 %v1224, %v1127
      %v1317 = vsub.f32 1.0, %v1224
      %1319 = vrot.lane.b32.xlu0 %v1315, 96
      %v1320 = vpop.permute.xlu0 %1319
      %v1322 = vmul.f32 %v1317, %v1320
      %v1323 = vadd.f32 %v1316, %v1322
      %1325 = vrot.lane.b32.xlu0 %v1323, 96
      %v1326 = vpop.permute.xlu0 %1325
      %s1328 = scalar_lea.vmem [#allocation10], 32
      %1329 = vst.msk [vmem:[%s1328] sm:$0xff] %vm358, %v1326
      %v1330 = vld [vmem:[%s314] sm:$0xff]
      %v1331 = vld [vmem:[%s4] sm:$0xff]
      %v1332 = vld [vmem:[%s4 + $0x8] sm:$0xff]
      %v1333 = vld [vmem:[%s4 + $0x10] sm:$0xff]
      %v1334 = vld [vmem:[%s4 + $0x18] sm:$0xff]
      %v1335 = vld [vmem:[%s5] sm:$0x1]
      %v1337 = vlaneseq
      %v1338 = vshrl.u32 %v1337, 7
      %v1339 = vsub.s32 0, %v1338
      %v1340 = vrot.slane %v1335, %v1339
      %v1342 = vsel %vm358, %v1326, 0
      %1344 = vmatprep.subr.mxu0 0.0
      %1345 = vmatpush1.msra.mxu0 %v1331
      %1346 = vmatprep.subr.mxu0 0.0
      %1347 = vmatpush1.msra.mxu0 %v1332
      %1348 = vmatprep.subr.mxu0 0.0
      %1349 = vmatpush1.msra.mxu0 %v1333
      %1350 = vmatprep.subr.mxu0 0.0
      %1351 = vmatpush1.msra.mxu0 %v1334
      %1352 = vmatprep.subr.mxu0 0.0
      %1353 = vmatpush1.msra.mxu0 0.0
      %1354 = vmatprep.subr.mxu0 0.0
      %1355 = vmatpush1.msra.mxu0 0.0
      %1356 = vmatprep.subr.mxu0 0.0
      %1357 = vmatpush1.msra.mxu0 0.0
      %1358 = vmatprep.subr.mxu0 0.0
      %1359 = vmatpush1.msra.mxu0 0.0
      %1360 = vmatprep.subr.mxu0 0.0
      %1361 = vmatpush1.msra.mxu0 0.0
      %1362 = vmatprep.subr.mxu0 0.0
      %1363 = vmatpush1.msra.mxu0 0.0
      %1364 = vmatprep.subr.mxu0 0.0
      %1365 = vmatpush1.msra.mxu0 0.0
      %1366 = vmatprep.subr.mxu0 0.0
      %1367 = vmatpush1.msra.mxu0 0.0
      %1368 = vmatprep.subr.mxu0 0.0
      %1369 = vmatpush1.msra.mxu0 0.0
      %1370 = vmatprep.subr.mxu0 0.0
      %1371 = vmatpush1.msra.mxu0 0.0
      %1372 = vmatprep.subr.mxu0 0.0
      %1373 = vmatpush1.msra.mxu0 0.0
      %1374 = vmatprep.subr.mxu0 0.0
      %1375 = vmatpush1.msra.mxu0 0.0
      %1376 = vmatprep.subr.mxu0 0.0
      %1377 = vmatpush1.msra.mxu0 0.0
      %1378 = vmatprep.subr.mxu0 0.0
      %1379 = vmatpush1.msra.mxu0 0.0
      %1380 = vmatprep.subr.mxu0 0.0
      %1381 = vmatpush1.msra.mxu0 0.0
      %1382 = vmatprep.subr.mxu0 0.0
      %1383 = vmatpush1.msra.mxu0 0.0
      %1384 = vmatprep.subr.mxu0 0.0
      %1385 = vmatpush1.msra.mxu0 0.0
      %1386 = vmatprep.subr.mxu0 0.0
      %1387 = vmatpush1.msra.mxu0 0.0
      %1388 = vmatprep.subr.mxu0 0.0
      %1389 = vmatpush1.msra.mxu0 0.0
      %1390 = vmatprep.subr.mxu0 0.0
      %1391 = vmatpush1.msra.mxu0 0.0
      %1392 = vmatprep.subr.mxu0 0.0
      %1393 = vmatpush1.msra.mxu0 0.0
      %1394 = vmatprep.subr.mxu0 0.0
      %1395 = vmatpush1.msra.mxu0 0.0
      %1396 = vmatprep.subr.mxu0 0.0
      %1397 = vmatpush1.msra.mxu0 0.0
      %1398 = vmatprep.subr.mxu0 0.0
      %1399 = vmatpush1.msra.mxu0 0.0
      %1400 = vmatprep.subr.mxu0 0.0
      %1401 = vmatpush1.msra.mxu0 0.0
      %1402 = vmatprep.subr.mxu0 0.0
      %1403 = vmatpush1.msra.mxu0 0.0
      %1404 = vmatprep.subr.mxu0 0.0
      %1405 = vmatpush1.msra.mxu0 0.0
      %1406 = vmatprep.subr.mxu0 0.0
      %1407 = vmatpush1.msra.mxu0 0.0
      %1408 = vmatprep.mubr.f32.mxu0 0.0
      %1409 = vmatmul.mubr.f32.gmra.mrb[0].mxu0 %v1342
      %v1410 = vpop.f32.mrb[0].mxu0
      %v1411 = vadd.f32 %v1340, %v1410
      %v1412 = vpop.f32.mrb[0].mxu0
      %1413 = vdwg.mxu0
      %v1414 = vadd.f32 %v1330, %v1411
      %v1415 = vxor.u32 %v1414, 2147483648
      %v1416 = vmul.f32 %v1415, 1.442695
      %v1417 = vpow.pop %v1416
      %v1418 = vadd.f32 %v1417, 1.0
      %v1419 = vrcp.pop %v1418
      %v1420 = vmul.f32 1.0, %v1419
      %v1421 = vmul.f32 %v1420, %v1326
      %v1422 = vld [vmem:[%s6] sm:$0xff]
      %v1423 = vld [vmem:[%s6 + $0x8] sm:$0xff]
      %v1424 = vld [vmem:[%s6 + $0x10] sm:$0xff]
      %v1425 = vld [vmem:[%s6 + $0x18] sm:$0xff]
      %v1426 = vld [vmem:[%s7] sm:$0x1]
      %v1428 = vlaneseq
      %v1429 = vshrl.u32 %v1428, 7
      %v1430 = vsub.s32 0, %v1429
      %v1431 = vrot.slane %v1426, %v1430
      %v1434 = vsel %vm358, %v1421, 0
      %1436 = vmatprep.subr.mxu0 0.0
      %1437 = vmatpush1.msra.mxu0 %v1422
      %1438 = vmatprep.subr.mxu0 0.0
      %1439 = vmatpush1.msra.mxu0 %v1423
      %1440 = vmatprep.subr.mxu0 0.0
      %1441 = vmatpush1.msra.mxu0 %v1424
      %1442 = vmatprep.subr.mxu0 0.0
      %1443 = vmatpush1.msra.mxu0 %v1425
      %1444 = vmatprep.subr.mxu0 0.0
      %1445 = vmatpush1.msra.mxu0 0.0
      %1446 = vmatprep.subr.mxu0 0.0
      %1447 = vmatpush1.msra.mxu0 0.0
      %1448 = vmatprep.subr.mxu0 0.0
      %1449 = vmatpush1.msra.mxu0 0.0
      %1450 = vmatprep.subr.mxu0 0.0
      %1451 = vmatpush1.msra.mxu0 0.0
      %1452 = vmatprep.subr.mxu0 0.0
      %1453 = vmatpush1.msra.mxu0 0.0
      %1454 = vmatprep.subr.mxu0 0.0
      %1455 = vmatpush1.msra.mxu0 0.0
      %1456 = vmatprep.subr.mxu0 0.0
      %1457 = vmatpush1.msra.mxu0 0.0
      %1458 = vmatprep.subr.mxu0 0.0
      %1459 = vmatpush1.msra.mxu0 0.0
      %1460 = vmatprep.subr.mxu0 0.0
      %1461 = vmatpush1.msra.mxu0 0.0
      %1462 = vmatprep.subr.mxu0 0.0
      %1463 = vmatpush1.msra.mxu0 0.0
      %1464 = vmatprep.subr.mxu0 0.0
      %1465 = vmatpush1.msra.mxu0 0.0
      %1466 = vmatprep.subr.mxu0 0.0
      %1467 = vmatpush1.msra.mxu0 0.0
      %1468 = vmatprep.subr.mxu0 0.0
      %1469 = vmatpush1.msra.mxu0 0.0
      %1470 = vmatprep.subr.mxu0 0.0
      %1471 = vmatpush1.msra.mxu0 0.0
      %1472 = vmatprep.subr.mxu0 0.0
      %1473 = vmatpush1.msra.mxu0 0.0
      %1474 = vmatprep.subr.mxu0 0.0
      %1475 = vmatpush1.msra.mxu0 0.0
      %1476 = vmatprep.subr.mxu0 0.0
      %1477 = vmatpush1.msra.mxu0 0.0
      %1478 = vmatprep.subr.mxu0 0.0
      %1479 = vmatpush1.msra.mxu0 0.0
      %1480 = vmatprep.subr.mxu0 0.0
      %1481 = vmatpush1.msra.mxu0 0.0
      %1482 = vmatprep.subr.mxu0 0.0
      %1483 = vmatpush1.msra.mxu0 0.0
      %1484 = vmatprep.subr.mxu0 0.0
      %1485 = vmatpush1.msra.mxu0 0.0
      %1486 = vmatprep.subr.mxu0 0.0
      %1487 = vmatpush1.msra.mxu0 0.0
      %1488 = vmatprep.subr.mxu0 0.0
      %1489 = vmatpush1.msra.mxu0 0.0
      %1490 = vmatprep.subr.mxu0 0.0
      %1491 = vmatpush1.msra.mxu0 0.0
      %1492 = vmatprep.subr.mxu0 0.0
      %1493 = vmatpush1.msra.mxu0 0.0
      %1494 = vmatprep.subr.mxu0 0.0
      %1495 = vmatpush1.msra.mxu0 0.0
      %1496 = vmatprep.subr.mxu0 0.0
      %1497 = vmatpush1.msra.mxu0 0.0
      %1498 = vmatprep.subr.mxu0 0.0
      %1499 = vmatpush1.msra.mxu0 0.0
      %1500 = vmatprep.mubr.f32.mxu0 0.0
      %1501 = vmatmul.mubr.f32.gmra.mrb[0].mxu0 %v1434
      %v1502 = vpop.f32.mrb[0].mxu0
      %v1503 = vadd.f32 %v1431, %v1502
      %v1504 = vpop.f32.mrb[0].mxu0
      %1505 = vdwg.mxu0
      %1507 = vrot.lane.b32.xlu0 %v1503, 64
      %v1508 = vpop.permute.xlu0 %1507
      %v1510 = vadd.f32 %v1330, %v1508
      %v1511 = vtanh.pop %v1510
      %v1512 = vmul.f32 %v1420, %v1323
      %v1513 = vsub.f32 1.0, %v1420
      %1515 = vrot.lane.b32.xlu0 %v1511, 96
      %v1516 = vpop.permute.xlu0 %1515
      %v1518 = vmul.f32 %v1513, %v1516
      %v1519 = vadd.f32 %v1512, %v1518
      %1521 = vrot.lane.b32.xlu0 %v1519, 96
      %v1522 = vpop.permute.xlu0 %1521
      %s1524 = scalar_lea.vmem [#allocation10], 40
      %1525 = vst.msk [vmem:[%s1524] sm:$0xff] %vm358, %v1522
      %v1526 = vld [vmem:[%s327] sm:$0xff]
      %v1527 = vld [vmem:[%s4] sm:$0xff]
      %v1528 = vld [vmem:[%s4 + $0x8] sm:$0xff]
      %v1529 = vld [vmem:[%s4 + $0x10] sm:$0xff]
      %v1530 = vld [vmem:[%s4 + $0x18] sm:$0xff]
      %v1531 = vld [vmem:[%s5] sm:$0x1]
      %v1533 = vlaneseq
      %v1534 = vshrl.u32 %v1533, 7
      %v1535 = vsub.s32 0, %v1534
      %v1536 = vrot.slane %v1531, %v1535
      %v1538 = vsel %vm358, %v1522, 0
      %1540 = vmatprep.subr.mxu0 0.0
      %1541 = vmatpush1.msra.mxu0 %v1527
      %1542 = vmatprep.subr.mxu0 0.0
      %1543 = vmatpush1.msra.mxu0 %v1528
      %1544 = vmatprep.subr.mxu0 0.0
      %1545 = vmatpush1.msra.mxu0 %v1529
      %1546 = vmatprep.subr.mxu0 0.0
      %1547 = vmatpush1.msra.mxu0 %v1530
      %1548 = vmatprep.subr.mxu0 0.0
      %1549 = vmatpush1.msra.mxu0 0.0
      %1550 = vmatprep.subr.mxu0 0.0
      %1551 = vmatpush1.msra.mxu0 0.0
      %1552 = vmatprep.subr.mxu0 0.0
      %1553 = vmatpush1.msra.mxu0 0.0
      %1554 = vmatprep.subr.mxu0 0.0
      %1555 = vmatpush1.msra.mxu0 0.0
      %1556 = vmatprep.subr.mxu0 0.0
      %1557 = vmatpush1.msra.mxu0 0.0
      %1558 = vmatprep.subr.mxu0 0.0
      %1559 = vmatpush1.msra.mxu0 0.0
      %1560 = vmatprep.subr.mxu0 0.0
      %1561 = vmatpush1.msra.mxu0 0.0
      %1562 = vmatprep.subr.mxu0 0.0
      %1563 = vmatpush1.msra.mxu0 0.0
      %1564 = vmatprep.subr.mxu0 0.0
      %1565 = vmatpush1.msra.mxu0 0.0
      %1566 = vmatprep.subr.mxu0 0.0
      %1567 = vmatpush1.msra.mxu0 0.0
      %1568 = vmatprep.subr.mxu0 0.0
      %1569 = vmatpush1.msra.mxu0 0.0
      %1570 = vmatprep.subr.mxu0 0.0
      %1571 = vmatpush1.msra.mxu0 0.0
      %1572 = vmatprep.subr.mxu0 0.0
      %1573 = vmatpush1.msra.mxu0 0.0
      %1574 = vmatprep.subr.mxu0 0.0
      %1575 = vmatpush1.msra.mxu0 0.0
      %1576 = vmatprep.subr.mxu0 0.0
      %1577 = vmatpush1.msra.mxu0 0.0
      %1578 = vmatprep.subr.mxu0 0.0
      %1579 = vmatpush1.msra.mxu0 0.0
      %1580 = vmatprep.subr.mxu0 0.0
      %1581 = vmatpush1.msra.mxu0 0.0
      %1582 = vmatprep.subr.mxu0 0.0
      %1583 = vmatpush1.msra.mxu0 0.0
      %1584 = vmatprep.subr.mxu0 0.0
      %1585 = vmatpush1.msra.mxu0 0.0
      %1586 = vmatprep.subr.mxu0 0.0
      %1587 = vmatpush1.msra.mxu0 0.0
      %1588 = vmatprep.subr.mxu0 0.0
      %1589 = vmatpush1.msra.mxu0 0.0
      %1590 = vmatprep.subr.mxu0 0.0
      %1591 = vmatpush1.msra.mxu0 0.0
      %1592 = vmatprep.subr.mxu0 0.0
      %1593 = vmatpush1.msra.mxu0 0.0
      %1594 = vmatprep.subr.mxu0 0.0
      %1595 = vmatpush1.msra.mxu0 0.0
      %1596 = vmatprep.subr.mxu0 0.0
      %1597 = vmatpush1.msra.mxu0 0.0
      %1598 = vmatprep.subr.mxu0 0.0
      %1599 = vmatpush1.msra.mxu0 0.0
      %1600 = vmatprep.subr.mxu0 0.0
      %1601 = vmatpush1.msra.mxu0 0.0
      %1602 = vmatprep.subr.mxu0 0.0
      %1603 = vmatpush1.msra.mxu0 0.0
      %1604 = vmatprep.mubr.f32.mxu0 0.0
      %1605 = vmatmul.mubr.f32.gmra.mrb[0].mxu0 %v1538
      %v1606 = vpop.f32.mrb[0].mxu0
      %v1607 = vadd.f32 %v1536, %v1606
      %v1608 = vpop.f32.mrb[0].mxu0
      %1609 = vdwg.mxu0
      %v1610 = vadd.f32 %v1526, %v1607
      %v1611 = vxor.u32 %v1610, 2147483648
      %v1612 = vmul.f32 %v1611, 1.442695
      %v1613 = vpow.pop %v1612
      %v1614 = vadd.f32 %v1613, 1.0
      %v1615 = vrcp.pop %v1614
      %v1616 = vmul.f32 1.0, %v1615
      %v1617 = vmul.f32 %v1616, %v1522
      %v1618 = vld [vmem:[%s6] sm:$0xff]
      %v1619 = vld [vmem:[%s6 + $0x8] sm:$0xff]
      %v1620 = vld [vmem:[%s6 + $0x10] sm:$0xff]
      %v1621 = vld [vmem:[%s6 + $0x18] sm:$0xff]
      %v1622 = vld [vmem:[%s7] sm:$0x1]
      %v1624 = vlaneseq
      %v1625 = vshrl.u32 %v1624, 7
      %v1626 = vsub.s32 0, %v1625
      %v1627 = vrot.slane %v1622, %v1626
      %v1630 = vsel %vm358, %v1617, 0
      %1632 = vmatprep.subr.mxu0 0.0
      %1633 = vmatpush1.msra.mxu0 %v1618
      %1634 = vmatprep.subr.mxu0 0.0
      %1635 = vmatpush1.msra.mxu0 %v1619
      %1636 = vmatprep.subr.mxu0 0.0
      %1637 = vmatpush1.msra.mxu0 %v1620
      %1638 = vmatprep.subr.mxu0 0.0
      %1639 = vmatpush1.msra.mxu0 %v1621
      %1640 = vmatprep.subr.mxu0 0.0
      %1641 = vmatpush1.msra.mxu0 0.0
      %1642 = vmatprep.subr.mxu0 0.0
      %1643 = vmatpush1.msra.mxu0 0.0
      %1644 = vmatprep.subr.mxu0 0.0
      %1645 = vmatpush1.msra.mxu0 0.0
      %1646 = vmatprep.subr.mxu0 0.0
      %1647 = vmatpush1.msra.mxu0 0.0
      %1648 = vmatprep.subr.mxu0 0.0
      %1649 = vmatpush1.msra.mxu0 0.0
      %1650 = vmatprep.subr.mxu0 0.0
      %1651 = vmatpush1.msra.mxu0 0.0
      %1652 = vmatprep.subr.mxu0 0.0
      %1653 = vmatpush1.msra.mxu0 0.0
      %1654 = vmatprep.subr.mxu0 0.0
      %1655 = vmatpush1.msra.mxu0 0.0
      %1656 = vmatprep.subr.mxu0 0.0
      %1657 = vmatpush1.msra.mxu0 0.0
      %1658 = vmatprep.subr.mxu0 0.0
      %1659 = vmatpush1.msra.mxu0 0.0
      %1660 = vmatprep.subr.mxu0 0.0
      %1661 = vmatpush1.msra.mxu0 0.0
      %1662 = vmatprep.subr.mxu0 0.0
      %1663 = vmatpush1.msra.mxu0 0.0
      %1664 = vmatprep.subr.mxu0 0.0
      %1665 = vmatpush1.msra.mxu0 0.0
      %1666 = vmatprep.subr.mxu0 0.0
      %1667 = vmatpush1.msra.mxu0 0.0
      %1668 = vmatprep.subr.mxu0 0.0
      %1669 = vmatpush1.msra.mxu0 0.0
      %1670 = vmatprep.subr.mxu0 0.0
      %1671 = vmatpush1.msra.mxu0 0.0
      %1672 = vmatprep.subr.mxu0 0.0
      %1673 = vmatpush1.msra.mxu0 0.0
      %1674 = vmatprep.subr.mxu0 0.0
      %1675 = vmatpush1.msra.mxu0 0.0
      %1676 = vmatprep.subr.mxu0 0.0
      %1677 = vmatpush1.msra.mxu0 0.0
      %1678 = vmatprep.subr.mxu0 0.0
      %1679 = vmatpush1.msra.mxu0 0.0
      %1680 = vmatprep.subr.mxu0 0.0
      %1681 = vmatpush1.msra.mxu0 0.0
      %1682 = vmatprep.subr.mxu0 0.0
      %1683 = vmatpush1.msra.mxu0 0.0
      %1684 = vmatprep.subr.mxu0 0.0
      %1685 = vmatpush1.msra.mxu0 0.0
      %1686 = vmatprep.subr.mxu0 0.0
      %1687 = vmatpush1.msra.mxu0 0.0
      %1688 = vmatprep.subr.mxu0 0.0
      %1689 = vmatpush1.msra.mxu0 0.0
      %1690 = vmatprep.subr.mxu0 0.0
      %1691 = vmatpush1.msra.mxu0 0.0
      %1692 = vmatprep.subr.mxu0 0.0
      %1693 = vmatpush1.msra.mxu0 0.0
      %1694 = vmatprep.subr.mxu0 0.0
      %1695 = vmatpush1.msra.mxu0 0.0
      %1696 = vmatprep.mubr.f32.mxu0 0.0
      %1697 = vmatmul.mubr.f32.gmra.mrb[0].mxu0 %v1630
      %v1698 = vpop.f32.mrb[0].mxu0
      %v1699 = vadd.f32 %v1627, %v1698
      %v1700 = vpop.f32.mrb[0].mxu0
      %1701 = vdwg.mxu0
      %1703 = vrot.lane.b32.xlu0 %v1699, 64
      %v1704 = vpop.permute.xlu0 %1703
      %v1706 = vadd.f32 %v1526, %v1704
      %v1707 = vtanh.pop %v1706
      %v1708 = vmul.f32 %v1616, %v1519
      %v1709 = vsub.f32 1.0, %v1616
      %1711 = vrot.lane.b32.xlu0 %v1707, 96
      %v1712 = vpop.permute.xlu0 %1711
      %v1714 = vmul.f32 %v1709, %v1712
      %v1715 = vadd.f32 %v1708, %v1714
      %1717 = vrot.lane.b32.xlu0 %v1715, 96
      %v1718 = vpop.permute.xlu0 %1717
      %s1720 = scalar_lea.vmem [#allocation10], 48
      %1721 = vst.msk [vmem:[%s1720] sm:$0xff] %vm358, %v1718
      %v1722 = vld [vmem:[%s340] sm:$0xff]
      %v1723 = vld [vmem:[%s4] sm:$0xff]
      %v1724 = vld [vmem:[%s4 + $0x8] sm:$0xff]
      %v1725 = vld [vmem:[%s4 + $0x10] sm:$0xff]
      %v1726 = vld [vmem:[%s4 + $0x18] sm:$0xff]
      %v1727 = vld [vmem:[%s5] sm:$0x1]
      %v1729 = vlaneseq
      %v1730 = vshrl.u32 %v1729, 7
      %v1731 = vsub.s32 0, %v1730
      %v1732 = vrot.slane %v1727, %v1731
      %v1734 = vsel %vm358, %v1718, 0
      %1736 = vmatprep.subr.mxu0 0.0
      %1737 = vmatpush1.msra.mxu0 %v1723
      %1738 = vmatprep.subr.mxu0 0.0
      %1739 = vmatpush1.msra.mxu0 %v1724
      %1740 = vmatprep.subr.mxu0 0.0
      %1741 = vmatpush1.msra.mxu0 %v1725
      %1742 = vmatprep.subr.mxu0 0.0
      %1743 = vmatpush1.msra.mxu0 %v1726
      %1744 = vmatprep.subr.mxu0 0.0
      %1745 = vmatpush1.msra.mxu0 0.0
      %1746 = vmatprep.subr.mxu0 0.0
      %1747 = vmatpush1.msra.mxu0 0.0
      %1748 = vmatprep.subr.mxu0 0.0
      %1749 = vmatpush1.msra.mxu0 0.0
      %1750 = vmatprep.subr.mxu0 0.0
      %1751 = vmatpush1.msra.mxu0 0.0
      %1752 = vmatprep.subr.mxu0 0.0
      %1753 = vmatpush1.msra.mxu0 0.0
      %1754 = vmatprep.subr.mxu0 0.0
      %1755 = vmatpush1.msra.mxu0 0.0
      %1756 = vmatprep.subr.mxu0 0.0
      %1757 = vmatpush1.msra.mxu0 0.0
      %1758 = vmatprep.subr.mxu0 0.0
      %1759 = vmatpush1.msra.mxu0 0.0
      %1760 = vmatprep.subr.mxu0 0.0
      %1761 = vmatpush1.msra.mxu0 0.0
      %1762 = vmatprep.subr.mxu0 0.0
      %1763 = vmatpush1.msra.mxu0 0.0
      %1764 = vmatprep.subr.mxu0 0.0
      %1765 = vmatpush1.msra.mxu0 0.0
      %1766 = vmatprep.subr.mxu0 0.0
      %1767 = vmatpush1.msra.mxu0 0.0
      %1768 = vmatprep.subr.mxu0 0.0
      %1769 = vmatpush1.msra.mxu0 0.0
      %1770 = vmatprep.subr.mxu0 0.0
      %1771 = vmatpush1.msra.mxu0 0.0
      %1772 = vmatprep.subr.mxu0 0.0
      %1773 = vmatpush1.msra.mxu0 0.0
      %1774 = vmatprep.subr.mxu0 0.0
      %1775 = vmatpush1.msra.mxu0 0.0
      %1776 = vmatprep.subr.mxu0 0.0
      %1777 = vmatpush1.msra.mxu0 0.0
      %1778 = vmatprep.subr.mxu0 0.0
      %1779 = vmatpush1.msra.mxu0 0.0
      %1780 = vmatprep.subr.mxu0 0.0
      %1781 = vmatpush1.msra.mxu0 0.0
      %1782 = vmatprep.subr.mxu0 0.0
      %1783 = vmatpush1.msra.mxu0 0.0
      %1784 = vmatprep.subr.mxu0 0.0
      %1785 = vmatpush1.msra.mxu0 0.0
      %1786 = vmatprep.subr.mxu0 0.0
      %1787 = vmatpush1.msra.mxu0 0.0
      %1788 = vmatprep.subr.mxu0 0.0
      %1789 = vmatpush1.msra.mxu0 0.0
      %1790 = vmatprep.subr.mxu0 0.0
      %1791 = vmatpush1.msra.mxu0 0.0
      %1792 = vmatprep.subr.mxu0 0.0
      %1793 = vmatpush1.msra.mxu0 0.0
      %1794 = vmatprep.subr.mxu0 0.0
      %1795 = vmatpush1.msra.mxu0 0.0
      %1796 = vmatprep.subr.mxu0 0.0
      %1797 = vmatpush1.msra.mxu0 0.0
      %1798 = vmatprep.subr.mxu0 0.0
      %1799 = vmatpush1.msra.mxu0 0.0
      %1800 = vmatprep.mubr.f32.mxu0 0.0
      %1801 = vmatmul.mubr.f32.gmra.mrb[0].mxu0 %v1734
      %v1802 = vpop.f32.mrb[0].mxu0
      %v1803 = vadd.f32 %v1732, %v1802
      %v1804 = vpop.f32.mrb[0].mxu0
      %1805 = vdwg.mxu0
      %v1806 = vadd.f32 %v1722, %v1803
      %v1807 = vxor.u32 %v1806, 2147483648
      %v1808 = vmul.f32 %v1807, 1.442695
      %v1809 = vpow.pop %v1808
      %v1810 = vadd.f32 %v1809, 1.0
      %v1811 = vrcp.pop %v1810
      %v1812 = vmul.f32 1.0, %v1811
      %v1813 = vmul.f32 %v1812, %v1718
      %v1814 = vld [vmem:[%s6] sm:$0xff]
      %v1815 = vld [vmem:[%s6 + $0x8] sm:$0xff]
      %v1816 = vld [vmem:[%s6 + $0x10] sm:$0xff]
      %v1817 = vld [vmem:[%s6 + $0x18] sm:$0xff]
      %v1818 = vld [vmem:[%s7] sm:$0x1]
      %v1820 = vlaneseq
      %v1821 = vshrl.u32 %v1820, 7
      %v1822 = vsub.s32 0, %v1821
      %v1823 = vrot.slane %v1818, %v1822
      %v1826 = vsel %vm358, %v1813, 0
      %1828 = vmatprep.subr.mxu0 0.0
      %1829 = vmatpush1.msra.mxu0 %v1814
      %1830 = vmatprep.subr.mxu0 0.0
      %1831 = vmatpush1.msra.mxu0 %v1815
      %1832 = vmatprep.subr.mxu0 0.0
      %1833 = vmatpush1.msra.mxu0 %v1816
      %1834 = vmatprep.subr.mxu0 0.0
      %1835 = vmatpush1.msra.mxu0 %v1817
      %1836 = vmatprep.subr.mxu0 0.0
      %1837 = vmatpush1.msra.mxu0 0.0
      %1838 = vmatprep.subr.mxu0 0.0
      %1839 = vmatpush1.msra.mxu0 0.0
      %1840 = vmatprep.subr.mxu0 0.0
      %1841 = vmatpush1.msra.mxu0 0.0
      %1842 = vmatprep.subr.mxu0 0.0
      %1843 = vmatpush1.msra.mxu0 0.0
      %1844 = vmatprep.subr.mxu0 0.0
      %1845 = vmatpush1.msra.mxu0 0.0
      %1846 = vmatprep.subr.mxu0 0.0
      %1847 = vmatpush1.msra.mxu0 0.0
      %1848 = vmatprep.subr.mxu0 0.0
      %1849 = vmatpush1.msra.mxu0 0.0
      %1850 = vmatprep.subr.mxu0 0.0
      %1851 = vmatpush1.msra.mxu0 0.0
      %1852 = vmatprep.subr.mxu0 0.0
      %1853 = vmatpush1.msra.mxu0 0.0
      %1854 = vmatprep.subr.mxu0 0.0
      %1855 = vmatpush1.msra.mxu0 0.0
      %1856 = vmatprep.subr.mxu0 0.0
      %1857 = vmatpush1.msra.mxu0 0.0
      %1858 = vmatprep.subr.mxu0 0.0
      %1859 = vmatpush1.msra.mxu0 0.0
      %1860 = vmatprep.subr.mxu0 0.0
      %1861 = vmatpush1.msra.mxu0 0.0
      %1862 = vmatprep.subr.mxu0 0.0
      %1863 = vmatpush1.msra.mxu0 0.0
      %1864 = vmatprep.subr.mxu0 0.0
      %1865 = vmatpush1.msra.mxu0 0.0
      %1866 = vmatprep.subr.mxu0 0.0
      %1867 = vmatpush1.msra.mxu0 0.0
      %1868 = vmatprep.subr.mxu0 0.0
      %1869 = vmatpush1.msra.mxu0 0.0
      %1870 = vmatprep.subr.mxu0 0.0
      %1871 = vmatpush1.msra.mxu0 0.0
      %1872 = vmatprep.subr.mxu0 0.0
      %1873 = vmatpush1.msra.mxu0 0.0
      %1874 = vmatprep.subr.mxu0 0.0
      %1875 = vmatpush1.msra.mxu0 0.0
      %1876 = vmatprep.subr.mxu0 0.0
      %1877 = vmatpush1.msra.mxu0 0.0
      %1878 = vmatprep.subr.mxu0 0.0
      %1879 = vmatpush1.msra.mxu0 0.0
      %1880 = vmatprep.subr.mxu0 0.0
      %1881 = vmatpush1.msra.mxu0 0.0
      %1882 = vmatprep.subr.mxu0 0.0
      %1883 = vmatpush1.msra.mxu0 0.0
      %1884 = vmatprep.subr.mxu0 0.0
      %1885 = vmatpush1.msra.mxu0 0.0
      %1886 = vmatprep.subr.mxu0 0.0
      %1887 = vmatpush1.msra.mxu0 0.0
      %1888 = vmatprep.subr.mxu0 0.0
      %1889 = vmatpush1.msra.mxu0 0.0
      %1890 = vmatprep.subr.mxu0 0.0
      %1891 = vmatpush1.msra.mxu0 0.0
      %1892 = vmatprep.mubr.f32.mxu0 0.0
      %1893 = vmatmul.mubr.f32.gmra.mrb[0].mxu0 %v1826
      %v1894 = vpop.f32.mrb[0].mxu0
      %v1895 = vadd.f32 %v1823, %v1894
      %v1896 = vpop.f32.mrb[0].mxu0
      %1897 = vdwg.mxu0
      %1899 = vrot.lane.b32.xlu0 %v1895, 64
      %v1900 = vpop.permute.xlu0 %1899
      %v1902 = vadd.f32 %v1722, %v1900
      %v1903 = vtanh.pop %v1902
      %v1904 = vmul.f32 %v1812, %v1715
      %v1905 = vsub.f32 1.0, %v1812
      %1907 = vrot.lane.b32.xlu0 %v1903, 96
      %v1908 = vpop.permute.xlu0 %1907
      %v1910 = vmul.f32 %v1905, %v1908
      %v1911 = vadd.f32 %v1904, %v1910
      %1913 = vrot.lane.b32.xlu0 %v1911, 96
      %v1914 = vpop.permute.xlu0 %1913
      %s1916 = scalar_lea.vmem [#allocation10], 56
      %1917 = vst.msk [vmem:[%s1916] sm:$0xff] %vm358, %v1914
      %v1918 = vld [vmem:[#allocation10] sm:$0xff]
      %v1919 = vld [vmem:[#allocation10 + $0x8] sm:$0xff]
      %v1920 = vld [vmem:[#allocation10 + $0x10] sm:$0xff]
      %v1921 = vld [vmem:[#allocation10 + $0x18] sm:$0xff]
      %v1922 = vld [vmem:[#allocation10 + $0x20] sm:$0xff]
      %v1923 = vld [vmem:[#allocation10 + $0x28] sm:$0xff]
      %v1924 = vld [vmem:[#allocation10 + $0x30] sm:$0xff]
      %v1925 = vld [vmem:[#allocation10 + $0x38] sm:$0xff]
      %v1926 = vld [vmem:[%s8] sm:$0xff]
      %v1927 = vld [vmem:[%s8 + $0x8] sm:$0xff]
      %v1928 = vld [vmem:[%s8 + $0x10] sm:$0xff]
      %v1929 = vld [vmem:[%s8 + $0x18] sm:$0xff]
      %v1930 = vld [vmem:[%s9] sm:$0x1]
      %v1932 = vlaneseq
      %v1933 = vshrl.u32 %v1932, 7
      %v1934 = vsub.s32 0, %v1933
      %v1935 = vrot.slane %v1930, %v1934
      %v1938 = vsel %vm358, %v1918, 0
      %v1941 = vsel %vm358, %v1919, 0
      %v1944 = vsel %vm358, %v1920, 0
      %v1947 = vsel %vm358, %v1921, 0
      %v1950 = vsel %vm358, %v1922, 0
      %v1953 = vsel %vm358, %v1923, 0
      %v1956 = vsel %vm358, %v1924, 0
      %v1959 = vsel %vm358, %v1925, 0
      %1961 = vmatprep.subr.mxu0 0.0
      %1962 = vmatpush1.msra.mxu0 %v1926
      %1963 = vmatprep.subr.mxu0 0.0
      %1964 = vmatpush1.msra.mxu0 %v1927
      %1965 = vmatprep.subr.mxu0 0.0
      %1966 = vmatpush1.msra.mxu0 %v1928
      %1967 = vmatprep.subr.mxu0 0.0
      %1968 = vmatpush1.msra.mxu0 %v1929
      %1969 = vmatprep.subr.mxu0 0.0
      %1970 = vmatpush1.msra.mxu0 0.0
      %1971 = vmatprep.subr.mxu0 0.0
      %1972 = vmatpush1.msra.mxu0 0.0
      %1973 = vmatprep.subr.mxu0 0.0
      %1974 = vmatpush1.msra.mxu0 0.0
      %1975 = vmatprep.subr.mxu0 0.0
      %1976 = vmatpush1.msra.mxu0 0.0
      %1977 = vmatprep.subr.mxu0 0.0
      %1978 = vmatpush1.msra.mxu0 0.0
      %1979 = vmatprep.subr.mxu0 0.0
      %1980 = vmatpush1.msra.mxu0 0.0
      %1981 = vmatprep.subr.mxu0 0.0
      %1982 = vmatpush1.msra.mxu0 0.0
      %1983 = vmatprep.subr.mxu0 0.0
      %1984 = vmatpush1.msra.mxu0 0.0
      %1985 = vmatprep.subr.mxu0 0.0
      %1986 = vmatpush1.msra.mxu0 0.0
      %1987 = vmatprep.subr.mxu0 0.0
      %1988 = vmatpush1.msra.mxu0 0.0
      %1989 = vmatprep.subr.mxu0 0.0
      %1990 = vmatpush1.msra.mxu0 0.0
      %1991 = vmatprep.subr.mxu0 0.0
      %1992 = vmatpush1.msra.mxu0 0.0
      %1993 = vmatprep.subr.mxu0 0.0
      %1994 = vmatpush1.msra.mxu0 0.0
      %1995 = vmatprep.subr.mxu0 0.0
      %1996 = vmatpush1.msra.mxu0 0.0
      %1997 = vmatprep.subr.mxu0 0.0
      %1998 = vmatpush1.msra.mxu0 0.0
      %1999 = vmatprep.subr.mxu0 0.0
      %2000 = vmatpush1.msra.mxu0 0.0
      %2001 = vmatprep.subr.mxu0 0.0
      %2002 = vmatpush1.msra.mxu0 0.0
      %2003 = vmatprep.subr.mxu0 0.0
      %2004 = vmatpush1.msra.mxu0 0.0
      %2005 = vmatprep.subr.mxu0 0.0
      %2006 = vmatpush1.msra.mxu0 0.0
      %2007 = vmatprep.subr.mxu0 0.0
      %2008 = vmatpush1.msra.mxu0 0.0
      %2009 = vmatprep.subr.mxu0 0.0
      %2010 = vmatpush1.msra.mxu0 0.0
      %2011 = vmatprep.subr.mxu0 0.0
      %2012 = vmatpush1.msra.mxu0 0.0
      %2013 = vmatprep.subr.mxu0 0.0
      %2014 = vmatpush1.msra.mxu0 0.0
      %2015 = vmatprep.subr.mxu0 0.0
      %2016 = vmatpush1.msra.mxu0 0.0
      %2017 = vmatprep.subr.mxu0 0.0
      %2018 = vmatpush1.msra.mxu0 0.0
      %2019 = vmatprep.subr.mxu0 0.0
      %2020 = vmatpush1.msra.mxu0 0.0
      %2021 = vmatprep.subr.mxu0 0.0
      %2022 = vmatpush1.msra.mxu0 0.0
      %2023 = vmatprep.subr.mxu0 0.0
      %2024 = vmatpush1.msra.mxu0 0.0
      %2025 = vmatprep.mubr.f32.mxu0 0.0
      %2026 = vmatmul.mubr.f32.gmra.mrb[0].mxu0 %v1938
      %v2027 = vpop.f32.mrb[0].mxu0
      %v2028 = vadd.f32 %v1935, %v2027
      %v2029 = vpop.f32.mrb[0].mxu0
      %2030 = vmatprep.mubr.f32.mxu0 0.0
      %2031 = vmatmul.mubr.f32.gmra.mrb[0].mxu0 %v1941
      %v2032 = vpop.f32.mrb[0].mxu0
      %v2033 = vadd.f32 %v1935, %v2032
      %v2034 = vpop.f32.mrb[0].mxu0
      %2035 = vmatprep.mubr.f32.mxu0 0.0
      %2036 = vmatmul.mubr.f32.gmra.mrb[0].mxu0 %v1944
      %v2037 = vpop.f32.mrb[0].mxu0
      %v2038 = vadd.f32 %v1935, %v2037
      %v2039 = vpop.f32.mrb[0].mxu0
      %2040 = vmatprep.mubr.f32.mxu0 0.0
      %2041 = vmatmul.mubr.f32.gmra.mrb[0].mxu0 %v1947
      %v2042 = vpop.f32.mrb[0].mxu0
      %v2043 = vadd.f32 %v1935, %v2042
      %v2044 = vpop.f32.mrb[0].mxu0
      %2045 = vmatprep.mubr.f32.mxu0 0.0
      %2046 = vmatmul.mubr.f32.gmra.mrb[0].mxu0 %v1950
      %v2047 = vpop.f32.mrb[0].mxu0
      %v2048 = vadd.f32 %v1935, %v2047
      %v2049 = vpop.f32.mrb[0].mxu0
      %2050 = vmatprep.mubr.f32.mxu0 0.0
      %2051 = vmatmul.mubr.f32.gmra.mrb[0].mxu0 %v1953
      %v2052 = vpop.f32.mrb[0].mxu0
      %v2053 = vadd.f32 %v1935, %v2052
      %v2054 = vpop.f32.mrb[0].mxu0
      %2055 = vmatprep.mubr.f32.mxu0 0.0
      %2056 = vmatmul.mubr.f32.gmra.mrb[0].mxu0 %v1956
      %v2057 = vpop.f32.mrb[0].mxu0
      %v2058 = vadd.f32 %v1935, %v2057
      %v2059 = vpop.f32.mrb[0].mxu0
      %2060 = vmatprep.mubr.f32.mxu0 0.0
      %2061 = vmatmul.mubr.f32.gmra.mrb[0].mxu0 %v1959
      %v2062 = vpop.f32.mrb[0].mxu0
      %v2063 = vadd.f32 %v1935, %v2062
      %v2064 = vpop.f32.mrb[0].mxu0
      %2065 = vdwg.mxu0
      %v2067 = vcombine.high %v2028, %v2028
      %v2069 = vunpack.c.l.s4 1966171168
      %v2070 = vunpack.c.0.s8 %v2069
      %v2071 = vlaneseq
      %v2072 = vshrl.u32 %v2071, 7
      %v2073 = vsub.s32 %v2070, %v2072
      %v2074 = vrot.slane %v2028, %v2073
      %v2076 = vunpack.c.l.s4 1966171168
      %v2077 = vunpack.c.0.s8 %v2076
      %v2078 = vlaneseq
      %v2079 = vshrl.u32 %v2078, 7
      %v2080 = vsub.s32 %v2077, %v2079
      %v2081 = vrot.slane %v2067, %v2080
      %v2082 = vcombine.high %v2074, %v2074
      %v2083 = vcombine.high %v2081, %v2081
      %v2085 = vunpack.c.l.s4 1966171168
      %v2086 = vunpack.c.0.s8 %v2085
      %v2087 = vlaneseq
      %v2088 = vshrl.u32 %v2087, 7
      %v2089 = vsub.s32 %v2086, %v2088
      %v2090 = vrot.slane %v2074, %v2089
      %v2092 = vunpack.c.l.s4 1966171168
      %v2093 = vunpack.c.0.s8 %v2092
      %v2094 = vlaneseq
      %v2095 = vshrl.u32 %v2094, 7
      %v2096 = vsub.s32 %v2093, %v2095
      %v2097 = vrot.slane %v2081, %v2096
      %v2099 = vunpack.c.l.s4 1966171168
      %v2100 = vunpack.c.0.s8 %v2099
      %v2101 = vlaneseq
      %v2102 = vshrl.u32 %v2101, 7
      %v2103 = vsub.s32 %v2100, %v2102
      %v2104 = vrot.slane %v2082, %v2103
      %v2106 = vunpack.c.l.s4 1966171168
      %v2107 = vunpack.c.0.s8 %v2106
      %v2108 = vlaneseq
      %v2109 = vshrl.u32 %v2108, 7
      %v2110 = vsub.s32 %v2107, %v2109
      %v2111 = vrot.slane %v2083, %v2110
      %v2112 = vcombine.high %v2090, %v2090
      %v2113 = vcombine.high %v2097, %v2097
      %v2114 = vcombine.high %v2104, %v2104
      %v2115 = vcombine.high %v2111, %v2111
      %vm2124 = vcmask 73728
      %2125 = vst.msk [vmem:[#allocation8] sm:$0x1] %vm2124, %v2090
      %2126 = vst.msk [vmem:[#allocation8 + $0x8] sm:$0x1] %vm2124, %v2104
      %2127 = vst.msk [vmem:[#allocation8 + $0x10] sm:$0x1] %vm2124, %v2112
      %2128 = vst.msk [vmem:[#allocation8 + $0x18] sm:$0x1] %vm2124, %v2114
      %2129 = vst.msk [vmem:[#allocation8 + $0x20] sm:$0x1] %vm2124, %v2097
      %2130 = vst.msk [vmem:[#allocation8 + $0x28] sm:$0x1] %vm2124, %v2111
      %2131 = vst.msk [vmem:[#allocation8 + $0x30] sm:$0x1] %vm2124, %v2113
      %2132 = vst.msk [vmem:[#allocation8 + $0x38] sm:$0x1] %vm2124, %v2115
      %v2134 = vcombine.high %v2033, %v2033
      %v2136 = vunpack.c.l.s4 1966171168
      %v2137 = vunpack.c.0.s8 %v2136
      %v2138 = vlaneseq
      %v2139 = vshrl.u32 %v2138, 7
      %v2140 = vsub.s32 %v2137, %v2139
      %v2141 = vrot.slane %v2033, %v2140
      %v2143 = vunpack.c.l.s4 1966171168
      %v2144 = vunpack.c.0.s8 %v2143
      %v2145 = vlaneseq
      %v2146 = vshrl.u32 %v2145, 7
      %v2147 = vsub.s32 %v2144, %v2146
      %v2148 = vrot.slane %v2134, %v2147
      %v2149 = vcombine.high %v2141, %v2141
      %v2150 = vcombine.high %v2148, %v2148
      %v2152 = vunpack.c.l.s4 1966171168
      %v2153 = vunpack.c.0.s8 %v2152
      %v2154 = vlaneseq
      %v2155 = vshrl.u32 %v2154, 7
      %v2156 = vsub.s32 %v2153, %v2155
      %v2157 = vrot.slane %v2141, %v2156
      %v2159 = vunpack.c.l.s4 1966171168
      %v2160 = vunpack.c.0.s8 %v2159
      %v2161 = vlaneseq
      %v2162 = vshrl.u32 %v2161, 7
      %v2163 = vsub.s32 %v2160, %v2162
      %v2164 = vrot.slane %v2148, %v2163
      %v2166 = vunpack.c.l.s4 1966171168
      %v2167 = vunpack.c.0.s8 %v2166
      %v2168 = vlaneseq
      %v2169 = vshrl.u32 %v2168, 7
      %v2170 = vsub.s32 %v2167, %v2169
      %v2171 = vrot.slane %v2149, %v2170
      %v2173 = vunpack.c.l.s4 1966171168
      %v2174 = vunpack.c.0.s8 %v2173
      %v2175 = vlaneseq
      %v2176 = vshrl.u32 %v2175, 7
      %v2177 = vsub.s32 %v2174, %v2176
      %v2178 = vrot.slane %v2150, %v2177
      %v2179 = vcombine.high %v2157, %v2157
      %v2180 = vcombine.high %v2164, %v2164
      %v2181 = vcombine.high %v2171, %v2171
      %v2182 = vcombine.high %v2178, %v2178
      %2191 = vst.msk [vmem:[#allocation8 + $0x1] sm:$0x1] %vm2124, %v2157
      %2192 = vst.msk [vmem:[#allocation8 + $0x9] sm:$0x1] %vm2124, %v2171
      %2193 = vst.msk [vmem:[#allocation8 + $0x11] sm:$0x1] %vm2124, %v2179
      %2194 = vst.msk [vmem:[#allocation8 + $0x19] sm:$0x1] %vm2124, %v2181
      %2195 = vst.msk [vmem:[#allocation8 + $0x21] sm:$0x1] %vm2124, %v2164
      %2196 = vst.msk [vmem:[#allocation8 + $0x29] sm:$0x1] %vm2124, %v2178
      %2197 = vst.msk [vmem:[#allocation8 + $0x31] sm:$0x1] %vm2124, %v2180
      %2198 = vst.msk [vmem:[#allocation8 + $0x39] sm:$0x1] %vm2124, %v2182
      %v2200 = vcombine.high %v2038, %v2038
      %v2202 = vunpack.c.l.s4 1966171168
      %v2203 = vunpack.c.0.s8 %v2202
      %v2204 = vlaneseq
      %v2205 = vshrl.u32 %v2204, 7
      %v2206 = vsub.s32 %v2203, %v2205
      %v2207 = vrot.slane %v2038, %v2206
      %v2209 = vunpack.c.l.s4 1966171168
      %v2210 = vunpack.c.0.s8 %v2209
      %v2211 = vlaneseq
      %v2212 = vshrl.u32 %v2211, 7
      %v2213 = vsub.s32 %v2210, %v2212
      %v2214 = vrot.slane %v2200, %v2213
      %v2215 = vcombine.high %v2207, %v2207
      %v2216 = vcombine.high %v2214, %v2214
      %v2218 = vunpack.c.l.s4 1966171168
      %v2219 = vunpack.c.0.s8 %v2218
      %v2220 = vlaneseq
      %v2221 = vshrl.u32 %v2220, 7
      %v2222 = vsub.s32 %v2219, %v2221
      %v2223 = vrot.slane %v2207, %v2222
      %v2225 = vunpack.c.l.s4 1966171168
      %v2226 = vunpack.c.0.s8 %v2225
      %v2227 = vlaneseq
      %v2228 = vshrl.u32 %v2227, 7
      %v2229 = vsub.s32 %v2226, %v2228
      %v2230 = vrot.slane %v2214, %v2229
      %v2232 = vunpack.c.l.s4 1966171168
      %v2233 = vunpack.c.0.s8 %v2232
      %v2234 = vlaneseq
      %v2235 = vshrl.u32 %v2234, 7
      %v2236 = vsub.s32 %v2233, %v2235
      %v2237 = vrot.slane %v2215, %v2236
      %v2239 = vunpack.c.l.s4 1966171168
      %v2240 = vunpack.c.0.s8 %v2239
      %v2241 = vlaneseq
      %v2242 = vshrl.u32 %v2241, 7
      %v2243 = vsub.s32 %v2240, %v2242
      %v2244 = vrot.slane %v2216, %v2243
      %v2245 = vcombine.high %v2223, %v2223
      %v2246 = vcombine.high %v2230, %v2230
      %v2247 = vcombine.high %v2237, %v2237
      %v2248 = vcombine.high %v2244, %v2244
      %2257 = vst.msk [vmem:[#allocation8 + $0x2] sm:$0x1] %vm2124, %v2223
      %2258 = vst.msk [vmem:[#allocation8 + $0xa] sm:$0x1] %vm2124, %v2237
      %2259 = vst.msk [vmem:[#allocation8 + $0x12] sm:$0x1] %vm2124, %v2245
      %2260 = vst.msk [vmem:[#allocation8 + $0x1a] sm:$0x1] %vm2124, %v2247
      %2261 = vst.msk [vmem:[#allocation8 + $0x22] sm:$0x1] %vm2124, %v2230
      %2262 = vst.msk [vmem:[#allocation8 + $0x2a] sm:$0x1] %vm2124, %v2244
      %2263 = vst.msk [vmem:[#allocation8 + $0x32] sm:$0x1] %vm2124, %v2246
      %2264 = vst.msk [vmem:[#allocation8 + $0x3a] sm:$0x1] %vm2124, %v2248
      %v2266 = vcombine.high %v2043, %v2043
      %v2268 = vunpack.c.l.s4 1966171168
      %v2269 = vunpack.c.0.s8 %v2268
      %v2270 = vlaneseq
      %v2271 = vshrl.u32 %v2270, 7
      %v2272 = vsub.s32 %v2269, %v2271
      %v2273 = vrot.slane %v2043, %v2272
      %v2275 = vunpack.c.l.s4 1966171168
      %v2276 = vunpack.c.0.s8 %v2275
      %v2277 = vlaneseq
      %v2278 = vshrl.u32 %v2277, 7
      %v2279 = vsub.s32 %v2276, %v2278
      %v2280 = vrot.slane %v2266, %v2279
      %v2281 = vcombine.high %v2273, %v2273
      %v2282 = vcombine.high %v2280, %v2280
      %v2284 = vunpack.c.l.s4 1966171168
      %v2285 = vunpack.c.0.s8 %v2284
      %v2286 = vlaneseq
      %v2287 = vshrl.u32 %v2286, 7
      %v2288 = vsub.s32 %v2285, %v2287
      %v2289 = vrot.slane %v2273, %v2288
      %v2291 = vunpack.c.l.s4 1966171168
      %v2292 = vunpack.c.0.s8 %v2291
      %v2293 = vlaneseq
      %v2294 = vshrl.u32 %v2293, 7
      %v2295 = vsub.s32 %v2292, %v2294
      %v2296 = vrot.slane %v2280, %v2295
      %v2298 = vunpack.c.l.s4 1966171168
      %v2299 = vunpack.c.0.s8 %v2298
      %v2300 = vlaneseq
      %v2301 = vshrl.u32 %v2300, 7
      %v2302 = vsub.s32 %v2299, %v2301
      %v2303 = vrot.slane %v2281, %v2302
      %v2305 = vunpack.c.l.s4 1966171168
      %v2306 = vunpack.c.0.s8 %v2305
      %v2307 = vlaneseq
      %v2308 = vshrl.u32 %v2307, 7
      %v2309 = vsub.s32 %v2306, %v2308
      %v2310 = vrot.slane %v2282, %v2309
      %v2311 = vcombine.high %v2289, %v2289
      %v2312 = vcombine.high %v2296, %v2296
      %v2313 = vcombine.high %v2303, %v2303
      %v2314 = vcombine.high %v2310, %v2310
      %2323 = vst.msk [vmem:[#allocation8 + $0x3] sm:$0x1] %vm2124, %v2289
      %2324 = vst.msk [vmem:[#allocation8 + $0xb] sm:$0x1] %vm2124, %v2303
      %2325 = vst.msk [vmem:[#allocation8 + $0x13] sm:$0x1] %vm2124, %v2311
      %2326 = vst.msk [vmem:[#allocation8 + $0x1b] sm:$0x1] %vm2124, %v2313
      %2327 = vst.msk [vmem:[#allocation8 + $0x23] sm:$0x1] %vm2124, %v2296
      %2328 = vst.msk [vmem:[#allocation8 + $0x2b] sm:$0x1] %vm2124, %v2310
      %2329 = vst.msk [vmem:[#allocation8 + $0x33] sm:$0x1] %vm2124, %v2312
      %2330 = vst.msk [vmem:[#allocation8 + $0x3b] sm:$0x1] %vm2124, %v2314
      %v2332 = vcombine.high %v2048, %v2048
      %v2334 = vunpack.c.l.s4 1966171168
      %v2335 = vunpack.c.0.s8 %v2334
      %v2336 = vlaneseq
      %v2337 = vshrl.u32 %v2336, 7
      %v2338 = vsub.s32 %v2335, %v2337
      %v2339 = vrot.slane %v2048, %v2338
      %v2341 = vunpack.c.l.s4 1966171168
      %v2342 = vunpack.c.0.s8 %v2341
      %v2343 = vlaneseq
      %v2344 = vshrl.u32 %v2343, 7
      %v2345 = vsub.s32 %v2342, %v2344
      %v2346 = vrot.slane %v2332, %v2345
      %v2347 = vcombine.high %v2339, %v2339
      %v2348 = vcombine.high %v2346, %v2346
      %v2350 = vunpack.c.l.s4 1966171168
      %v2351 = vunpack.c.0.s8 %v2350
      %v2352 = vlaneseq
      %v2353 = vshrl.u32 %v2352, 7
      %v2354 = vsub.s32 %v2351, %v2353
      %v2355 = vrot.slane %v2339, %v2354
      %v2357 = vunpack.c.l.s4 1966171168
      %v2358 = vunpack.c.0.s8 %v2357
      %v2359 = vlaneseq
      %v2360 = vshrl.u32 %v2359, 7
      %v2361 = vsub.s32 %v2358, %v2360
      %v2362 = vrot.slane %v2346, %v2361
      %v2364 = vunpack.c.l.s4 1966171168
      %v2365 = vunpack.c.0.s8 %v2364
      %v2366 = vlaneseq
      %v2367 = vshrl.u32 %v2366, 7
      %v2368 = vsub.s32 %v2365, %v2367
      %v2369 = vrot.slane %v2347, %v2368
      %v2371 = vunpack.c.l.s4 1966171168
      %v2372 = vunpack.c.0.s8 %v2371
      %v2373 = vlaneseq
      %v2374 = vshrl.u32 %v2373, 7
      %v2375 = vsub.s32 %v2372, %v2374
      %v2376 = vrot.slane %v2348, %v2375
      %v2377 = vcombine.high %v2355, %v2355
      %v2378 = vcombine.high %v2362, %v2362
      %v2379 = vcombine.high %v2369, %v2369
      %v2380 = vcombine.high %v2376, %v2376
      %2389 = vst.msk [vmem:[#allocation8 + $0x4] sm:$0x1] %vm2124, %v2355
      %2390 = vst.msk [vmem:[#allocation8 + $0xc] sm:$0x1] %vm2124, %v2369
      %2391 = vst.msk [vmem:[#allocation8 + $0x14] sm:$0x1] %vm2124, %v2377
      %2392 = vst.msk [vmem:[#allocation8 + $0x1c] sm:$0x1] %vm2124, %v2379
      %2393 = vst.msk [vmem:[#allocation8 + $0x24] sm:$0x1] %vm2124, %v2362
      %2394 = vst.msk [vmem:[#allocation8 + $0x2c] sm:$0x1] %vm2124, %v2376
      %2395 = vst.msk [vmem:[#allocation8 + $0x34] sm:$0x1] %vm2124, %v2378
      %2396 = vst.msk [vmem:[#allocation8 + $0x3c] sm:$0x1] %vm2124, %v2380
      %v2398 = vcombine.high %v2053, %v2053
      %v2400 = vunpack.c.l.s4 1966171168
      %v2401 = vunpack.c.0.s8 %v2400
      %v2402 = vlaneseq
      %v2403 = vshrl.u32 %v2402, 7
      %v2404 = vsub.s32 %v2401, %v2403
      %v2405 = vrot.slane %v2053, %v2404
      %v2407 = vunpack.c.l.s4 1966171168
      %v2408 = vunpack.c.0.s8 %v2407
      %v2409 = vlaneseq
      %v2410 = vshrl.u32 %v2409, 7
      %v2411 = vsub.s32 %v2408, %v2410
      %v2412 = vrot.slane %v2398, %v2411
      %v2413 = vcombine.high %v2405, %v2405
      %v2414 = vcombine.high %v2412, %v2412
      %v2416 = vunpack.c.l.s4 1966171168
      %v2417 = vunpack.c.0.s8 %v2416
      %v2418 = vlaneseq
      %v2419 = vshrl.u32 %v2418, 7
      %v2420 = vsub.s32 %v2417, %v2419
      %v2421 = vrot.slane %v2405, %v2420
      %v2423 = vunpack.c.l.s4 1966171168
      %v2424 = vunpack.c.0.s8 %v2423
      %v2425 = vlaneseq
      %v2426 = vshrl.u32 %v2425, 7
      %v2427 = vsub.s32 %v2424, %v2426
      %v2428 = vrot.slane %v2412, %v2427
      %v2430 = vunpack.c.l.s4 1966171168
      %v2431 = vunpack.c.0.s8 %v2430
      %v2432 = vlaneseq
      %v2433 = vshrl.u32 %v2432, 7
      %v2434 = vsub.s32 %v2431, %v2433
      %v2435 = vrot.slane %v2413, %v2434
      %v2437 = vunpack.c.l.s4 1966171168
      %v2438 = vunpack.c.0.s8 %v2437
      %v2439 = vlaneseq
      %v2440 = vshrl.u32 %v2439, 7
      %v2441 = vsub.s32 %v2438, %v2440
      %v2442 = vrot.slane %v2414, %v2441
      %v2443 = vcombine.high %v2421, %v2421
      %v2444 = vcombine.high %v2428, %v2428
      %v2445 = vcombine.high %v2435, %v2435
      %v2446 = vcombine.high %v2442, %v2442
      %2455 = vst.msk [vmem:[#allocation8 + $0x5] sm:$0x1] %vm2124, %v2421
      %2456 = vst.msk [vmem:[#allocation8 + $0xd] sm:$0x1] %vm2124, %v2435
      %2457 = vst.msk [vmem:[#allocation8 + $0x15] sm:$0x1] %vm2124, %v2443
      %2458 = vst.msk [vmem:[#allocation8 + $0x1d] sm:$0x1] %vm2124, %v2445
      %2459 = vst.msk [vmem:[#allocation8 + $0x25] sm:$0x1] %vm2124, %v2428
      %2460 = vst.msk [vmem:[#allocation8 + $0x2d] sm:$0x1] %vm2124, %v2442
      %2461 = vst.msk [vmem:[#allocation8 + $0x35] sm:$0x1] %vm2124, %v2444
      %2462 = vst.msk [vmem:[#allocation8 + $0x3d] sm:$0x1] %vm2124, %v2446
      %v2464 = vcombine.high %v2058, %v2058
      %v2466 = vunpack.c.l.s4 1966171168
      %v2467 = vunpack.c.0.s8 %v2466
      %v2468 = vlaneseq
      %v2469 = vshrl.u32 %v2468, 7
      %v2470 = vsub.s32 %v2467, %v2469
      %v2471 = vrot.slane %v2058, %v2470
      %v2473 = vunpack.c.l.s4 1966171168
      %v2474 = vunpack.c.0.s8 %v2473
      %v2475 = vlaneseq
      %v2476 = vshrl.u32 %v2475, 7
      %v2477 = vsub.s32 %v2474, %v2476
      %v2478 = vrot.slane %v2464, %v2477
      %v2479 = vcombine.high %v2471, %v2471
      %v2480 = vcombine.high %v2478, %v2478
      %v2482 = vunpack.c.l.s4 1966171168
      %v2483 = vunpack.c.0.s8 %v2482
      %v2484 = vlaneseq
      %v2485 = vshrl.u32 %v2484, 7
      %v2486 = vsub.s32 %v2483, %v2485
      %v2487 = vrot.slane %v2471, %v2486
      %v2489 = vunpack.c.l.s4 1966171168
      %v2490 = vunpack.c.0.s8 %v2489
      %v2491 = vlaneseq
      %v2492 = vshrl.u32 %v2491, 7
      %v2493 = vsub.s32 %v2490, %v2492
      %v2494 = vrot.slane %v2478, %v2493
      %v2496 = vunpack.c.l.s4 1966171168
      %v2497 = vunpack.c.0.s8 %v2496
      %v2498 = vlaneseq
      %v2499 = vshrl.u32 %v2498, 7
      %v2500 = vsub.s32 %v2497, %v2499
      %v2501 = vrot.slane %v2479, %v2500
      %v2503 = vunpack.c.l.s4 1966171168
      %v2504 = vunpack.c.0.s8 %v2503
      %v2505 = vlaneseq
      %v2506 = vshrl.u32 %v2505, 7
      %v2507 = vsub.s32 %v2504, %v2506
      %v2508 = vrot.slane %v2480, %v2507
      %v2509 = vcombine.high %v2487, %v2487
      %v2510 = vcombine.high %v2494, %v2494
      %v2511 = vcombine.high %v2501, %v2501
      %v2512 = vcombine.high %v2508, %v2508
      %2521 = vst.msk [vmem:[#allocation8 + $0x6] sm:$0x1] %vm2124, %v2487
      %2522 = vst.msk [vmem:[#allocation8 + $0xe] sm:$0x1] %vm2124, %v2501
      %2523 = vst.msk [vmem:[#allocation8 + $0x16] sm:$0x1] %vm2124, %v2509
      %2524 = vst.msk [vmem:[#allocation8 + $0x1e] sm:$0x1] %vm2124, %v2511
      %2525 = vst.msk [vmem:[#allocation8 + $0x26] sm:$0x1] %vm2124, %v2494
      %2526 = vst.msk [vmem:[#allocation8 + $0x2e] sm:$0x1] %vm2124, %v2508
      %2527 = vst.msk [vmem:[#allocation8 + $0x36] sm:$0x1] %vm2124, %v2510
      %2528 = vst.msk [vmem:[#allocation8 + $0x3e] sm:$0x1] %vm2124, %v2512
      %v2530 = vcombine.high %v2063, %v2063
      %v2532 = vunpack.c.l.s4 1966171168
      %v2533 = vunpack.c.0.s8 %v2532
      %v2534 = vlaneseq
      %v2535 = vshrl.u32 %v2534, 7
      %v2536 = vsub.s32 %v2533, %v2535
      %v2537 = vrot.slane %v2063, %v2536
      %v2539 = vunpack.c.l.s4 1966171168
      %v2540 = vunpack.c.0.s8 %v2539
      %v2541 = vlaneseq
      %v2542 = vshrl.u32 %v2541, 7
      %v2543 = vsub.s32 %v2540, %v2542
      %v2544 = vrot.slane %v2530, %v2543
      %v2545 = vcombine.high %v2537, %v2537
      %v2546 = vcombine.high %v2544, %v2544
      %v2548 = vunpack.c.l.s4 1966171168
      %v2549 = vunpack.c.0.s8 %v2548
      %v2550 = vlaneseq
      %v2551 = vshrl.u32 %v2550, 7
      %v2552 = vsub.s32 %v2549, %v2551
      %v2553 = vrot.slane %v2537, %v2552
      %v2555 = vunpack.c.l.s4 1966171168
      %v2556 = vunpack.c.0.s8 %v2555
      %v2557 = vlaneseq
      %v2558 = vshrl.u32 %v2557, 7
      %v2559 = vsub.s32 %v2556, %v2558
      %v2560 = vrot.slane %v2544, %v2559
      %v2562 = vunpack.c.l.s4 1966171168
      %v2563 = vunpack.c.0.s8 %v2562
      %v2564 = vlaneseq
      %v2565 = vshrl.u32 %v2564, 7
      %v2566 = vsub.s32 %v2563, %v2565
      %v2567 = vrot.slane %v2545, %v2566
      %v2569 = vunpack.c.l.s4 1966171168
      %v2570 = vunpack.c.0.s8 %v2569
      %v2571 = vlaneseq
      %v2572 = vshrl.u32 %v2571, 7
      %v2573 = vsub.s32 %v2570, %v2572
      %v2574 = vrot.slane %v2546, %v2573
      %v2575 = vcombine.high %v2553, %v2553
      %v2576 = vcombine.high %v2560, %v2560
      %v2577 = vcombine.high %v2567, %v2567
      %v2578 = vcombine.high %v2574, %v2574
      %2587 = vst.msk [vmem:[#allocation8 + $0x7] sm:$0x1] %vm2124, %v2553
      %2588 = vst.msk [vmem:[#allocation8 + $0xf] sm:$0x1] %vm2124, %v2567
      %2589 = vst.msk [vmem:[#allocation8 + $0x17] sm:$0x1] %vm2124, %v2575
      %2590 = vst.msk [vmem:[#allocation8 + $0x1f] sm:$0x1] %vm2124, %v2577
      %2591 = vst.msk [vmem:[#allocation8 + $0x27] sm:$0x1] %vm2124, %v2560
      %2592 = vst.msk [vmem:[#allocation8 + $0x2f] sm:$0x1] %vm2124, %v2574
      %2593 = vst.msk [vmem:[#allocation8 + $0x37] sm:$0x1] %vm2124, %v2576
      %2594 = vst.msk [vmem:[#allocation8 + $0x3f] sm:$0x1] %vm2124, %v2578
    // Predicated region
    $region55: #{tpu_custom_call.1} parent=1 // pred_check
      _
    $region56: #{tpu_custom_call.1} parent=1 // pred_check_branch
      %2596 = sbr.rel (0) target = $region58
    $region57: #{tpu_custom_call.1} parent=1 // pred_region
      %s2598 = ssub.s32 1024, 1024
      %2599 = vsyncadd [#allocation4], %s2598
      %s2600 = sshll.u32 [#allocation8], 4
      %s2601 = int_to_ptr.vmem [resolvable:$true] %s2600
      %2606 = dma.vmem_to_hbm [thread:$0]  %s2601, 1024, %s10, [#allocation4], 128, 128, 8
    $region58: #{tpu_custom_call.1} parent=1 // pred_fallthru
      _
    // Predicated region
    $region59: #{tpu_custom_call.1} parent=1 // pred_check
      _
    $region60: #{tpu_custom_call.1} parent=1 // pred_check_branch
      %2608 = sbr.rel (0) target = $region62
    $region61: #{tpu_custom_call.1} parent=1 // pred_region
      %2609 = dma.done [#allocation4], 1024
    $region62: #{tpu_custom_call.1} parent=1 // pred_fallthru
      _
    %2610 = vsyncpa [#allocation3], 1
    %2611 = vsyncpa [#allocation6], 1
    %2612 = vsyncpa [#allocation4], 1

</llo_original>
